<compile_context>
chip_gen: v5e
topology: v5e:2x2
jax: 0.10.0
libtpu: 0.0.40
codegen_flags: <defaults>
</compile_context>

<pallas_src>
import math

import jax
import jax.numpy as jnp
import numpy as np
from jax.experimental import pallas as pl
from jax.experimental.pallas import tpu as pltpu


def _attn_kernel(x1_ref, x2_ref, x3_ref,
                 wq_ref, bq_ref, wk_ref, bk_ref, wv_ref, bv_ref,
                 scale_ref, mask_ref, o_ref):
    bf16 = jnp.bfloat16

    # f32 activations -> bf16 on the VPU (hidden under the weight DMA); each
    # projection is a single (ROWS,768)@(768,256|768) MXU matmul with f32 acc.
    x1 = x1_ref[...].astype(bf16)
    x2 = x2_ref[...].astype(bf16)
    x3 = x3_ref[...].astype(bf16)

    q = (jnp.dot(x1, wq_ref[...], preferred_element_type=jnp.float32)
         + bq_ref[...]).astype(bf16)                         # (ROWS, DKP)
    k = (jnp.dot(x2, wk_ref[...], preferred_element_type=jnp.float32)
         + bk_ref[...]).astype(bf16)                         # (ROWS, DKP)
    v = (jnp.dot(x3, wv_ref[...], preferred_element_type=jnp.float32)
         + bv_ref[...]).astype(bf16)                         # (ROWS, D)

    # One batched attention matmul over all rows; cross-batch entries are killed
    # by the additive -1e30 block-diagonal mask before the softmax.  The zero-
    # padded projection columns (214->256) contribute exactly 0 to q @ k^T.
    attn = jax.lax.dot_general(
        q, k, (((1,), (1,)), ((), ())),
        preferred_element_type=jnp.float32)                  # (ROWS, ROWS)

    scaled = attn * scale_ref[...] + mask_ref[...]

    # Numerically stable softmax; reciprocal on the EUP (approx) + multiply.
    m = jnp.max(scaled, axis=-1, keepdims=True)
    e = jnp.exp(scaled - m)
    p = e * pl.reciprocal(jnp.sum(e, axis=-1, keepdims=True), approx=True)

    # dropout with undefined p -> identity.  Masked entries of p are exactly 0,
    # so the single block-diagonal p @ v reproduces the per-batch matmuls.
    o_ref[...] = jnp.dot(p.astype(bf16), v,
                         preferred_element_type=jnp.float32).astype(o_ref.dtype)


def prepare_params(wq, bq, wk, bk, wv, bv, inv_scale, batch):
    """One-time (cacheable) weight/constant preparation — NOT per call."""
    D, DK = wq.shape
    DKP = ((DK + 127) // 128) * 128                           # 214 -> 256
    S = inv_scale.shape[0]
    rows = batch * S
    bf16 = jnp.bfloat16

    wq_p = jnp.pad(wq.astype(bf16), ((0, 0), (0, DKP - DK)))
    wk_p = jnp.pad(wk.astype(bf16), ((0, 0), (0, DKP - DK)))
    bq_p = jnp.pad(bq, ((0, 0), (0, DKP - DK)))
    bk_p = jnp.pad(bk, ((0, 0), (0, DKP - DK)))
    wv_b = wv.astype(bf16)

    # 1/inv_scale tiled to (ROWS, ROWS); off-diagonal blocks are irrelevant
    # because the additive mask sends them to -1e30 before the softmax.
    scale_tiled = jnp.tile((1.0 / inv_scale).astype(jnp.float32), (batch, batch))
    rb = np.arange(rows) // S
    mask_bias = jnp.asarray(
        np.where(rb[:, None] == rb[None, :], 0.0, -1e30), dtype=jnp.float32)

    return (wq_p, bq_p, wk_p, bk_p, wv_b, bv, scale_tiled, mask_bias)


def attention_forward(x1, x2, x3, params):
    B, S, D = x1.shape
    rows = B * S
    DKP = params[0].shape[1]

    # Contiguous reshape is a free bitcast; activations stay f32 (cast in-kernel).
    x1f = x1.reshape(rows, D)
    x2f = x2.reshape(rows, D)
    x3f = x3.reshape(rows, D)

    grid_spec = pl.GridSpec(
        grid=(1,),
        in_specs=[
            pl.BlockSpec((rows, D), lambda g: (0, 0)),      # x1 (f32)
            pl.BlockSpec((rows, D), lambda g: (0, 0)),      # x2 (f32)
            pl.BlockSpec((rows, D), lambda g: (0, 0)),      # x3 (f32)
            pl.BlockSpec((D, DKP), lambda g: (0, 0)),       # Wq (bf16, padded)
            pl.BlockSpec((1, DKP), lambda g: (0, 0)),       # bq (f32, padded)
            pl.BlockSpec((D, DKP), lambda g: (0, 0)),       # Wk (bf16, padded)
            pl.BlockSpec((1, DKP), lambda g: (0, 0)),       # bk (f32, padded)
            pl.BlockSpec((D, D), lambda g: (0, 0)),         # Wv (bf16)
            pl.BlockSpec((1, D), lambda g: (0, 0)),         # bv (f32)
            pl.BlockSpec((rows, rows), lambda g: (0, 0)),   # tiled 1/inv_scale
            pl.BlockSpec((rows, rows), lambda g: (0, 0)),   # block-diag -1e30 mask
        ],
        out_specs=pl.BlockSpec((rows, D), lambda g: (0, 0)),
    )

    out2d = pl.pallas_call(
        _attn_kernel,
        out_shape=jax.ShapeDtypeStruct((rows, D), jnp.float32),
        grid_spec=grid_spec,
        compiler_params=pltpu.CompilerParams(
            dimension_semantics=("arbitrary",)),
    )(x1f, x2f, x3f, *params)

    return out2d.reshape(B, S, D)


def _reference(x1, x2, x3, wq, bq, wk, bk, wv, bv, inv_scale):
    # Same reduced-precision recipe as the kernel (bf16 operands, f32 accumulation).
    bf16 = jnp.bfloat16
    q = (jnp.einsum("bsd,dk->bsk", x1.astype(bf16), wq.astype(bf16),
                    preferred_element_type=jnp.float32) + bq).astype(bf16)
    k = (jnp.einsum("bsd,dk->bsk", x2.astype(bf16), wk.astype(bf16),
                    preferred_element_type=jnp.float32) + bk).astype(bf16)
    v = (jnp.einsum("bsd,de->bse", x3.astype(bf16), wv.astype(bf16),
                    preferred_element_type=jnp.float32) + bv).astype(bf16)
    attn = jnp.einsum("bqk,btk->bqt", q, k, preferred_element_type=jnp.float32)
    scaled = attn * (1.0 / inv_scale)
    p = jax.nn.softmax(scaled, axis=-1)
    return jnp.einsum("bqt,bte->bqe", p.astype(bf16), v,
                      preferred_element_type=jnp.float32)


if __name__ == "__main__":
    # Shapes consistent with the module: seq=8, hidden=768, proj=214, batch=8
    # (x3's batch unified to 8 so the final matmul is well-defined).
    B, S, D, DK = 8, 8, 768, 214

    key = jax.random.PRNGKey(0)
    k_x1, k_x2, k_x3, k_wq, k_bq, k_wk, k_bk, k_wv, k_bv, k_sc = jax.random.split(key, 10)

    x1 = jax.random.normal(k_x1, (B, S, D), dtype=jnp.float32)
    x2 = jax.random.normal(k_x2, (B, S, D), dtype=jnp.float32)
    x3 = jax.random.normal(k_x3, (B, S, D), dtype=jnp.float32)

    # Deterministic Linear params (PyTorch-style uniform(-1/sqrt(in), 1/sqrt(in))),
    # stored pre-transposed as (in, out).
    bound = 1.0 / math.sqrt(D)
    wq = jax.random.uniform(k_wq, (D, DK), jnp.float32, -bound, bound)
    bq = jax.random.uniform(k_bq, (1, DK), jnp.float32, -bound, bound)
    wk = jax.random.uniform(k_wk, (D, DK), jnp.float32, -bound, bound)
    bk = jax.random.uniform(k_bk, (1, DK), jnp.float32, -bound, bound)
    wv = jax.random.uniform(k_wv, (D, D), jnp.float32, -bound, bound)
    bv = jax.random.uniform(k_bv, (1, D), jnp.float32, -bound, bound)

    # Deterministic stand-in for torch.FloatTensor(...).uniform_() + 1 ((S,S) so it
    # broadcasts against attn, unlike the original (214,768) tensor).
    inv_scale = jax.random.uniform(k_sc, (S, S), jnp.float32) + 1.0

    # One-time weight/constant preparation (cached across calls).
    params = prepare_params(wq, bq, wk, bk, wv, bv, inv_scale, B)
    params = jax.block_until_ready(params)

    out = attention_forward(x1, x2, x3, params)
    out = jax.block_until_ready(out)

    ref = _reference(x1, x2, x3, wq, bq, wk, bk, wv, bv, inv_scale)
    # bf16 operands + approx reciprocal in the softmax -> looser tolerance than f32.
    np.testing.assert_allclose(np.asarray(out), np.asarray(ref), rtol=2e-2, atol=2e-2)

    print("KERNEL_OK")
</pallas_src>

<mosaic_0001>
module attributes {stable_mosaic.version = 11 : i64} {
  func.func @_attn_kernel(%arg0: i32, %arg1: memref<64x768xf32, #tpu.memory_space<vmem>>, %arg2: memref<64x768xf32, #tpu.memory_space<vmem>>, %arg3: memref<64x768xf32, #tpu.memory_space<vmem>>, %arg4: memref<768x256xbf16, #tpu.memory_space<vmem>>, %arg5: memref<1x256xf32, #tpu.memory_space<vmem>>, %arg6: memref<768x256xbf16, #tpu.memory_space<vmem>>, %arg7: memref<1x256xf32, #tpu.memory_space<vmem>>, %arg8: memref<768x768xbf16, #tpu.memory_space<vmem>>, %arg9: memref<1x768xf32, #tpu.memory_space<vmem>>, %arg10: memref<64x64xf32, #tpu.memory_space<vmem>>, %arg11: memref<64x64xf32, #tpu.memory_space<vmem>>, %arg12: memref<64x768xf32, #tpu.memory_space<vmem>>) attributes {dimension_semantics = [#tpu.dimension_semantics<arbitrary>], iteration_bounds = array<i64: 1>, scalar_prefetch = 0 : i64, scratch_operands = 0 : i64, tpu.core_type = #tpu.core_type<tc>, window_params = [{pipeline_mode = #tpu.pipeline_mode<synchronous>, transform_indices = @transform_0, window_bounds = array<i64: 64, 768>}, {pipeline_mode = #tpu.pipeline_mode<synchronous>, transform_indices = @transform_1, window_bounds = array<i64: 64, 768>}, {pipeline_mode = #tpu.pipeline_mode<synchronous>, transform_indices = @transform_2, window_bounds = array<i64: 64, 768>}, {pipeline_mode = #tpu.pipeline_mode<synchronous>, transform_indices = @transform_3, window_bounds = array<i64: 768, 256>}, {pipeline_mode = #tpu.pipeline_mode<synchronous>, transform_indices = @transform_4, window_bounds = array<i64: 1, 256>}, {pipeline_mode = #tpu.pipeline_mode<synchronous>, transform_indices = @transform_5, window_bounds = array<i64: 768, 256>}, {pipeline_mode = #tpu.pipeline_mode<synchronous>, transform_indices = @transform_6, window_bounds = array<i64: 1, 256>}, {pipeline_mode = #tpu.pipeline_mode<synchronous>, transform_indices = @transform_7, window_bounds = array<i64: 768, 768>}, {pipeline_mode = #tpu.pipeline_mode<synchronous>, transform_indices = @transform_8, window_bounds = array<i64: 1, 768>}, {pipeline_mode = #tpu.pipeline_mode<synchronous>, transform_indices = @transform_9, window_bounds = array<i64: 64, 64>}, {pipeline_mode = #tpu.pipeline_mode<synchronous>, transform_indices = @transform_10, window_bounds = array<i64: 64, 64>}, {pipeline_mode = #tpu.pipeline_mode<synchronous>, transform_indices = @transform_11, window_bounds = array<i64: 64, 768>}]} {
    %c0 = arith.constant 0 : index
    %c0_0 = arith.constant 0 : index
    %0 = vector.load %arg1[%c0, %c0_0] : memref<64x768xf32, #tpu.memory_space<vmem>>, vector<64x768xf32>
    %1 = arith.truncf %0 : vector<64x768xf32> to vector<64x768xbf16>
    %c0_1 = arith.constant 0 : index
    %c0_2 = arith.constant 0 : index
    %2 = vector.load %arg2[%c0_1, %c0_2] : memref<64x768xf32, #tpu.memory_space<vmem>>, vector<64x768xf32>
    %3 = arith.truncf %2 : vector<64x768xf32> to vector<64x768xbf16>
    %c0_3 = arith.constant 0 : index
    %c0_4 = arith.constant 0 : index
    %4 = vector.load %arg3[%c0_3, %c0_4] : memref<64x768xf32, #tpu.memory_space<vmem>>, vector<64x768xf32>
    %5 = arith.truncf %4 : vector<64x768xf32> to vector<64x768xbf16>
    %c0_5 = arith.constant 0 : index
    %c0_6 = arith.constant 0 : index
    %6 = vector.load %arg4[%c0_5, %c0_6] : memref<768x256xbf16, #tpu.memory_space<vmem>>, vector<768x256xbf16>
    %cst = arith.constant dense<0.000000e+00> : vector<64x256xf32>
    %7 = tpu.matmul %1, %6, %cst {dimension_numbers = #tpu.dot_dimension_numbers<[1], [0], [0], [1], [0, 0, 1, 1], [], []>} : vector<64x768xbf16>, vector<768x256xbf16>, vector<64x256xf32> -> vector<64x256xf32>
    %c0_7 = arith.constant 0 : index
    %c0_8 = arith.constant 0 : index
    %8 = vector.load %arg5[%c0_7, %c0_8] : memref<1x256xf32, #tpu.memory_space<vmem>>, vector<1x256xf32>
    %9 = vector.broadcast %8 : vector<1x256xf32> to vector<64x256xf32>
    %10 = arith.addf %7, %9 : vector<64x256xf32>
    %11 = arith.truncf %10 : vector<64x256xf32> to vector<64x256xbf16>
    %c0_9 = arith.constant 0 : index
    %c0_10 = arith.constant 0 : index
    %12 = vector.load %arg6[%c0_9, %c0_10] : memref<768x256xbf16, #tpu.memory_space<vmem>>, vector<768x256xbf16>
    %cst_11 = arith.constant dense<0.000000e+00> : vector<64x256xf32>
    %13 = tpu.matmul %3, %12, %cst_11 {dimension_numbers = #tpu.dot_dimension_numbers<[1], [0], [0], [1], [0, 0, 1, 1], [], []>} : vector<64x768xbf16>, vector<768x256xbf16>, vector<64x256xf32> -> vector<64x256xf32>
    %c0_12 = arith.constant 0 : index
    %c0_13 = arith.constant 0 : index
    %14 = vector.load %arg7[%c0_12, %c0_13] : memref<1x256xf32, #tpu.memory_space<vmem>>, vector<1x256xf32>
    %15 = vector.broadcast %14 : vector<1x256xf32> to vector<64x256xf32>
    %16 = arith.addf %13, %15 : vector<64x256xf32>
    %17 = arith.truncf %16 : vector<64x256xf32> to vector<64x256xbf16>
    %c0_14 = arith.constant 0 : index
    %c0_15 = arith.constant 0 : index
    %18 = vector.load %arg8[%c0_14, %c0_15] : memref<768x768xbf16, #tpu.memory_space<vmem>>, vector<768x768xbf16>
    %cst_16 = arith.constant dense<0.000000e+00> : vector<64x768xf32>
    %19 = tpu.matmul %5, %18, %cst_16 {dimension_numbers = #tpu.dot_dimension_numbers<[1], [0], [0], [1], [0, 0, 1, 1], [], []>} : vector<64x768xbf16>, vector<768x768xbf16>, vector<64x768xf32> -> vector<64x768xf32>
    %c0_17 = arith.constant 0 : index
    %c0_18 = arith.constant 0 : index
    %20 = vector.load %arg9[%c0_17, %c0_18] : memref<1x768xf32, #tpu.memory_space<vmem>>, vector<1x768xf32>
    %21 = vector.broadcast %20 : vector<1x768xf32> to vector<64x768xf32>
    %22 = arith.addf %19, %21 : vector<64x768xf32>
    %23 = arith.truncf %22 : vector<64x768xf32> to vector<64x768xbf16>
    %cst_19 = arith.constant dense<0.000000e+00> : vector<64x64xf32>
    %24 = tpu.matmul %11, %17, %cst_19 {dimension_numbers = #tpu.dot_dimension_numbers<[1], [1], [0], [0], [0, 0, 1, 0], [], []>} : vector<64x256xbf16>, vector<64x256xbf16>, vector<64x64xf32> -> vector<64x64xf32>
    %c0_20 = arith.constant 0 : index
    %c0_21 = arith.constant 0 : index
    %25 = vector.load %arg10[%c0_20, %c0_21] : memref<64x64xf32, #tpu.memory_space<vmem>>, vector<64x64xf32>
    %26 = arith.mulf %24, %25 : vector<64x64xf32>
    %c0_22 = arith.constant 0 : index
    %c0_23 = arith.constant 0 : index
    %27 = vector.load %arg11[%c0_22, %c0_23] : memref<64x64xf32, #tpu.memory_space<vmem>>, vector<64x64xf32>
    %28 = arith.addf %26, %27 : vector<64x64xf32>
    %cst_24 = arith.constant dense<0xFF800000> : vector<64xf32>
    %29 = vector.multi_reduction <maximumf>, %28, %cst_24 [1] : vector<64x64xf32> to vector<64xf32>
    %30 = vector.shape_cast %29 : vector<64xf32> to vector<64x1xf32>
    %31 = vector.broadcast %30 : vector<64x1xf32> to vector<64x64xf32>
    %32 = arith.subf %28, %31 : vector<64x64xf32>
    %33 = math.exp %32 : vector<64x64xf32>
    %cst_25 = arith.constant dense<0.000000e+00> : vector<64xf32>
    %34 = vector.multi_reduction <add>, %33, %cst_25 [1] : vector<64x64xf32> to vector<64xf32>
    %35 = vector.shape_cast %34 : vector<64xf32> to vector<64x1xf32>
    %36 = tpu.reciprocal %35 {approx = true} : vector<64x1xf32> -> vector<64x1xf32>
    %37 = vector.broadcast %36 : vector<64x1xf32> to vector<64x64xf32>
    %38 = arith.mulf %33, %37 : vector<64x64xf32>
    %39 = arith.truncf %38 : vector<64x64xf32> to vector<64x64xbf16>
    %cst_26 = arith.constant dense<0.000000e+00> : vector<64x768xf32>
    %40 = tpu.matmul %39, %23, %cst_26 {dimension_numbers = #tpu.dot_dimension_numbers<[1], [0], [0], [1], [0, 0, 1, 1], [], []>} : vector<64x64xbf16>, vector<64x768xbf16>, vector<64x768xf32> -> vector<64x768xf32>
    %c0_27 = arith.constant 0 : index
    %c0_28 = arith.constant 0 : index
    %41 = vector.load %arg12[%c0_27, %c0_28] : memref<64x768xf32, #tpu.memory_space<vmem>>, vector<64x768xf32>
    tpu.vector_store %arg12[%c0_27, %c0_28], %40 {strides = array<i32>} : memref<64x768xf32, #tpu.memory_space<vmem>>, vector<64x768xf32>,
    return
  }
  func.func @transform_0(%arg0: i32) -> (i32, i32) {
    %c0_i32 = arith.constant 0 : i32
    %c0_i32_0 = arith.constant 0 : i32
    %c0_i32_1 = arith.constant 0 : i32
    return %c0_i32, %c0_i32_0 : i32, i32
  }
  func.func @transform_1(%arg0: i32) -> (i32, i32) {
    %c0_i32 = arith.constant 0 : i32
    %c0_i32_0 = arith.constant 0 : i32
    %c0_i32_1 = arith.constant 0 : i32
    return %c0_i32, %c0_i32_0 : i32, i32
  }
  func.func @transform_2(%arg0: i32) -> (i32, i32) {
    %c0_i32 = arith.constant 0 : i32
    %c0_i32_0 = arith.constant 0 : i32
    %c0_i32_1 = arith.constant 0 : i32
    return %c0_i32, %c0_i32_0 : i32, i32
  }
  func.func @transform_3(%arg0: i32) -> (i32, i32) {
    %c0_i32 = arith.constant 0 : i32
    %c0_i32_0 = arith.constant 0 : i32
    %c0_i32_1 = arith.constant 0 : i32
    return %c0_i32, %c0_i32_0 : i32, i32
  }
  func.func @transform_4(%arg0: i32) -> (i32, i32) {
    %c0_i32 = arith.constant 0 : i32
    %c0_i32_0 = arith.constant 0 : i32
    %c0_i32_1 = arith.constant 0 : i32
    return %c0_i32, %c0_i32_0 : i32, i32
  }
  func.func @transform_5(%arg0: i32) -> (i32, i32) {
    %c0_i32 = arith.constant 0 : i32
    %c0_i32_0 = arith.constant 0 : i32
    %c0_i32_1 = arith.constant 0 : i32
    return %c0_i32, %c0_i32_0 : i32, i32
  }
  func.func @transform_6(%arg0: i32) -> (i32, i32) {
    %c0_i32 = arith.constant 0 : i32
    %c0_i32_0 = arith.constant 0 : i32
    %c0_i32_1 = arith.constant 0 : i32
    return %c0_i32, %c0_i32_0 : i32, i32
  }
  func.func @transform_7(%arg0: i32) -> (i32, i32) {
    %c0_i32 = arith.constant 0 : i32
    %c0_i32_0 = arith.constant 0 : i32
    %c0_i32_1 = arith.constant 0 : i32
    return %c0_i32, %c0_i32_0 : i32, i32
  }
  func.func @transform_8(%arg0: i32) -> (i32, i32) {
    %c0_i32 = arith.constant 0 : i32
    %c0_i32_0 = arith.constant 0 : i32
    %c0_i32_1 = arith.constant 0 : i32
    return %c0_i32, %c0_i32_0 : i32, i32
  }
  func.func @transform_9(%arg0: i32) -> (i32, i32) {
    %c0_i32 = arith.constant 0 : i32
    %c0_i32_0 = arith.constant 0 : i32
    %c0_i32_1 = arith.constant 0 : i32
    return %c0_i32, %c0_i32_0 : i32, i32
  }
  func.func @transform_10(%arg0: i32) -> (i32, i32) {
    %c0_i32 = arith.constant 0 : i32
    %c0_i32_0 = arith.constant 0 : i32
    %c0_i32_1 = arith.constant 0 : i32
    return %c0_i32, %c0_i32_0 : i32, i32
  }
  func.func @transform_11(%arg0: i32) -> (i32, i32) {
    %c0_i32 = arith.constant 0 : i32
    %c0_i32_0 = arith.constant 0 : i32
    %c0_i32_1 = arith.constant 0 : i32
    return %c0_i32, %c0_i32_0 : i32, i32
  }
}

</mosaic_0001>

<llo_original>
// kernel: tpu_custom_call.1
$region0: #{tpu_custom_call.1}
  #allocation0 [shape = 'u32[]', space=smem, size = 0x4, offset = 0x4, fixed_abs, tag = 'smem constant byte address 0x4 - core index']
  #allocation1 [shape = 'u32[72,128]{1,0:T(1,128)}', space=vmem, size = 0x9000, scoped, tag = 'internal scratch']
  %s0 = inlined_call_operand.hbm [shape: f32[64,768], index: 0, kind: input, shape index: {}]
  %s1 = inlined_call_operand.hbm [shape: f32[64,768], index: 1, kind: input, shape index: {}]
  %s2 = inlined_call_operand.hbm [shape: f32[64,768], index: 2, kind: input, shape index: {}]
  %s3 = inlined_call_operand.hbm [shape: bf16[768,256], index: 3, kind: input, shape index: {}]
  %s4 = inlined_call_operand.hbm [shape: f32[1,256], index: 4, kind: input, shape index: {}]
  %s5 = inlined_call_operand.hbm [shape: bf16[768,256], index: 5, kind: input, shape index: {}]
  %s6 = inlined_call_operand.hbm [shape: f32[1,256], index: 6, kind: input, shape index: {}]
  %s7 = inlined_call_operand.hbm [shape: bf16[768,768], index: 7, kind: input, shape index: {}]
  %s8 = inlined_call_operand.hbm [shape: f32[1,768], index: 8, kind: input, shape index: {}]
  %s9 = inlined_call_operand.hbm [shape: f32[64,64], index: 9, kind: input, shape index: {}]
  %s10 = inlined_call_operand.hbm [shape: f32[64,64], index: 10, kind: input, shape index: {}]
  %s11 = inlined_call_operand.hbm [shape: f32[64,768], index: 11, kind: output, shape index: {}]
  %s12 = sld [smem:[#allocation0]]
  $region98: #{tpu_custom_call.1} parent=0
    _
  %s14 = ssub.s32 1, %s12
  %s15 = scalar_select 0, %s14, %s12
  $region1: #{tpu_custom_call.1} parent=0
    #allocation2 [shape = 'u8[196608]{0}', space=vmem, size = 0x30000, scoped, tag = 'input window, operand 0, single buffered']
    #allocation3 [shape = 's32[1]{0}', space=sflag, size = 0x4, scoped, tag = 'scoped memory for tpu_custom_call.1']
    #allocation4 [shape = 's32[1]{0}', space=sflag, size = 0x4, scoped, tag = 'scoped memory for tpu_custom_call.1']
    #allocation5 [shape = 'u8[196608]{0}', space=vmem, size = 0x30000, scoped, tag = 'input window, operand 1, single buffered']
    #allocation6 [shape = 's32[1]{0}', space=sflag, size = 0x4, scoped, tag = 'scoped memory for tpu_custom_call.1']
    #allocation7 [shape = 'u8[196608]{0}', space=vmem, size = 0x30000, scoped, tag = 'input window, operand 2, single buffered']
    #allocation8 [shape = 'u8[393216]{0}', space=vmem, size = 0x60000, scoped, tag = 'input window, operand 3, single buffered']
    #allocation9 [shape = 's32[1]{0}', space=sflag, size = 0x4, scoped, tag = 'scoped memory for tpu_custom_call.1']
    #allocation10 [shape = 'u8[1024]{0}', space=vmem, size = 0x400, scoped, tag = 'input window, operand 4, single buffered']
    #allocation11 [shape = 'u8[393216]{0}', space=vmem, size = 0x60000, scoped, tag = 'input window, operand 5, single buffered']
    #allocation12 [shape = 's32[1]{0}', space=sflag, size = 0x4, scoped, tag = 'scoped memory for tpu_custom_call.1']
    #allocation13 [shape = 'u8[1024]{0}', space=vmem, size = 0x400, scoped, tag = 'input window, operand 6, single buffered']
    #allocation14 [shape = 'u8[1179648]{0}', space=vmem, size = 0x120000, scoped, tag = 'input window, operand 7, single buffered']
    #allocation15 [shape = 's32[1]{0}', space=sflag, size = 0x4, scoped, tag = 'scoped memory for tpu_custom_call.1']
    #allocation16 [shape = 'u8[3072]{0}', space=vmem, size = 0xc00, scoped, tag = 'input window, operand 8, single buffered']
    #allocation17 [shape = 'u8[32768]{0}', space=vmem, size = 0x8000, scoped, tag = 'input window, operand 9, single buffered']
    #allocation18 [shape = 's32[1]{0}', space=sflag, size = 0x4, scoped, tag = 'scoped memory for tpu_custom_call.1']
    #allocation19 [shape = 'u8[32768]{0}', space=vmem, size = 0x8000, scoped, tag = 'input window, operand 10, single buffered']
    #allocation20 [shape = 'u8[196608]{0}', space=vmem, size = 0x30000, scoped, tag = 'output window, operand 0, single buffered']
    %16 = vsyncpa [#allocation3], 0
    %17 = vsyncpa [#allocation6], 0
    %18 = vsyncpa [#allocation9], 0
    %19 = vsyncpa [#allocation12], 0
    %20 = vsyncpa [#allocation15], 0
    %21 = vsyncpa [#allocation18], 0
    %22 = vsyncpa [#allocation4], 0
    // Predicated region
    $region2: #{tpu_custom_call.1} parent=1 // pred_check
      _
    $region3: #{tpu_custom_call.1} parent=1 // pred_check_branch
      %24 = sbr.rel (0) target = $region5
    $region4: #{tpu_custom_call.1} parent=1 // pred_region
      %26 = vsyncadd [#allocation3], 0
      %s27 = sshll.u32 %s0, 4
      %s28 = int_to_ptr.hbm [resolvable:$true] %s27
      %s29 = sshll.u32 [#allocation2], 4
      %s30 = int_to_ptr.vmem [resolvable:$true] %s29
      %35 = dma.hbm_to_vmem [thread:$0]  %s28, 6144, %s30, [#allocation3], 768, 768, 48
    $region5: #{tpu_custom_call.1} parent=1 // pred_fallthru
      _
    // Predicated region
    $region6: #{tpu_custom_call.1} parent=1 // pred_check
      _
    $region7: #{tpu_custom_call.1} parent=1 // pred_check_branch
      %37 = sbr.rel (0) target = $region9
    $region8: #{tpu_custom_call.1} parent=1 // pred_region
      %39 = vsyncadd [#allocation6], 0
      %s40 = sshll.u32 %s1, 4
      %s41 = int_to_ptr.hbm [resolvable:$true] %s40
      %s42 = sshll.u32 [#allocation5], 4
      %s43 = int_to_ptr.vmem [resolvable:$true] %s42
      %48 = dma.hbm_to_vmem [thread:$0]  %s41, 6144, %s43, [#allocation6], 768, 768, 48
    $region9: #{tpu_custom_call.1} parent=1 // pred_fallthru
      _
    // Predicated region
    $region10: #{tpu_custom_call.1} parent=1 // pred_check
      _
    $region11: #{tpu_custom_call.1} parent=1 // pred_check_branch
      %50 = sbr.rel (0) target = $region13
    $region12: #{tpu_custom_call.1} parent=1 // pred_region
      %52 = vsyncadd [#allocation6], 0
      %s53 = sshll.u32 %s2, 4
      %s54 = int_to_ptr.hbm [resolvable:$true] %s53
      %s55 = sshll.u32 [#allocation7], 4
      %s56 = int_to_ptr.vmem [resolvable:$true] %s55
      %61 = dma.hbm_to_vmem [thread:$0]  %s54, 6144, %s56, [#allocation6], 768, 768, 48
    $region13: #{tpu_custom_call.1} parent=1 // pred_fallthru
      _
    // Predicated region
    $region14: #{tpu_custom_call.1} parent=1 // pred_check
      _
    $region15: #{tpu_custom_call.1} parent=1 // pred_check_branch
      %63 = sbr.rel (0) target = $region17
    $region16: #{tpu_custom_call.1} parent=1 // pred_region
      %65 = vsyncadd [#allocation9], 0
      %s66 = sshll.u32 %s3, 4
      %s67 = int_to_ptr.hbm [resolvable:$true] %s66
      %s68 = sshll.u32 [#allocation8], 4
      %s69 = int_to_ptr.vmem [resolvable:$true] %s68
      %74 = dma.hbm_to_vmem [thread:$0]  %s67, 12288, %s69, [#allocation9], 128, 128, 8
    $region17: #{tpu_custom_call.1} parent=1 // pred_fallthru
      _
    // Predicated region
    $region18: #{tpu_custom_call.1} parent=1 // pred_check
      _
    $region19: #{tpu_custom_call.1} parent=1 // pred_check_branch
      %76 = sbr.rel (0) target = $region21
    $region20: #{tpu_custom_call.1} parent=1 // pred_region
      %78 = vsyncadd [#allocation9], 0
      %s80 = sshll.u32 %s4, 4
      %s81 = int_to_ptr.hbm [resolvable:$true] %s80
      %s82 = sshll.u32 [#allocation10], 4
      %s83 = int_to_ptr.vmem [resolvable:$true] %s82
      %85 = dma.hbm_to_vmem [thread:$0]  %s81, 32, %s83, [#allocation9]
    $region21: #{tpu_custom_call.1} parent=1 // pred_fallthru
      _
    // Predicated region
    $region22: #{tpu_custom_call.1} parent=1 // pred_check
      _
    $region23: #{tpu_custom_call.1} parent=1 // pred_check_branch
      %87 = sbr.rel (0) target = $region25
    $region24: #{tpu_custom_call.1} parent=1 // pred_region
      %89 = vsyncadd [#allocation12], 0
      %s90 = sshll.u32 %s5, 4
      %s91 = int_to_ptr.hbm [resolvable:$true] %s90
      %s92 = sshll.u32 [#allocation11], 4
      %s93 = int_to_ptr.vmem [resolvable:$true] %s92
      %98 = dma.hbm_to_vmem [thread:$0]  %s91, 12288, %s93, [#allocation12], 128, 128, 8
    $region25: #{tpu_custom_call.1} parent=1 // pred_fallthru
      _
    // Predicated region
    $region26: #{tpu_custom_call.1} parent=1 // pred_check
      _
    $region27: #{tpu_custom_call.1} parent=1 // pred_check_branch
      %100 = sbr.rel (0) target = $region29
    $region28: #{tpu_custom_call.1} parent=1 // pred_region
      %102 = vsyncadd [#allocation12], 0
      %s104 = sshll.u32 %s6, 4
      %s105 = int_to_ptr.hbm [resolvable:$true] %s104
      %s106 = sshll.u32 [#allocation13], 4
      %s107 = int_to_ptr.vmem [resolvable:$true] %s106
      %109 = dma.hbm_to_vmem [thread:$0]  %s105, 32, %s107, [#allocation12]
    $region29: #{tpu_custom_call.1} parent=1 // pred_fallthru
      _
    // Predicated region
    $region30: #{tpu_custom_call.1} parent=1 // pred_check
      _
    $region31: #{tpu_custom_call.1} parent=1 // pred_check_branch
      %111 = sbr.rel (0) target = $region33
    $region32: #{tpu_custom_call.1} parent=1 // pred_region
      %113 = vsyncadd [#allocation15], 0
      %s114 = sshll.u32 %s7, 4
      %s115 = int_to_ptr.hbm [resolvable:$true] %s114
      %s116 = sshll.u32 [#allocation14], 4
      %s117 = int_to_ptr.vmem [resolvable:$true] %s116
      %122 = dma.hbm_to_vmem [thread:$0]  %s115, 36864, %s117, [#allocation15], 384, 384, 24
    $region33: #{tpu_custom_call.1} parent=1 // pred_fallthru
      _
    // Predicated region
    $region34: #{tpu_custom_call.1} parent=1 // pred_check
      _
    $region35: #{tpu_custom_call.1} parent=1 // pred_check_branch
      %124 = sbr.rel (0) target = $region37
    $region36: #{tpu_custom_call.1} parent=1 // pred_region
      %126 = vsyncadd [#allocation15], 0
      %s128 = sshll.u32 %s8, 4
      %s129 = int_to_ptr.hbm [resolvable:$true] %s128
      %s130 = sshll.u32 [#allocation16], 4
      %s131 = int_to_ptr.vmem [resolvable:$true] %s130
      %133 = dma.hbm_to_vmem [thread:$0]  %s129, 96, %s131, [#allocation15]
    $region37: #{tpu_custom_call.1} parent=1 // pred_fallthru
      _
    // Predicated region
    $region38: #{tpu_custom_call.1} parent=1 // pred_check
      _
    $region39: #{tpu_custom_call.1} parent=1 // pred_check_branch
      %135 = sbr.rel (0) target = $region41
    $region40: #{tpu_custom_call.1} parent=1 // pred_region
      %137 = vsyncadd [#allocation18], 0
      %s138 = sshll.u32 %s9, 4
      %s139 = int_to_ptr.hbm [resolvable:$true] %s138
      %s140 = sshll.u32 [#allocation17], 4
      %s141 = int_to_ptr.vmem [resolvable:$true] %s140
      %146 = dma.hbm_to_vmem [thread:$0]  %s139, 1024, %s141, [#allocation18], 128, 128, 8
    $region41: #{tpu_custom_call.1} parent=1 // pred_fallthru
      _
    // Predicated region
    $region42: #{tpu_custom_call.1} parent=1 // pred_check
      _
    $region43: #{tpu_custom_call.1} parent=1 // pred_check_branch
      %148 = sbr.rel (0) target = $region45
    $region44: #{tpu_custom_call.1} parent=1 // pred_region
      %150 = vsyncadd [#allocation18], 0
      %s151 = sshll.u32 %s10, 4
      %s152 = int_to_ptr.hbm [resolvable:$true] %s151
      %s153 = sshll.u32 [#allocation19], 4
      %s154 = int_to_ptr.vmem [resolvable:$true] %s153
      %159 = dma.hbm_to_vmem [thread:$0]  %s152, 1024, %s154, [#allocation18], 128, 128, 8
    $region45: #{tpu_custom_call.1} parent=1 // pred_fallthru
      _
    // Predicated region
    $region46: #{tpu_custom_call.1} parent=1 // pred_check
      _
    $region47: #{tpu_custom_call.1} parent=1 // pred_check_branch
      %161 = sbr.rel (0) target = $region49
    $region48: #{tpu_custom_call.1} parent=1 // pred_region
      %163 = dma.done [#allocation3], 6144
    $region49: #{tpu_custom_call.1} parent=1 // pred_fallthru
      _
    // Predicated region
    $region50: #{tpu_custom_call.1} parent=1 // pred_check
      _
    $region51: #{tpu_custom_call.1} parent=1 // pred_check_branch
      %165 = sbr.rel (0) target = $region53
    $region52: #{tpu_custom_call.1} parent=1 // pred_region
      %167 = dma.done [#allocation6], 6144
    $region53: #{tpu_custom_call.1} parent=1 // pred_fallthru
      _
    // Predicated region
    $region54: #{tpu_custom_call.1} parent=1 // pred_check
      _
    $region55: #{tpu_custom_call.1} parent=1 // pred_check_branch
      %169 = sbr.rel (0) target = $region57
    $region56: #{tpu_custom_call.1} parent=1 // pred_region
      %171 = dma.done [#allocation6], 6144
    $region57: #{tpu_custom_call.1} parent=1 // pred_fallthru
      _
    // Predicated region
    $region58: #{tpu_custom_call.1} parent=1 // pred_check
      _
    $region59: #{tpu_custom_call.1} parent=1 // pred_check_branch
      %173 = sbr.rel (0) target = $region61
    $region60: #{tpu_custom_call.1} parent=1 // pred_region
      %175 = dma.done [#allocation9], 12288
    $region61: #{tpu_custom_call.1} parent=1 // pred_fallthru
      _
    // Predicated region
    $region62: #{tpu_custom_call.1} parent=1 // pred_check
      _
    $region63: #{tpu_custom_call.1} parent=1 // pred_check_branch
      %177 = sbr.rel (0) target = $region65
    $region64: #{tpu_custom_call.1} parent=1 // pred_region
      %179 = dma.done [#allocation9], 32
    $region65: #{tpu_custom_call.1} parent=1 // pred_fallthru
      _
    // Predicated region
    $region66: #{tpu_custom_call.1} parent=1 // pred_check
      _
    $region67: #{tpu_custom_call.1} parent=1 // pred_check_branch
      %181 = sbr.rel (0) target = $region69
    $region68: #{tpu_custom_call.1} parent=1 // pred_region
      %183 = dma.done [#allocation12], 12288
    $region69: #{tpu_custom_call.1} parent=1 // pred_fallthru
      _
    // Predicated region
    $region70: #{tpu_custom_call.1} parent=1 // pred_check
      _
    $region71: #{tpu_custom_call.1} parent=1 // pred_check_branch
      %185 = sbr.rel (0) target = $region73
    $region72: #{tpu_custom_call.1} parent=1 // pred_region
      %187 = dma.done [#allocation12], 32
    $region73: #{tpu_custom_call.1} parent=1 // pred_fallthru
      _
    // Predicated region
    $region74: #{tpu_custom_call.1} parent=1 // pred_check
      _
    $region75: #{tpu_custom_call.1} parent=1 // pred_check_branch
      %189 = sbr.rel (0) target = $region77
    $region76: #{tpu_custom_call.1} parent=1 // pred_region
      %191 = dma.done [#allocation15], 36864
    $region77: #{tpu_custom_call.1} parent=1 // pred_fallthru
      _
    // Predicated region
    $region78: #{tpu_custom_call.1} parent=1 // pred_check
      _
    $region79: #{tpu_custom_call.1} parent=1 // pred_check_branch
      %193 = sbr.rel (0) target = $region81
    $region80: #{tpu_custom_call.1} parent=1 // pred_region
      %195 = dma.done [#allocation15], 96
    $region81: #{tpu_custom_call.1} parent=1 // pred_fallthru
      _
    // Predicated region
    $region82: #{tpu_custom_call.1} parent=1 // pred_check
      _
    $region83: #{tpu_custom_call.1} parent=1 // pred_check_branch
      %197 = sbr.rel (0) target = $region85
    $region84: #{tpu_custom_call.1} parent=1 // pred_region
      %199 = dma.done [#allocation18], 1024
    $region85: #{tpu_custom_call.1} parent=1 // pred_fallthru
      _
    // Predicated region
    $region86: #{tpu_custom_call.1} parent=1 // pred_check
      _
    $region87: #{tpu_custom_call.1} parent=1 // pred_check_branch
      %201 = sbr.rel (0) target = $region89
    $region88: #{tpu_custom_call.1} parent=1 // pred_region
      %203 = dma.done [#allocation18], 1024
    $region89: #{tpu_custom_call.1} parent=1 // pred_fallthru
      _
    %v205 = vld [vmem:[#allocation2] sm:$0xff]
    %v206 = vld [vmem:[#allocation2 + $0x8] sm:$0xff]
    %v207 = vld [vmem:[#allocation2 + $0x10] sm:$0xff]
    %v208 = vld [vmem:[#allocation2 + $0x18] sm:$0xff]
    %v209 = vld [vmem:[#allocation2 + $0x20] sm:$0xff]
    %v210 = vld [vmem:[#allocation2 + $0x28] sm:$0xff]
    %v211 = vld [vmem:[#allocation2 + $0x30] sm:$0xff]
    %v212 = vld [vmem:[#allocation2 + $0x38] sm:$0xff]
    %v213 = vld [vmem:[#allocation2 + $0x40] sm:$0xff]
    %v214 = vld [vmem:[#allocation2 + $0x48] sm:$0xff]
    %v215 = vld [vmem:[#allocation2 + $0x50] sm:$0xff]
    %v216 = vld [vmem:[#allocation2 + $0x58] sm:$0xff]
    %v217 = vld [vmem:[#allocation2 + $0x60] sm:$0xff]
    %v218 = vld [vmem:[#allocation2 + $0x68] sm:$0xff]
    %v219 = vld [vmem:[#allocation2 + $0x70] sm:$0xff]
    %v220 = vld [vmem:[#allocation2 + $0x78] sm:$0xff]
    %v221 = vld [vmem:[#allocation2 + $0x80] sm:$0xff]
    %v222 = vld [vmem:[#allocation2 + $0x88] sm:$0xff]
    %v223 = vld [vmem:[#allocation2 + $0x90] sm:$0xff]
    %v224 = vld [vmem:[#allocation2 + $0x98] sm:$0xff]
    %v225 = vld [vmem:[#allocation2 + $0xa0] sm:$0xff]
    %v226 = vld [vmem:[#allocation2 + $0xa8] sm:$0xff]
    %v227 = vld [vmem:[#allocation2 + $0xb0] sm:$0xff]
    %v228 = vld [vmem:[#allocation2 + $0xb8] sm:$0xff]
    %v229 = vld [vmem:[#allocation2 + $0xc0] sm:$0xff]
    %v230 = vld [vmem:[#allocation2 + $0xc8] sm:$0xff]
    %v231 = vld [vmem:[#allocation2 + $0xd0] sm:$0xff]
    %v232 = vld [vmem:[#allocation2 + $0xd8] sm:$0xff]
    %v233 = vld [vmem:[#allocation2 + $0xe0] sm:$0xff]
    %v234 = vld [vmem:[#allocation2 + $0xe8] sm:$0xff]
    %v235 = vld [vmem:[#allocation2 + $0xf0] sm:$0xff]
    %v236 = vld [vmem:[#allocation2 + $0xf8] sm:$0xff]
    %v237 = vld [vmem:[#allocation2 + $0x100] sm:$0xff]
    %v238 = vld [vmem:[#allocation2 + $0x108] sm:$0xff]
    %v239 = vld [vmem:[#allocation2 + $0x110] sm:$0xff]
    %v240 = vld [vmem:[#allocation2 + $0x118] sm:$0xff]
    %v241 = vld [vmem:[#allocation2 + $0x120] sm:$0xff]
    %v242 = vld [vmem:[#allocation2 + $0x128] sm:$0xff]
    %v243 = vld [vmem:[#allocation2 + $0x130] sm:$0xff]
    %v244 = vld [vmem:[#allocation2 + $0x138] sm:$0xff]
    %v245 = vld [vmem:[#allocation2 + $0x140] sm:$0xff]
    %v246 = vld [vmem:[#allocation2 + $0x148] sm:$0xff]
    %v247 = vld [vmem:[#allocation2 + $0x150] sm:$0xff]
    %v248 = vld [vmem:[#allocation2 + $0x158] sm:$0xff]
    %v249 = vld [vmem:[#allocation2 + $0x160] sm:$0xff]
    %v250 = vld [vmem:[#allocation2 + $0x168] sm:$0xff]
    %v251 = vld [vmem:[#allocation2 + $0x170] sm:$0xff]
    %v252 = vld [vmem:[#allocation2 + $0x178] sm:$0xff]
    %v253 = vpack.c.bf16 %v211, %v205
    %v254 = vpack.c.bf16 %v212, %v206
    %v255 = vpack.c.bf16 %v213, %v207
    %v256 = vpack.c.bf16 %v214, %v208
    %v257 = vpack.c.bf16 %v215, %v209
    %v258 = vpack.c.bf16 %v216, %v210
    %v259 = vpack.c.bf16 %v223, %v217
    %v260 = vpack.c.bf16 %v224, %v218
    %v261 = vpack.c.bf16 %v225, %v219
    %v262 = vpack.c.bf16 %v226, %v220
    %v263 = vpack.c.bf16 %v227, %v221
    %v264 = vpack.c.bf16 %v228, %v222
    %v265 = vpack.c.bf16 %v235, %v229
    %v266 = vpack.c.bf16 %v236, %v230
    %v267 = vpack.c.bf16 %v237, %v231
    %v268 = vpack.c.bf16 %v238, %v232
    %v269 = vpack.c.bf16 %v239, %v233
    %v270 = vpack.c.bf16 %v240, %v234
    %v271 = vpack.c.bf16 %v247, %v241
    %v272 = vpack.c.bf16 %v248, %v242
    %v273 = vpack.c.bf16 %v249, %v243
    %v274 = vpack.c.bf16 %v250, %v244
    %v275 = vpack.c.bf16 %v251, %v245
    %v276 = vpack.c.bf16 %v252, %v246
    %v277 = vld [vmem:[#allocation5] sm:$0xff]
    %v278 = vld [vmem:[#allocation5 + $0x8] sm:$0xff]
    %v279 = vld [vmem:[#allocation5 + $0x10] sm:$0xff]
    %v280 = vld [vmem:[#allocation5 + $0x18] sm:$0xff]
    %v281 = vld [vmem:[#allocation5 + $0x20] sm:$0xff]
    %v282 = vld [vmem:[#allocation5 + $0x28] sm:$0xff]
    %v283 = vld [vmem:[#allocation5 + $0x30] sm:$0xff]
    %v284 = vld [vmem:[#allocation5 + $0x38] sm:$0xff]
    %v285 = vld [vmem:[#allocation5 + $0x40] sm:$0xff]
    %v286 = vld [vmem:[#allocation5 + $0x48] sm:$0xff]
    %v287 = vld [vmem:[#allocation5 + $0x50] sm:$0xff]
    %v288 = vld [vmem:[#allocation5 + $0x58] sm:$0xff]
    %v289 = vld [vmem:[#allocation5 + $0x60] sm:$0xff]
    %v290 = vld [vmem:[#allocation5 + $0x68] sm:$0xff]
    %v291 = vld [vmem:[#allocation5 + $0x70] sm:$0xff]
    %v292 = vld [vmem:[#allocation5 + $0x78] sm:$0xff]
    %v293 = vld [vmem:[#allocation5 + $0x80] sm:$0xff]
    %v294 = vld [vmem:[#allocation5 + $0x88] sm:$0xff]
    %v295 = vld [vmem:[#allocation5 + $0x90] sm:$0xff]
    %v296 = vld [vmem:[#allocation5 + $0x98] sm:$0xff]
    %v297 = vld [vmem:[#allocation5 + $0xa0] sm:$0xff]
    %v298 = vld [vmem:[#allocation5 + $0xa8] sm:$0xff]
    %v299 = vld [vmem:[#allocation5 + $0xb0] sm:$0xff]
    %v300 = vld [vmem:[#allocation5 + $0xb8] sm:$0xff]
    %v301 = vld [vmem:[#allocation5 + $0xc0] sm:$0xff]
    %v302 = vld [vmem:[#allocation5 + $0xc8] sm:$0xff]
    %v303 = vld [vmem:[#allocation5 + $0xd0] sm:$0xff]
    %v304 = vld [vmem:[#allocation5 + $0xd8] sm:$0xff]
    %v305 = vld [vmem:[#allocation5 + $0xe0] sm:$0xff]
    %v306 = vld [vmem:[#allocation5 + $0xe8] sm:$0xff]
    %v307 = vld [vmem:[#allocation5 + $0xf0] sm:$0xff]
    %v308 = vld [vmem:[#allocation5 + $0xf8] sm:$0xff]
    %v309 = vld [vmem:[#allocation5 + $0x100] sm:$0xff]
    %v310 = vld [vmem:[#allocation5 + $0x108] sm:$0xff]
    %v311 = vld [vmem:[#allocation5 + $0x110] sm:$0xff]
    %v312 = vld [vmem:[#allocation5 + $0x118] sm:$0xff]
    %v313 = vld [vmem:[#allocation5 + $0x120] sm:$0xff]
    %v314 = vld [vmem:[#allocation5 + $0x128] sm:$0xff]
    %v315 = vld [vmem:[#allocation5 + $0x130] sm:$0xff]
    %v316 = vld [vmem:[#allocation5 + $0x138] sm:$0xff]
    %v317 = vld [vmem:[#allocation5 + $0x140] sm:$0xff]
    %v318 = vld [vmem:[#allocation5 + $0x148] sm:$0xff]
    %v319 = vld [vmem:[#allocation5 + $0x150] sm:$0xff]
    %v320 = vld [vmem:[#allocation5 + $0x158] sm:$0xff]
    %v321 = vld [vmem:[#allocation5 + $0x160] sm:$0xff]
    %v322 = vld [vmem:[#allocation5 + $0x168] sm:$0xff]
    %v323 = vld [vmem:[#allocation5 + $0x170] sm:$0xff]
    %v324 = vld [vmem:[#allocation5 + $0x178] sm:$0xff]
    %v325 = vpack.c.bf16 %v283, %v277
    %v326 = vpack.c.bf16 %v284, %v278
    %v327 = vpack.c.bf16 %v285, %v279
    %v328 = vpack.c.bf16 %v286, %v280
    %v329 = vpack.c.bf16 %v287, %v281
    %v330 = vpack.c.bf16 %v288, %v282
    %v331 = vpack.c.bf16 %v295, %v289
    %v332 = vpack.c.bf16 %v296, %v290
    %v333 = vpack.c.bf16 %v297, %v291
    %v334 = vpack.c.bf16 %v298, %v292
    %v335 = vpack.c.bf16 %v299, %v293
    %v336 = vpack.c.bf16 %v300, %v294
    %v337 = vpack.c.bf16 %v307, %v301
    %v338 = vpack.c.bf16 %v308, %v302
    %v339 = vpack.c.bf16 %v309, %v303
    %v340 = vpack.c.bf16 %v310, %v304
    %v341 = vpack.c.bf16 %v311, %v305
    %v342 = vpack.c.bf16 %v312, %v306
    %v343 = vpack.c.bf16 %v319, %v313
    %v344 = vpack.c.bf16 %v320, %v314
    %v345 = vpack.c.bf16 %v321, %v315
    %v346 = vpack.c.bf16 %v322, %v316
    %v347 = vpack.c.bf16 %v323, %v317
    %v348 = vpack.c.bf16 %v324, %v318
    %v349 = vld [vmem:[#allocation7] sm:$0xff]
    %v350 = vld [vmem:[#allocation7 + $0x8] sm:$0xff]
    %v351 = vld [vmem:[#allocation7 + $0x10] sm:$0xff]
    %v352 = vld [vmem:[#allocation7 + $0x18] sm:$0xff]
    %v353 = vld [vmem:[#allocation7 + $0x20] sm:$0xff]
    %v354 = vld [vmem:[#allocation7 + $0x28] sm:$0xff]
    %v355 = vld [vmem:[#allocation7 + $0x30] sm:$0xff]
    %v356 = vld [vmem:[#allocation7 + $0x38] sm:$0xff]
    %v357 = vld [vmem:[#allocation7 + $0x40] sm:$0xff]
    %v358 = vld [vmem:[#allocation7 + $0x48] sm:$0xff]
    %v359 = vld [vmem:[#allocation7 + $0x50] sm:$0xff]
    %v360 = vld [vmem:[#allocation7 + $0x58] sm:$0xff]
    %v361 = vld [vmem:[#allocation7 + $0x60] sm:$0xff]
    %v362 = vld [vmem:[#allocation7 + $0x68] sm:$0xff]
    %v363 = vld [vmem:[#allocation7 + $0x70] sm:$0xff]
    %v364 = vld [vmem:[#allocation7 + $0x78] sm:$0xff]
    %v365 = vld [vmem:[#allocation7 + $0x80] sm:$0xff]
    %v366 = vld [vmem:[#allocation7 + $0x88] sm:$0xff]
    %v367 = vld [vmem:[#allocation7 + $0x90] sm:$0xff]
    %v368 = vld [vmem:[#allocation7 + $0x98] sm:$0xff]
    %v369 = vld [vmem:[#allocation7 + $0xa0] sm:$0xff]
    %v370 = vld [vmem:[#allocation7 + $0xa8] sm:$0xff]
    %v371 = vld [vmem:[#allocation7 + $0xb0] sm:$0xff]
    %v372 = vld [vmem:[#allocation7 + $0xb8] sm:$0xff]
    %v373 = vld [vmem:[#allocation7 + $0xc0] sm:$0xff]
    %v374 = vld [vmem:[#allocation7 + $0xc8] sm:$0xff]
    %v375 = vld [vmem:[#allocation7 + $0xd0] sm:$0xff]
    %v376 = vld [vmem:[#allocation7 + $0xd8] sm:$0xff]
    %v377 = vld [vmem:[#allocation7 + $0xe0] sm:$0xff]
    %v378 = vld [vmem:[#allocation7 + $0xe8] sm:$0xff]
    %v379 = vld [vmem:[#allocation7 + $0xf0] sm:$0xff]
    %v380 = vld [vmem:[#allocation7 + $0xf8] sm:$0xff]
    %v381 = vld [vmem:[#allocation7 + $0x100] sm:$0xff]
    %v382 = vld [vmem:[#allocation7 + $0x108] sm:$0xff]
    %v383 = vld [vmem:[#allocation7 + $0x110] sm:$0xff]
    %v384 = vld [vmem:[#allocation7 + $0x118] sm:$0xff]
    %v385 = vld [vmem:[#allocation7 + $0x120] sm:$0xff]
    %v386 = vld [vmem:[#allocation7 + $0x128] sm:$0xff]
    %v387 = vld [vmem:[#allocation7 + $0x130] sm:$0xff]
    %v388 = vld [vmem:[#allocation7 + $0x138] sm:$0xff]
    %v389 = vld [vmem:[#allocation7 + $0x140] sm:$0xff]
    %v390 = vld [vmem:[#allocation7 + $0x148] sm:$0xff]
    %v391 = vld [vmem:[#allocation7 + $0x150] sm:$0xff]
    %v392 = vld [vmem:[#allocation7 + $0x158] sm:$0xff]
    %v393 = vld [vmem:[#allocation7 + $0x160] sm:$0xff]
    %v394 = vld [vmem:[#allocation7 + $0x168] sm:$0xff]
    %v395 = vld [vmem:[#allocation7 + $0x170] sm:$0xff]
    %v396 = vld [vmem:[#allocation7 + $0x178] sm:$0xff]
    %v397 = vpack.c.bf16 %v355, %v349
    %v398 = vpack.c.bf16 %v356, %v350
    %v399 = vpack.c.bf16 %v357, %v351
    %v400 = vpack.c.bf16 %v358, %v352
    %v401 = vpack.c.bf16 %v359, %v353
    %v402 = vpack.c.bf16 %v360, %v354
    %v403 = vpack.c.bf16 %v367, %v361
    %v404 = vpack.c.bf16 %v368, %v362
    %v405 = vpack.c.bf16 %v369, %v363
    %v406 = vpack.c.bf16 %v370, %v364
    %v407 = vpack.c.bf16 %v371, %v365
    %v408 = vpack.c.bf16 %v372, %v366
    %v409 = vpack.c.bf16 %v379, %v373
    %v410 = vpack.c.bf16 %v380, %v374
    %v411 = vpack.c.bf16 %v381, %v375
    %v412 = vpack.c.bf16 %v382, %v376
    %v413 = vpack.c.bf16 %v383, %v377
    %v414 = vpack.c.bf16 %v384, %v378
    %v415 = vpack.c.bf16 %v391, %v385
    %v416 = vpack.c.bf16 %v392, %v386
    %v417 = vpack.c.bf16 %v393, %v387
    %v418 = vpack.c.bf16 %v394, %v388
    %v419 = vpack.c.bf16 %v395, %v389
    %v420 = vpack.c.bf16 %v396, %v390
    %v421 = vld [vmem:[#allocation8] sm:$0xff]
    %v422 = vld [vmem:[#allocation8 + $0x8] sm:$0xff]
    %v423 = vld [vmem:[#allocation8 + $0x10] sm:$0xff]
    %v424 = vld [vmem:[#allocation8 + $0x18] sm:$0xff]
    %v425 = vld [vmem:[#allocation8 + $0x20] sm:$0xff]
    %v426 = vld [vmem:[#allocation8 + $0x28] sm:$0xff]
    %v427 = vld [vmem:[#allocation8 + $0x30] sm:$0xff]
    %v428 = vld [vmem:[#allocation8 + $0x38] sm:$0xff]
    %v429 = vld [vmem:[#allocation8 + $0x40] sm:$0xff]
    %v430 = vld [vmem:[#allocation8 + $0x48] sm:$0xff]
    %v431 = vld [vmem:[#allocation8 + $0x50] sm:$0xff]
    %v432 = vld [vmem:[#allocation8 + $0x58] sm:$0xff]
    %v433 = vld [vmem:[#allocation8 + $0x60] sm:$0xff]
    %v434 = vld [vmem:[#allocation8 + $0x68] sm:$0xff]
    %v435 = vld [vmem:[#allocation8 + $0x70] sm:$0xff]
    %v436 = vld [vmem:[#allocation8 + $0x78] sm:$0xff]
    %v437 = vld [vmem:[#allocation8 + $0x80] sm:$0xff]
    %v438 = vld [vmem:[#allocation8 + $0x88] sm:$0xff]
    %v439 = vld [vmem:[#allocation8 + $0x90] sm:$0xff]
    %v440 = vld [vmem:[#allocation8 + $0x98] sm:$0xff]
    %v441 = vld [vmem:[#allocation8 + $0xa0] sm:$0xff]
    %v442 = vld [vmem:[#allocation8 + $0xa8] sm:$0xff]
    %v443 = vld [vmem:[#allocation8 + $0xb0] sm:$0xff]
    %v444 = vld [vmem:[#allocation8 + $0xb8] sm:$0xff]
    %v445 = vld [vmem:[#allocation8 + $0xc0] sm:$0xff]
    %v446 = vld [vmem:[#allocation8 + $0xc8] sm:$0xff]
    %v447 = vld [vmem:[#allocation8 + $0xd0] sm:$0xff]
    %v448 = vld [vmem:[#allocation8 + $0xd8] sm:$0xff]
    %v449 = vld [vmem:[#allocation8 + $0xe0] sm:$0xff]
    %v450 = vld [vmem:[#allocation8 + $0xe8] sm:$0xff]
    %v451 = vld [vmem:[#allocation8 + $0xf0] sm:$0xff]
    %v452 = vld [vmem:[#allocation8 + $0xf8] sm:$0xff]
    %v453 = vld [vmem:[#allocation8 + $0x100] sm:$0xff]
    %v454 = vld [vmem:[#allocation8 + $0x108] sm:$0xff]
    %v455 = vld [vmem:[#allocation8 + $0x110] sm:$0xff]
    %v456 = vld [vmem:[#allocation8 + $0x118] sm:$0xff]
    %v457 = vld [vmem:[#allocation8 + $0x120] sm:$0xff]
    %v458 = vld [vmem:[#allocation8 + $0x128] sm:$0xff]
    %v459 = vld [vmem:[#allocation8 + $0x130] sm:$0xff]
    %v460 = vld [vmem:[#allocation8 + $0x138] sm:$0xff]
    %v461 = vld [vmem:[#allocation8 + $0x140] sm:$0xff]
    %v462 = vld [vmem:[#allocation8 + $0x148] sm:$0xff]
    %v463 = vld [vmem:[#allocation8 + $0x150] sm:$0xff]
    %v464 = vld [vmem:[#allocation8 + $0x158] sm:$0xff]
    %v465 = vld [vmem:[#allocation8 + $0x160] sm:$0xff]
    %v466 = vld [vmem:[#allocation8 + $0x168] sm:$0xff]
    %v467 = vld [vmem:[#allocation8 + $0x170] sm:$0xff]
    %v468 = vld [vmem:[#allocation8 + $0x178] sm:$0xff]
    %v469 = vld [vmem:[#allocation8 + $0x180] sm:$0xff]
    %v470 = vld [vmem:[#allocation8 + $0x188] sm:$0xff]
    %v471 = vld [vmem:[#allocation8 + $0x190] sm:$0xff]
    %v472 = vld [vmem:[#allocation8 + $0x198] sm:$0xff]
    %v473 = vld [vmem:[#allocation8 + $0x1a0] sm:$0xff]
    %v474 = vld [vmem:[#allocation8 + $0x1a8] sm:$0xff]
    %v475 = vld [vmem:[#allocation8 + $0x1b0] sm:$0xff]
    %v476 = vld [vmem:[#allocation8 + $0x1b8] sm:$0xff]
    %v477 = vld [vmem:[#allocation8 + $0x1c0] sm:$0xff]
    %v478 = vld [vmem:[#allocation8 + $0x1c8] sm:$0xff]
    %v479 = vld [vmem:[#allocation8 + $0x1d0] sm:$0xff]
    %v480 = vld [vmem:[#allocation8 + $0x1d8] sm:$0xff]
    %v481 = vld [vmem:[#allocation8 + $0x1e0] sm:$0xff]
    %v482 = vld [vmem:[#allocation8 + $0x1e8] sm:$0xff]
    %v483 = vld [vmem:[#allocation8 + $0x1f0] sm:$0xff]
    %v484 = vld [vmem:[#allocation8 + $0x1f8] sm:$0xff]
    %v485 = vld [vmem:[#allocation8 + $0x200] sm:$0xff]
    %v486 = vld [vmem:[#allocation8 + $0x208] sm:$0xff]
    %v487 = vld [vmem:[#allocation8 + $0x210] sm:$0xff]
    %v488 = vld [vmem:[#allocation8 + $0x218] sm:$0xff]
    %v489 = vld [vmem:[#allocation8 + $0x220] sm:$0xff]
    %v490 = vld [vmem:[#allocation8 + $0x228] sm:$0xff]
    %v491 = vld [vmem:[#allocation8 + $0x230] sm:$0xff]
    %v492 = vld [vmem:[#allocation8 + $0x238] sm:$0xff]
    %v493 = vld [vmem:[#allocation8 + $0x240] sm:$0xff]
    %v494 = vld [vmem:[#allocation8 + $0x248] sm:$0xff]
    %v495 = vld [vmem:[#allocation8 + $0x250] sm:$0xff]
    %v496 = vld [vmem:[#allocation8 + $0x258] sm:$0xff]
    %v497 = vld [vmem:[#allocation8 + $0x260] sm:$0xff]
    %v498 = vld [vmem:[#allocation8 + $0x268] sm:$0xff]
    %v499 = vld [vmem:[#allocation8 + $0x270] sm:$0xff]
    %v500 = vld [vmem:[#allocation8 + $0x278] sm:$0xff]
    %v501 = vld [vmem:[#allocation8 + $0x280] sm:$0xff]
    %v502 = vld [vmem:[#allocation8 + $0x288] sm:$0xff]
    %v503 = vld [vmem:[#allocation8 + $0x290] sm:$0xff]
    %v504 = vld [vmem:[#allocation8 + $0x298] sm:$0xff]
    %v505 = vld [vmem:[#allocation8 + $0x2a0] sm:$0xff]
    %v506 = vld [vmem:[#allocation8 + $0x2a8] sm:$0xff]
    %v507 = vld [vmem:[#allocation8 + $0x2b0] sm:$0xff]
    %v508 = vld [vmem:[#allocation8 + $0x2b8] sm:$0xff]
    %v509 = vld [vmem:[#allocation8 + $0x2c0] sm:$0xff]
    %v510 = vld [vmem:[#allocation8 + $0x2c8] sm:$0xff]
    %v511 = vld [vmem:[#allocation8 + $0x2d0] sm:$0xff]
    %v512 = vld [vmem:[#allocation8 + $0x2d8] sm:$0xff]
    %v513 = vld [vmem:[#allocation8 + $0x2e0] sm:$0xff]
    %v514 = vld [vmem:[#allocation8 + $0x2e8] sm:$0xff]
    %v515 = vld [vmem:[#allocation8 + $0x2f0] sm:$0xff]
    %v516 = vld [vmem:[#allocation8 + $0x2f8] sm:$0xff]
    %v517 = vld [vmem:[#allocation10] sm:$0x3]
    %v519 = vperm.slane %v517, 0
    %v520 = vperm.slane %v517, 1
    %v619 = vunpack.c.l.b16 %v421
    %v620 = vunpack.c.h.b16 %v421
    %v621 = vunpack.c.l.b16 %v422
    %v622 = vunpack.c.h.b16 %v422
    %v623 = vunpack.c.l.b16 %v423
    %v624 = vunpack.c.h.b16 %v423
    %v625 = vunpack.c.l.b16 %v424
    %v626 = vunpack.c.h.b16 %v424
    %v627 = vunpack.c.l.b16 %v425
    %v628 = vunpack.c.h.b16 %v425
    %v629 = vunpack.c.l.b16 %v426
    %v630 = vunpack.c.h.b16 %v426
    %v631 = vunpack.c.l.b16 %v427
    %v632 = vunpack.c.h.b16 %v427
    %v633 = vunpack.c.l.b16 %v428
    %v634 = vunpack.c.h.b16 %v428
    %v635 = vunpack.c.l.b16 %v429
    %v636 = vunpack.c.h.b16 %v429
    %v637 = vunpack.c.l.b16 %v430
    %v638 = vunpack.c.h.b16 %v430
    %v639 = vunpack.c.l.b16 %v431
    %v640 = vunpack.c.h.b16 %v431
    %v641 = vunpack.c.l.b16 %v432
    %v642 = vunpack.c.h.b16 %v432
    %v643 = vunpack.c.l.b16 %v433
    %v644 = vunpack.c.h.b16 %v433
    %v645 = vunpack.c.l.b16 %v434
    %v646 = vunpack.c.h.b16 %v434
    %v647 = vunpack.c.l.b16 %v435
    %v648 = vunpack.c.h.b16 %v435
    %v649 = vunpack.c.l.b16 %v436
    %v650 = vunpack.c.h.b16 %v436
    %v651 = vunpack.c.l.b16 %v437
    %v652 = vunpack.c.h.b16 %v437
    %v653 = vunpack.c.l.b16 %v438
    %v654 = vunpack.c.h.b16 %v438
    %v655 = vunpack.c.l.b16 %v439
    %v656 = vunpack.c.h.b16 %v439
    %v657 = vunpack.c.l.b16 %v440
    %v658 = vunpack.c.h.b16 %v440
    %v659 = vunpack.c.l.b16 %v441
    %v660 = vunpack.c.h.b16 %v441
    %v661 = vunpack.c.l.b16 %v442
    %v662 = vunpack.c.h.b16 %v442
    %v663 = vunpack.c.l.b16 %v443
    %v664 = vunpack.c.h.b16 %v443
    %v665 = vunpack.c.l.b16 %v444
    %v666 = vunpack.c.h.b16 %v444
    %v667 = vunpack.c.l.b16 %v445
    %v668 = vunpack.c.h.b16 %v445
    %v669 = vunpack.c.l.b16 %v446
    %v670 = vunpack.c.h.b16 %v446
    %v671 = vunpack.c.l.b16 %v447
    %v672 = vunpack.c.h.b16 %v447
    %v673 = vunpack.c.l.b16 %v448
    %v674 = vunpack.c.h.b16 %v448
    %v675 = vunpack.c.l.b16 %v449
    %v676 = vunpack.c.h.b16 %v449
    %v677 = vunpack.c.l.b16 %v450
    %v678 = vunpack.c.h.b16 %v450
    %v679 = vunpack.c.l.b16 %v451
    %v680 = vunpack.c.h.b16 %v451
    %v681 = vunpack.c.l.b16 %v452
    %v682 = vunpack.c.h.b16 %v452
    %v683 = vunpack.c.l.b16 %v453
    %v684 = vunpack.c.h.b16 %v453
    %v685 = vunpack.c.l.b16 %v454
    %v686 = vunpack.c.h.b16 %v454
    %v687 = vunpack.c.l.b16 %v455
    %v688 = vunpack.c.h.b16 %v455
    %v689 = vunpack.c.l.b16 %v456
    %v690 = vunpack.c.h.b16 %v456
    %v691 = vunpack.c.l.b16 %v457
    %v692 = vunpack.c.h.b16 %v457
    %v693 = vunpack.c.l.b16 %v458
    %v694 = vunpack.c.h.b16 %v458
    %v695 = vunpack.c.l.b16 %v459
    %v696 = vunpack.c.h.b16 %v459
    %v697 = vunpack.c.l.b16 %v460
    %v698 = vunpack.c.h.b16 %v460
    %v699 = vunpack.c.l.b16 %v461
    %v700 = vunpack.c.h.b16 %v461
    %v701 = vunpack.c.l.b16 %v462
    %v702 = vunpack.c.h.b16 %v462
    %v703 = vunpack.c.l.b16 %v463
    %v704 = vunpack.c.h.b16 %v463
    %v705 = vunpack.c.l.b16 %v464
    %v706 = vunpack.c.h.b16 %v464
    %v707 = vunpack.c.l.b16 %v465
    %v708 = vunpack.c.h.b16 %v465
    %v709 = vunpack.c.l.b16 %v466
    %v710 = vunpack.c.h.b16 %v466
    %v711 = vunpack.c.l.b16 %v467
    %v712 = vunpack.c.h.b16 %v467
    %v713 = vunpack.c.l.b16 %v468
    %v714 = vunpack.c.h.b16 %v468
    %v715 = vunpack.c.l.b16 %v469
    %v716 = vunpack.c.h.b16 %v469
    %v717 = vunpack.c.l.b16 %v470
    %v718 = vunpack.c.h.b16 %v470
    %v719 = vunpack.c.l.b16 %v471
    %v720 = vunpack.c.h.b16 %v471
    %v721 = vunpack.c.l.b16 %v472
    %v722 = vunpack.c.h.b16 %v472
    %v723 = vunpack.c.l.b16 %v473
    %v724 = vunpack.c.h.b16 %v473
    %v725 = vunpack.c.l.b16 %v474
    %v726 = vunpack.c.h.b16 %v474
    %v727 = vunpack.c.l.b16 %v475
    %v728 = vunpack.c.h.b16 %v475
    %v729 = vunpack.c.l.b16 %v476
    %v730 = vunpack.c.h.b16 %v476
    %v731 = vunpack.c.l.b16 %v477
    %v732 = vunpack.c.h.b16 %v477
    %v733 = vunpack.c.l.b16 %v478
    %v734 = vunpack.c.h.b16 %v478
    %v735 = vunpack.c.l.b16 %v479
    %v736 = vunpack.c.h.b16 %v479
    %v737 = vunpack.c.l.b16 %v480
    %v738 = vunpack.c.h.b16 %v480
    %v739 = vunpack.c.l.b16 %v481
    %v740 = vunpack.c.h.b16 %v481
    %v741 = vunpack.c.l.b16 %v482
    %v742 = vunpack.c.h.b16 %v482
    %v743 = vunpack.c.l.b16 %v483
    %v744 = vunpack.c.h.b16 %v483
    %v745 = vunpack.c.l.b16 %v484
    %v746 = vunpack.c.h.b16 %v484
    %v747 = vunpack.c.l.b16 %v485
    %v748 = vunpack.c.h.b16 %v485
    %v749 = vunpack.c.l.b16 %v486
    %v750 = vunpack.c.h.b16 %v486
    %v751 = vunpack.c.l.b16 %v487
    %v752 = vunpack.c.h.b16 %v487
    %v753 = vunpack.c.l.b16 %v488
    %v754 = vunpack.c.h.b16 %v488
    %v755 = vunpack.c.l.b16 %v489
    %v756 = vunpack.c.h.b16 %v489
    %v757 = vunpack.c.l.b16 %v490
    %v758 = vunpack.c.h.b16 %v490
    %v759 = vunpack.c.l.b16 %v491
    %v760 = vunpack.c.h.b16 %v491
    %v761 = vunpack.c.l.b16 %v492
    %v762 = vunpack.c.h.b16 %v492
    %v763 = vunpack.c.l.b16 %v493
    %v764 = vunpack.c.h.b16 %v493
    %v765 = vunpack.c.l.b16 %v494
    %v766 = vunpack.c.h.b16 %v494
    %v767 = vunpack.c.l.b16 %v495
    %v768 = vunpack.c.h.b16 %v495
    %v769 = vunpack.c.l.b16 %v496
    %v770 = vunpack.c.h.b16 %v496
    %v771 = vunpack.c.l.b16 %v497
    %v772 = vunpack.c.h.b16 %v497
    %v773 = vunpack.c.l.b16 %v498
    %v774 = vunpack.c.h.b16 %v498
    %v775 = vunpack.c.l.b16 %v499
    %v776 = vunpack.c.h.b16 %v499
    %v777 = vunpack.c.l.b16 %v500
    %v778 = vunpack.c.h.b16 %v500
    %v779 = vunpack.c.l.b16 %v501
    %v780 = vunpack.c.h.b16 %v501
    %v781 = vunpack.c.l.b16 %v502
    %v782 = vunpack.c.h.b16 %v502
    %v783 = vunpack.c.l.b16 %v503
    %v784 = vunpack.c.h.b16 %v503
    %v785 = vunpack.c.l.b16 %v504
    %v786 = vunpack.c.h.b16 %v504
    %v787 = vunpack.c.l.b16 %v505
    %v788 = vunpack.c.h.b16 %v505
    %v789 = vunpack.c.l.b16 %v506
    %v790 = vunpack.c.h.b16 %v506
    %v791 = vunpack.c.l.b16 %v507
    %v792 = vunpack.c.h.b16 %v507
    %v793 = vunpack.c.l.b16 %v508
    %v794 = vunpack.c.h.b16 %v508
    %v795 = vunpack.c.l.b16 %v509
    %v796 = vunpack.c.h.b16 %v509
    %v797 = vunpack.c.l.b16 %v510
    %v798 = vunpack.c.h.b16 %v510
    %v799 = vunpack.c.l.b16 %v511
    %v800 = vunpack.c.h.b16 %v511
    %v801 = vunpack.c.l.b16 %v512
    %v802 = vunpack.c.h.b16 %v512
    %v803 = vunpack.c.l.b16 %v513
    %v804 = vunpack.c.h.b16 %v513
    %v805 = vunpack.c.l.b16 %v514
    %v806 = vunpack.c.h.b16 %v514
    %v807 = vunpack.c.l.b16 %v515
    %v808 = vunpack.c.h.b16 %v515
    %v809 = vunpack.c.l.b16 %v516
    %v810 = vunpack.c.h.b16 %v516
    %v811 = vpack.c.b16 %v621, %v619
    %v812 = vpack.c.b16 %v622, %v620
    %v813 = vpack.c.b16 %v625, %v623
    %v814 = vpack.c.b16 %v626, %v624
    %v815 = vpack.c.b16 %v629, %v627
    %v816 = vpack.c.b16 %v630, %v628
    %v817 = vpack.c.b16 %v633, %v631
    %v818 = vpack.c.b16 %v634, %v632
    %v819 = vpack.c.b16 %v637, %v635
    %v820 = vpack.c.b16 %v638, %v636
    %v821 = vpack.c.b16 %v641, %v639
    %v822 = vpack.c.b16 %v642, %v640
    %v823 = vpack.c.b16 %v645, %v643
    %v824 = vpack.c.b16 %v646, %v644
    %v825 = vpack.c.b16 %v649, %v647
    %v826 = vpack.c.b16 %v650, %v648
    %v827 = vpack.c.b16 %v653, %v651
    %v828 = vpack.c.b16 %v654, %v652
    %v829 = vpack.c.b16 %v657, %v655
    %v830 = vpack.c.b16 %v658, %v656
    %v831 = vpack.c.b16 %v661, %v659
    %v832 = vpack.c.b16 %v662, %v660
    %v833 = vpack.c.b16 %v665, %v663
    %v834 = vpack.c.b16 %v666, %v664
    %v835 = vpack.c.b16 %v669, %v667
    %v836 = vpack.c.b16 %v670, %v668
    %v837 = vpack.c.b16 %v673, %v671
    %v838 = vpack.c.b16 %v674, %v672
    %v839 = vpack.c.b16 %v677, %v675
    %v840 = vpack.c.b16 %v678, %v676
    %v841 = vpack.c.b16 %v681, %v679
    %v842 = vpack.c.b16 %v682, %v680
    %v843 = vpack.c.b16 %v685, %v683
    %v844 = vpack.c.b16 %v686, %v684
    %v845 = vpack.c.b16 %v689, %v687
    %v846 = vpack.c.b16 %v690, %v688
    %v847 = vpack.c.b16 %v693, %v691
    %v848 = vpack.c.b16 %v694, %v692
    %v849 = vpack.c.b16 %v697, %v695
    %v850 = vpack.c.b16 %v698, %v696
    %v851 = vpack.c.b16 %v701, %v699
    %v852 = vpack.c.b16 %v702, %v700
    %v853 = vpack.c.b16 %v705, %v703
    %v854 = vpack.c.b16 %v706, %v704
    %v855 = vpack.c.b16 %v709, %v707
    %v856 = vpack.c.b16 %v710, %v708
    %v857 = vpack.c.b16 %v713, %v711
    %v858 = vpack.c.b16 %v714, %v712
    %v859 = vpack.c.b16 %v717, %v715
    %v860 = vpack.c.b16 %v718, %v716
    %v861 = vpack.c.b16 %v721, %v719
    %v862 = vpack.c.b16 %v722, %v720
    %v863 = vpack.c.b16 %v725, %v723
    %v864 = vpack.c.b16 %v726, %v724
    %v865 = vpack.c.b16 %v729, %v727
    %v866 = vpack.c.b16 %v730, %v728
    %v867 = vpack.c.b16 %v733, %v731
    %v868 = vpack.c.b16 %v734, %v732
    %v869 = vpack.c.b16 %v737, %v735
    %v870 = vpack.c.b16 %v738, %v736
    %v871 = vpack.c.b16 %v741, %v739
    %v872 = vpack.c.b16 %v742, %v740
    %v873 = vpack.c.b16 %v745, %v743
    %v874 = vpack.c.b16 %v746, %v744
    %v875 = vpack.c.b16 %v749, %v747
    %v876 = vpack.c.b16 %v750, %v748
    %v877 = vpack.c.b16 %v753, %v751
    %v878 = vpack.c.b16 %v754, %v752
    %v879 = vpack.c.b16 %v757, %v755
    %v880 = vpack.c.b16 %v758, %v756
    %v881 = vpack.c.b16 %v761, %v759
    %v882 = vpack.c.b16 %v762, %v760
    %v883 = vpack.c.b16 %v765, %v763
    %v884 = vpack.c.b16 %v766, %v764
    %v885 = vpack.c.b16 %v769, %v767
    %v886 = vpack.c.b16 %v770, %v768
    %v887 = vpack.c.b16 %v773, %v771
    %v888 = vpack.c.b16 %v774, %v772
    %v889 = vpack.c.b16 %v777, %v775
    %v890 = vpack.c.b16 %v778, %v776
    %v891 = vpack.c.b16 %v781, %v779
    %v892 = vpack.c.b16 %v782, %v780
    %v893 = vpack.c.b16 %v785, %v783
    %v894 = vpack.c.b16 %v786, %v784
    %v895 = vpack.c.b16 %v789, %v787
    %v896 = vpack.c.b16 %v790, %v788
    %v897 = vpack.c.b16 %v793, %v791
    %v898 = vpack.c.b16 %v794, %v792
    %v899 = vpack.c.b16 %v797, %v795
    %v900 = vpack.c.b16 %v798, %v796
    %v901 = vpack.c.b16 %v801, %v799
    %v902 = vpack.c.b16 %v802, %v800
    %v903 = vpack.c.b16 %v805, %v803
    %v904 = vpack.c.b16 %v806, %v804
    %v905 = vpack.c.b16 %v809, %v807
    %v906 = vpack.c.b16 %v810, %v808
    %1003 = vmatpush.bf16.msra.mxu0 %v825
    %1004 = vmatpush.bf16.msra.mxu0 %v823
    %1005 = vmatpush.bf16.msra.mxu0 %v821
    %1006 = vmatpush.bf16.msra.mxu0 %v819
    %1007 = vmatpush.bf16.msra.mxu0 %v817
    %1008 = vmatpush.bf16.msra.mxu0 %v815
    %1009 = vmatpush.bf16.msra.mxu0 %v813
    %1010 = vmatpush.bf16.msra.mxu0 %v811
    %1011 = vmatmul.bf16.gmra.mxu0 %v253
    %v1012 = vpop.f32.mrf.mxu0
    %v1013 = vadd.f32 %v519, %v1012
    %v1014 = vpop.f32.mrf.mxu0
    %v1015 = vadd.f32 %v519, %v1014
    %1016 = vmatmul.bf16.gmra.mxu0 %v259
    %v1017 = vpop.f32.mrf.mxu0
    %v1018 = vadd.f32 %v519, %v1017
    %v1019 = vpop.f32.mrf.mxu0
    %v1020 = vadd.f32 %v519, %v1019
    %1021 = vmatmul.bf16.gmra.mxu0 %v265
    %v1022 = vpop.f32.mrf.mxu0
    %v1023 = vadd.f32 %v519, %v1022
    %v1024 = vpop.f32.mrf.mxu0
    %v1025 = vadd.f32 %v519, %v1024
    %1026 = vmatmul.bf16.gmra.mxu0 %v271
    %v1027 = vpop.f32.mrf.mxu0
    %v1028 = vadd.f32 %v519, %v1027
    %v1029 = vpop.f32.mrf.mxu0
    %v1030 = vadd.f32 %v519, %v1029
    %1031 = vdwg.mxu0
    %1032 = vmatpush.bf16.msra.mxu0 %v841
    %1033 = vmatpush.bf16.msra.mxu0 %v839
    %1034 = vmatpush.bf16.msra.mxu0 %v837
    %1035 = vmatpush.bf16.msra.mxu0 %v835
    %1036 = vmatpush.bf16.msra.mxu0 %v833
    %1037 = vmatpush.bf16.msra.mxu0 %v831
    %1038 = vmatpush.bf16.msra.mxu0 %v829
    %1039 = vmatpush.bf16.msra.mxu0 %v827
    %1040 = vmatmul.bf16.gmra.mxu0 %v254
    %v1041 = vpop.f32.mrf.mxu0
    %v1042 = vadd.f32 %v1013, %v1041
    %v1043 = vpop.f32.mrf.mxu0
    %v1044 = vadd.f32 %v1015, %v1043
    %1045 = vmatmul.bf16.gmra.mxu0 %v260
    %v1046 = vpop.f32.mrf.mxu0
    %v1047 = vadd.f32 %v1018, %v1046
    %v1048 = vpop.f32.mrf.mxu0
    %v1049 = vadd.f32 %v1020, %v1048
    %1050 = vmatmul.bf16.gmra.mxu0 %v266
    %v1051 = vpop.f32.mrf.mxu0
    %v1052 = vadd.f32 %v1023, %v1051
    %v1053 = vpop.f32.mrf.mxu0
    %v1054 = vadd.f32 %v1025, %v1053
    %1055 = vmatmul.bf16.gmra.mxu0 %v272
    %v1056 = vpop.f32.mrf.mxu0
    %v1057 = vadd.f32 %v1028, %v1056
    %v1058 = vpop.f32.mrf.mxu0
    %v1059 = vadd.f32 %v1030, %v1058
    %1060 = vdwg.mxu0
    %1061 = vmatpush.bf16.msra.mxu0 %v857
    %1062 = vmatpush.bf16.msra.mxu0 %v855
    %1063 = vmatpush.bf16.msra.mxu0 %v853
    %1064 = vmatpush.bf16.msra.mxu0 %v851
    %1065 = vmatpush.bf16.msra.mxu0 %v849
    %1066 = vmatpush.bf16.msra.mxu0 %v847
    %1067 = vmatpush.bf16.msra.mxu0 %v845
    %1068 = vmatpush.bf16.msra.mxu0 %v843
    %1069 = vmatmul.bf16.gmra.mxu0 %v255
    %v1070 = vpop.f32.mrf.mxu0
    %v1071 = vadd.f32 %v1042, %v1070
    %v1072 = vpop.f32.mrf.mxu0
    %v1073 = vadd.f32 %v1044, %v1072
    %1074 = vmatmul.bf16.gmra.mxu0 %v261
    %v1075 = vpop.f32.mrf.mxu0
    %v1076 = vadd.f32 %v1047, %v1075
    %v1077 = vpop.f32.mrf.mxu0
    %v1078 = vadd.f32 %v1049, %v1077
    %1079 = vmatmul.bf16.gmra.mxu0 %v267
    %v1080 = vpop.f32.mrf.mxu0
    %v1081 = vadd.f32 %v1052, %v1080
    %v1082 = vpop.f32.mrf.mxu0
    %v1083 = vadd.f32 %v1054, %v1082
    %1084 = vmatmul.bf16.gmra.mxu0 %v273
    %v1085 = vpop.f32.mrf.mxu0
    %v1086 = vadd.f32 %v1057, %v1085
    %v1087 = vpop.f32.mrf.mxu0
    %v1088 = vadd.f32 %v1059, %v1087
    %1089 = vdwg.mxu0
    %1090 = vmatpush.bf16.msra.mxu0 %v873
    %1091 = vmatpush.bf16.msra.mxu0 %v871
    %1092 = vmatpush.bf16.msra.mxu0 %v869
    %1093 = vmatpush.bf16.msra.mxu0 %v867
    %1094 = vmatpush.bf16.msra.mxu0 %v865
    %1095 = vmatpush.bf16.msra.mxu0 %v863
    %1096 = vmatpush.bf16.msra.mxu0 %v861
    %1097 = vmatpush.bf16.msra.mxu0 %v859
    %1098 = vmatmul.bf16.gmra.mxu0 %v256
    %v1099 = vpop.f32.mrf.mxu0
    %v1100 = vadd.f32 %v1071, %v1099
    %v1101 = vpop.f32.mrf.mxu0
    %v1102 = vadd.f32 %v1073, %v1101
    %1103 = vmatmul.bf16.gmra.mxu0 %v262
    %v1104 = vpop.f32.mrf.mxu0
    %v1105 = vadd.f32 %v1076, %v1104
    %v1106 = vpop.f32.mrf.mxu0
    %v1107 = vadd.f32 %v1078, %v1106
    %1108 = vmatmul.bf16.gmra.mxu0 %v268
    %v1109 = vpop.f32.mrf.mxu0
    %v1110 = vadd.f32 %v1081, %v1109
    %v1111 = vpop.f32.mrf.mxu0
    %v1112 = vadd.f32 %v1083, %v1111
    %1113 = vmatmul.bf16.gmra.mxu0 %v274
    %v1114 = vpop.f32.mrf.mxu0
    %v1115 = vadd.f32 %v1086, %v1114
    %v1116 = vpop.f32.mrf.mxu0
    %v1117 = vadd.f32 %v1088, %v1116
    %1118 = vdwg.mxu0
    %1119 = vmatpush.bf16.msra.mxu0 %v889
    %1120 = vmatpush.bf16.msra.mxu0 %v887
    %1121 = vmatpush.bf16.msra.mxu0 %v885
    %1122 = vmatpush.bf16.msra.mxu0 %v883
    %1123 = vmatpush.bf16.msra.mxu0 %v881
    %1124 = vmatpush.bf16.msra.mxu0 %v879
    %1125 = vmatpush.bf16.msra.mxu0 %v877
    %1126 = vmatpush.bf16.msra.mxu0 %v875
    %1127 = vmatmul.bf16.gmra.mxu0 %v257
    %v1128 = vpop.f32.mrf.mxu0
    %v1129 = vadd.f32 %v1100, %v1128
    %v1130 = vpop.f32.mrf.mxu0
    %v1131 = vadd.f32 %v1102, %v1130
    %1132 = vmatmul.bf16.gmra.mxu0 %v263
    %v1133 = vpop.f32.mrf.mxu0
    %v1134 = vadd.f32 %v1105, %v1133
    %v1135 = vpop.f32.mrf.mxu0
    %v1136 = vadd.f32 %v1107, %v1135
    %1137 = vmatmul.bf16.gmra.mxu0 %v269
    %v1138 = vpop.f32.mrf.mxu0
    %v1139 = vadd.f32 %v1110, %v1138
    %v1140 = vpop.f32.mrf.mxu0
    %v1141 = vadd.f32 %v1112, %v1140
    %1142 = vmatmul.bf16.gmra.mxu0 %v275
    %v1143 = vpop.f32.mrf.mxu0
    %v1144 = vadd.f32 %v1115, %v1143
    %v1145 = vpop.f32.mrf.mxu0
    %v1146 = vadd.f32 %v1117, %v1145
    %1147 = vdwg.mxu0
    %1148 = vmatpush.bf16.msra.mxu0 %v905
    %1149 = vmatpush.bf16.msra.mxu0 %v903
    %1150 = vmatpush.bf16.msra.mxu0 %v901
    %1151 = vmatpush.bf16.msra.mxu0 %v899
    %1152 = vmatpush.bf16.msra.mxu0 %v897
    %1153 = vmatpush.bf16.msra.mxu0 %v895
    %1154 = vmatpush.bf16.msra.mxu0 %v893
    %1155 = vmatpush.bf16.msra.mxu0 %v891
    %1156 = vmatmul.bf16.gmra.mxu0 %v258
    %v1157 = vpop.f32.mrf.mxu0
    %v1158 = vadd.f32 %v1129, %v1157
    %v1159 = vpop.f32.mrf.mxu0
    %v1160 = vadd.f32 %v1131, %v1159
    %1161 = vmatmul.bf16.gmra.mxu0 %v264
    %v1162 = vpop.f32.mrf.mxu0
    %v1163 = vadd.f32 %v1134, %v1162
    %v1164 = vpop.f32.mrf.mxu0
    %v1165 = vadd.f32 %v1136, %v1164
    %1166 = vmatmul.bf16.gmra.mxu0 %v270
    %v1167 = vpop.f32.mrf.mxu0
    %v1168 = vadd.f32 %v1139, %v1167
    %v1169 = vpop.f32.mrf.mxu0
    %v1170 = vadd.f32 %v1141, %v1169
    %1171 = vmatmul.bf16.gmra.mxu0 %v276
    %v1172 = vpop.f32.mrf.mxu0
    %v1173 = vadd.f32 %v1144, %v1172
    %v1174 = vpop.f32.mrf.mxu0
    %v1175 = vadd.f32 %v1146, %v1174
    %1176 = vdwg.mxu0
    %1177 = vmatpush.bf16.msra.mxu0 %v826
    %1178 = vmatpush.bf16.msra.mxu0 %v824
    %1179 = vmatpush.bf16.msra.mxu0 %v822
    %1180 = vmatpush.bf16.msra.mxu0 %v820
    %1181 = vmatpush.bf16.msra.mxu0 %v818
    %1182 = vmatpush.bf16.msra.mxu0 %v816
    %1183 = vmatpush.bf16.msra.mxu0 %v814
    %1184 = vmatpush.bf16.msra.mxu0 %v812
    %1185 = vmatmul.bf16.gmra.mxu0 %v253
    %v1186 = vpop.f32.mrf.mxu0
    %v1187 = vadd.f32 %v520, %v1186
    %v1188 = vpop.f32.mrf.mxu0
    %v1189 = vadd.f32 %v520, %v1188
    %1190 = vmatmul.bf16.gmra.mxu0 %v259
    %v1191 = vpop.f32.mrf.mxu0
    %v1192 = vadd.f32 %v520, %v1191
    %v1193 = vpop.f32.mrf.mxu0
    %v1194 = vadd.f32 %v520, %v1193
    %1195 = vmatmul.bf16.gmra.mxu0 %v265
    %v1196 = vpop.f32.mrf.mxu0
    %v1197 = vadd.f32 %v520, %v1196
    %v1198 = vpop.f32.mrf.mxu0
    %v1199 = vadd.f32 %v520, %v1198
    %1200 = vmatmul.bf16.gmra.mxu0 %v271
    %v1201 = vpop.f32.mrf.mxu0
    %v1202 = vadd.f32 %v520, %v1201
    %v1203 = vpop.f32.mrf.mxu0
    %v1204 = vadd.f32 %v520, %v1203
    %1205 = vdwg.mxu0
    %1206 = vmatpush.bf16.msra.mxu0 %v842
    %1207 = vmatpush.bf16.msra.mxu0 %v840
    %1208 = vmatpush.bf16.msra.mxu0 %v838
    %1209 = vmatpush.bf16.msra.mxu0 %v836
    %1210 = vmatpush.bf16.msra.mxu0 %v834
    %1211 = vmatpush.bf16.msra.mxu0 %v832
    %1212 = vmatpush.bf16.msra.mxu0 %v830
    %1213 = vmatpush.bf16.msra.mxu0 %v828
    %1214 = vmatmul.bf16.gmra.mxu0 %v254
    %v1215 = vpop.f32.mrf.mxu0
    %v1216 = vadd.f32 %v1187, %v1215
    %v1217 = vpop.f32.mrf.mxu0
    %v1218 = vadd.f32 %v1189, %v1217
    %1219 = vmatmul.bf16.gmra.mxu0 %v260
    %v1220 = vpop.f32.mrf.mxu0
    %v1221 = vadd.f32 %v1192, %v1220
    %v1222 = vpop.f32.mrf.mxu0
    %v1223 = vadd.f32 %v1194, %v1222
    %1224 = vmatmul.bf16.gmra.mxu0 %v266
    %v1225 = vpop.f32.mrf.mxu0
    %v1226 = vadd.f32 %v1197, %v1225
    %v1227 = vpop.f32.mrf.mxu0
    %v1228 = vadd.f32 %v1199, %v1227
    %1229 = vmatmul.bf16.gmra.mxu0 %v272
    %v1230 = vpop.f32.mrf.mxu0
    %v1231 = vadd.f32 %v1202, %v1230
    %v1232 = vpop.f32.mrf.mxu0
    %v1233 = vadd.f32 %v1204, %v1232
    %1234 = vdwg.mxu0
    %1235 = vmatpush.bf16.msra.mxu0 %v858
    %1236 = vmatpush.bf16.msra.mxu0 %v856
    %1237 = vmatpush.bf16.msra.mxu0 %v854
    %1238 = vmatpush.bf16.msra.mxu0 %v852
    %1239 = vmatpush.bf16.msra.mxu0 %v850
    %1240 = vmatpush.bf16.msra.mxu0 %v848
    %1241 = vmatpush.bf16.msra.mxu0 %v846
    %1242 = vmatpush.bf16.msra.mxu0 %v844
    %1243 = vmatmul.bf16.gmra.mxu0 %v255
    %v1244 = vpop.f32.mrf.mxu0
    %v1245 = vadd.f32 %v1216, %v1244
    %v1246 = vpop.f32.mrf.mxu0
    %v1247 = vadd.f32 %v1218, %v1246
    %1248 = vmatmul.bf16.gmra.mxu0 %v261
    %v1249 = vpop.f32.mrf.mxu0
    %v1250 = vadd.f32 %v1221, %v1249
    %v1251 = vpop.f32.mrf.mxu0
    %v1252 = vadd.f32 %v1223, %v1251
    %1253 = vmatmul.bf16.gmra.mxu0 %v267
    %v1254 = vpop.f32.mrf.mxu0
    %v1255 = vadd.f32 %v1226, %v1254
    %v1256 = vpop.f32.mrf.mxu0
    %v1257 = vadd.f32 %v1228, %v1256
    %1258 = vmatmul.bf16.gmra.mxu0 %v273
    %v1259 = vpop.f32.mrf.mxu0
    %v1260 = vadd.f32 %v1231, %v1259
    %v1261 = vpop.f32.mrf.mxu0
    %v1262 = vadd.f32 %v1233, %v1261
    %1263 = vdwg.mxu0
    %1264 = vmatpush.bf16.msra.mxu0 %v874
    %1265 = vmatpush.bf16.msra.mxu0 %v872
    %1266 = vmatpush.bf16.msra.mxu0 %v870
    %1267 = vmatpush.bf16.msra.mxu0 %v868
    %1268 = vmatpush.bf16.msra.mxu0 %v866
    %1269 = vmatpush.bf16.msra.mxu0 %v864
    %1270 = vmatpush.bf16.msra.mxu0 %v862
    %1271 = vmatpush.bf16.msra.mxu0 %v860
    %1272 = vmatmul.bf16.gmra.mxu0 %v256
    %v1273 = vpop.f32.mrf.mxu0
    %v1274 = vadd.f32 %v1245, %v1273
    %v1275 = vpop.f32.mrf.mxu0
    %v1276 = vadd.f32 %v1247, %v1275
    %1277 = vmatmul.bf16.gmra.mxu0 %v262
    %v1278 = vpop.f32.mrf.mxu0
    %v1279 = vadd.f32 %v1250, %v1278
    %v1280 = vpop.f32.mrf.mxu0
    %v1281 = vadd.f32 %v1252, %v1280
    %1282 = vmatmul.bf16.gmra.mxu0 %v268
    %v1283 = vpop.f32.mrf.mxu0
    %v1284 = vadd.f32 %v1255, %v1283
    %v1285 = vpop.f32.mrf.mxu0
    %v1286 = vadd.f32 %v1257, %v1285
    %1287 = vmatmul.bf16.gmra.mxu0 %v274
    %v1288 = vpop.f32.mrf.mxu0
    %v1289 = vadd.f32 %v1260, %v1288
    %v1290 = vpop.f32.mrf.mxu0
    %v1291 = vadd.f32 %v1262, %v1290
    %1292 = vdwg.mxu0
    %1293 = vmatpush.bf16.msra.mxu0 %v890
    %1294 = vmatpush.bf16.msra.mxu0 %v888
    %1295 = vmatpush.bf16.msra.mxu0 %v886
    %1296 = vmatpush.bf16.msra.mxu0 %v884
    %1297 = vmatpush.bf16.msra.mxu0 %v882
    %1298 = vmatpush.bf16.msra.mxu0 %v880
    %1299 = vmatpush.bf16.msra.mxu0 %v878
    %1300 = vmatpush.bf16.msra.mxu0 %v876
    %1301 = vmatmul.bf16.gmra.mxu0 %v257
    %v1302 = vpop.f32.mrf.mxu0
    %v1303 = vadd.f32 %v1274, %v1302
    %v1304 = vpop.f32.mrf.mxu0
    %v1305 = vadd.f32 %v1276, %v1304
    %1306 = vmatmul.bf16.gmra.mxu0 %v263
    %v1307 = vpop.f32.mrf.mxu0
    %v1308 = vadd.f32 %v1279, %v1307
    %v1309 = vpop.f32.mrf.mxu0
    %v1310 = vadd.f32 %v1281, %v1309
    %1311 = vmatmul.bf16.gmra.mxu0 %v269
    %v1312 = vpop.f32.mrf.mxu0
    %v1313 = vadd.f32 %v1284, %v1312
    %v1314 = vpop.f32.mrf.mxu0
    %v1315 = vadd.f32 %v1286, %v1314
    %1316 = vmatmul.bf16.gmra.mxu0 %v275
    %v1317 = vpop.f32.mrf.mxu0
    %v1318 = vadd.f32 %v1289, %v1317
    %v1319 = vpop.f32.mrf.mxu0
    %v1320 = vadd.f32 %v1291, %v1319
    %1321 = vdwg.mxu0
    %1322 = vmatpush.bf16.msra.mxu0 %v906
    %1323 = vmatpush.bf16.msra.mxu0 %v904
    %1324 = vmatpush.bf16.msra.mxu0 %v902
    %1325 = vmatpush.bf16.msra.mxu0 %v900
    %1326 = vmatpush.bf16.msra.mxu0 %v898
    %1327 = vmatpush.bf16.msra.mxu0 %v896
    %1328 = vmatpush.bf16.msra.mxu0 %v894
    %1329 = vmatpush.bf16.msra.mxu0 %v892
    %1330 = vmatmul.bf16.gmra.mxu0 %v258
    %v1331 = vpop.f32.mrf.mxu0
    %v1332 = vadd.f32 %v1303, %v1331
    %v1333 = vpop.f32.mrf.mxu0
    %v1334 = vadd.f32 %v1305, %v1333
    %1335 = vmatmul.bf16.gmra.mxu0 %v264
    %v1336 = vpop.f32.mrf.mxu0
    %v1337 = vadd.f32 %v1308, %v1336
    %v1338 = vpop.f32.mrf.mxu0
    %v1339 = vadd.f32 %v1310, %v1338
    %1340 = vmatmul.bf16.gmra.mxu0 %v270
    %v1341 = vpop.f32.mrf.mxu0
    %v1342 = vadd.f32 %v1313, %v1341
    %v1343 = vpop.f32.mrf.mxu0
    %v1344 = vadd.f32 %v1315, %v1343
    %1345 = vmatmul.bf16.gmra.mxu0 %v276
    %v1346 = vpop.f32.mrf.mxu0
    %v1347 = vadd.f32 %v1318, %v1346
    %v1348 = vpop.f32.mrf.mxu0
    %v1349 = vadd.f32 %v1320, %v1348
    %1350 = vdwg.mxu0
    %v1351 = vpack.c.bf16 %v1160, %v1158
    %v1352 = vpack.c.bf16 %v1334, %v1332
    %v1353 = vpack.c.bf16 %v1165, %v1163
    %v1354 = vpack.c.bf16 %v1339, %v1337
    %v1355 = vpack.c.bf16 %v1170, %v1168
    %v1356 = vpack.c.bf16 %v1344, %v1342
    %v1357 = vpack.c.bf16 %v1175, %v1173
    %v1358 = vpack.c.bf16 %v1349, %v1347
    %v1359 = vld [vmem:[#allocation11] sm:$0xff]
    %v1360 = vld [vmem:[#allocation11 + $0x8] sm:$0xff]
    %v1361 = vld [vmem:[#allocation11 + $0x10] sm:$0xff]
    %v1362 = vld [vmem:[#allocation11 + $0x18] sm:$0xff]
    %v1363 = vld [vmem:[#allocation11 + $0x20] sm:$0xff]
    %v1364 = vld [vmem:[#allocation11 + $0x28] sm:$0xff]
    %v1365 = vld [vmem:[#allocation11 + $0x30] sm:$0xff]
    %v1366 = vld [vmem:[#allocation11 + $0x38] sm:$0xff]
    %v1367 = vld [vmem:[#allocation11 + $0x40] sm:$0xff]
    %v1368 = vld [vmem:[#allocation11 + $0x48] sm:$0xff]
    %v1369 = vld [vmem:[#allocation11 + $0x50] sm:$0xff]
    %v1370 = vld [vmem:[#allocation11 + $0x58] sm:$0xff]
    %v1371 = vld [vmem:[#allocation11 + $0x60] sm:$0xff]
    %v1372 = vld [vmem:[#allocation11 + $0x68] sm:$0xff]
    %v1373 = vld [vmem:[#allocation11 + $0x70] sm:$0xff]
    %v1374 = vld [vmem:[#allocation11 + $0x78] sm:$0xff]
    %v1375 = vld [vmem:[#allocation11 + $0x80] sm:$0xff]
    %v1376 = vld [vmem:[#allocation11 + $0x88] sm:$0xff]
    %v1377 = vld [vmem:[#allocation11 + $0x90] sm:$0xff]
    %v1378 = vld [vmem:[#allocation11 + $0x98] sm:$0xff]
    %v1379 = vld [vmem:[#allocation11 + $0xa0] sm:$0xff]
    %v1380 = vld [vmem:[#allocation11 + $0xa8] sm:$0xff]
    %v1381 = vld [vmem:[#allocation11 + $0xb0] sm:$0xff]
    %v1382 = vld [vmem:[#allocation11 + $0xb8] sm:$0xff]
    %v1383 = vld [vmem:[#allocation11 + $0xc0] sm:$0xff]
    %v1384 = vld [vmem:[#allocation11 + $0xc8] sm:$0xff]
    %v1385 = vld [vmem:[#allocation11 + $0xd0] sm:$0xff]
    %v1386 = vld [vmem:[#allocation11 + $0xd8] sm:$0xff]
    %v1387 = vld [vmem:[#allocation11 + $0xe0] sm:$0xff]
    %v1388 = vld [vmem:[#allocation11 + $0xe8] sm:$0xff]
    %v1389 = vld [vmem:[#allocation11 + $0xf0] sm:$0xff]
    %v1390 = vld [vmem:[#allocation11 + $0xf8] sm:$0xff]
    %v1391 = vld [vmem:[#allocation11 + $0x100] sm:$0xff]
    %v1392 = vld [vmem:[#allocation11 + $0x108] sm:$0xff]
    %v1393 = vld [vmem:[#allocation11 + $0x110] sm:$0xff]
    %v1394 = vld [vmem:[#allocation11 + $0x118] sm:$0xff]
    %v1395 = vld [vmem:[#allocation11 + $0x120] sm:$0xff]
    %v1396 = vld [vmem:[#allocation11 + $0x128] sm:$0xff]
    %v1397 = vld [vmem:[#allocation11 + $0x130] sm:$0xff]
    %v1398 = vld [vmem:[#allocation11 + $0x138] sm:$0xff]
    %v1399 = vld [vmem:[#allocation11 + $0x140] sm:$0xff]
    %v1400 = vld [vmem:[#allocation11 + $0x148] sm:$0xff]
    %v1401 = vld [vmem:[#allocation11 + $0x150] sm:$0xff]
    %v1402 = vld [vmem:[#allocation11 + $0x158] sm:$0xff]
    %v1403 = vld [vmem:[#allocation11 + $0x160] sm:$0xff]
    %v1404 = vld [vmem:[#allocation11 + $0x168] sm:$0xff]
    %v1405 = vld [vmem:[#allocation11 + $0x170] sm:$0xff]
    %v1406 = vld [vmem:[#allocation11 + $0x178] sm:$0xff]
    %v1407 = vld [vmem:[#allocation11 + $0x180] sm:$0xff]
    %v1408 = vld [vmem:[#allocation11 + $0x188] sm:$0xff]
    %v1409 = vld [vmem:[#allocation11 + $0x190] sm:$0xff]
    %v1410 = vld [vmem:[#allocation11 + $0x198] sm:$0xff]
    %v1411 = vld [vmem:[#allocation11 + $0x1a0] sm:$0xff]
    %v1412 = vld [vmem:[#allocation11 + $0x1a8] sm:$0xff]
    %v1413 = vld [vmem:[#allocation11 + $0x1b0] sm:$0xff]
    %v1414 = vld [vmem:[#allocation11 + $0x1b8] sm:$0xff]
    %v1415 = vld [vmem:[#allocation11 + $0x1c0] sm:$0xff]
    %v1416 = vld [vmem:[#allocation11 + $0x1c8] sm:$0xff]
    %v1417 = vld [vmem:[#allocation11 + $0x1d0] sm:$0xff]
    %v1418 = vld [vmem:[#allocation11 + $0x1d8] sm:$0xff]
    %v1419 = vld [vmem:[#allocation11 + $0x1e0] sm:$0xff]
    %v1420 = vld [vmem:[#allocation11 + $0x1e8] sm:$0xff]
    %v1421 = vld [vmem:[#allocation11 + $0x1f0] sm:$0xff]
    %v1422 = vld [vmem:[#allocation11 + $0x1f8] sm:$0xff]
    %v1423 = vld [vmem:[#allocation11 + $0x200] sm:$0xff]
    %v1424 = vld [vmem:[#allocation11 + $0x208] sm:$0xff]
    %v1425 = vld [vmem:[#allocation11 + $0x210] sm:$0xff]
    %v1426 = vld [vmem:[#allocation11 + $0x218] sm:$0xff]
    %v1427 = vld [vmem:[#allocation11 + $0x220] sm:$0xff]
    %v1428 = vld [vmem:[#allocation11 + $0x228] sm:$0xff]
    %v1429 = vld [vmem:[#allocation11 + $0x230] sm:$0xff]
    %v1430 = vld [vmem:[#allocation11 + $0x238] sm:$0xff]
    %v1431 = vld [vmem:[#allocation11 + $0x240] sm:$0xff]
    %v1432 = vld [vmem:[#allocation11 + $0x248] sm:$0xff]
    %v1433 = vld [vmem:[#allocation11 + $0x250] sm:$0xff]
    %v1434 = vld [vmem:[#allocation11 + $0x258] sm:$0xff]
    %v1435 = vld [vmem:[#allocation11 + $0x260] sm:$0xff]
    %v1436 = vld [vmem:[#allocation11 + $0x268] sm:$0xff]
    %v1437 = vld [vmem:[#allocation11 + $0x270] sm:$0xff]
    %v1438 = vld [vmem:[#allocation11 + $0x278] sm:$0xff]
    %v1439 = vld [vmem:[#allocation11 + $0x280] sm:$0xff]
    %v1440 = vld [vmem:[#allocation11 + $0x288] sm:$0xff]
    %v1441 = vld [vmem:[#allocation11 + $0x290] sm:$0xff]
    %v1442 = vld [vmem:[#allocation11 + $0x298] sm:$0xff]
    %v1443 = vld [vmem:[#allocation11 + $0x2a0] sm:$0xff]
    %v1444 = vld [vmem:[#allocation11 + $0x2a8] sm:$0xff]
    %v1445 = vld [vmem:[#allocation11 + $0x2b0] sm:$0xff]
    %v1446 = vld [vmem:[#allocation11 + $0x2b8] sm:$0xff]
    %v1447 = vld [vmem:[#allocation11 + $0x2c0] sm:$0xff]
    %v1448 = vld [vmem:[#allocation11 + $0x2c8] sm:$0xff]
    %v1449 = vld [vmem:[#allocation11 + $0x2d0] sm:$0xff]
    %v1450 = vld [vmem:[#allocation11 + $0x2d8] sm:$0xff]
    %v1451 = vld [vmem:[#allocation11 + $0x2e0] sm:$0xff]
    %v1452 = vld [vmem:[#allocation11 + $0x2e8] sm:$0xff]
    %v1453 = vld [vmem:[#allocation11 + $0x2f0] sm:$0xff]
    %v1454 = vld [vmem:[#allocation11 + $0x2f8] sm:$0xff]
    %v1455 = vld [vmem:[#allocation13] sm:$0x3]
    %v1457 = vperm.slane %v1455, 0
    %v1458 = vperm.slane %v1455, 1
    %v1557 = vunpack.c.l.b16 %v1359
    %v1558 = vunpack.c.h.b16 %v1359
    %v1559 = vunpack.c.l.b16 %v1360
    %v1560 = vunpack.c.h.b16 %v1360
    %v1561 = vunpack.c.l.b16 %v1361
    %v1562 = vunpack.c.h.b16 %v1361
    %v1563 = vunpack.c.l.b16 %v1362
    %v1564 = vunpack.c.h.b16 %v1362
    %v1565 = vunpack.c.l.b16 %v1363
    %v1566 = vunpack.c.h.b16 %v1363
    %v1567 = vunpack.c.l.b16 %v1364
    %v1568 = vunpack.c.h.b16 %v1364
    %v1569 = vunpack.c.l.b16 %v1365
    %v1570 = vunpack.c.h.b16 %v1365
    %v1571 = vunpack.c.l.b16 %v1366
    %v1572 = vunpack.c.h.b16 %v1366
    %v1573 = vunpack.c.l.b16 %v1367
    %v1574 = vunpack.c.h.b16 %v1367
    %v1575 = vunpack.c.l.b16 %v1368
    %v1576 = vunpack.c.h.b16 %v1368
    %v1577 = vunpack.c.l.b16 %v1369
    %v1578 = vunpack.c.h.b16 %v1369
    %v1579 = vunpack.c.l.b16 %v1370
    %v1580 = vunpack.c.h.b16 %v1370
    %v1581 = vunpack.c.l.b16 %v1371
    %v1582 = vunpack.c.h.b16 %v1371
    %v1583 = vunpack.c.l.b16 %v1372
    %v1584 = vunpack.c.h.b16 %v1372
    %v1585 = vunpack.c.l.b16 %v1373
    %v1586 = vunpack.c.h.b16 %v1373
    %v1587 = vunpack.c.l.b16 %v1374
    %v1588 = vunpack.c.h.b16 %v1374
    %v1589 = vunpack.c.l.b16 %v1375
    %v1590 = vunpack.c.h.b16 %v1375
    %v1591 = vunpack.c.l.b16 %v1376
    %v1592 = vunpack.c.h.b16 %v1376
    %v1593 = vunpack.c.l.b16 %v1377
    %v1594 = vunpack.c.h.b16 %v1377
    %v1595 = vunpack.c.l.b16 %v1378
    %v1596 = vunpack.c.h.b16 %v1378
    %v1597 = vunpack.c.l.b16 %v1379
    %v1598 = vunpack.c.h.b16 %v1379
    %v1599 = vunpack.c.l.b16 %v1380
    %v1600 = vunpack.c.h.b16 %v1380
    %v1601 = vunpack.c.l.b16 %v1381
    %v1602 = vunpack.c.h.b16 %v1381
    %v1603 = vunpack.c.l.b16 %v1382
    %v1604 = vunpack.c.h.b16 %v1382
    %v1605 = vunpack.c.l.b16 %v1383
    %v1606 = vunpack.c.h.b16 %v1383
    %v1607 = vunpack.c.l.b16 %v1384
    %v1608 = vunpack.c.h.b16 %v1384
    %v1609 = vunpack.c.l.b16 %v1385
    %v1610 = vunpack.c.h.b16 %v1385
    %v1611 = vunpack.c.l.b16 %v1386
    %v1612 = vunpack.c.h.b16 %v1386
    %v1613 = vunpack.c.l.b16 %v1387
    %v1614 = vunpack.c.h.b16 %v1387
    %v1615 = vunpack.c.l.b16 %v1388
    %v1616 = vunpack.c.h.b16 %v1388
    %v1617 = vunpack.c.l.b16 %v1389
    %v1618 = vunpack.c.h.b16 %v1389
    %v1619 = vunpack.c.l.b16 %v1390
    %v1620 = vunpack.c.h.b16 %v1390
    %v1621 = vunpack.c.l.b16 %v1391
    %v1622 = vunpack.c.h.b16 %v1391
    %v1623 = vunpack.c.l.b16 %v1392
    %v1624 = vunpack.c.h.b16 %v1392
    %v1625 = vunpack.c.l.b16 %v1393
    %v1626 = vunpack.c.h.b16 %v1393
    %v1627 = vunpack.c.l.b16 %v1394
    %v1628 = vunpack.c.h.b16 %v1394
    %v1629 = vunpack.c.l.b16 %v1395
    %v1630 = vunpack.c.h.b16 %v1395
    %v1631 = vunpack.c.l.b16 %v1396
    %v1632 = vunpack.c.h.b16 %v1396
    %v1633 = vunpack.c.l.b16 %v1397
    %v1634 = vunpack.c.h.b16 %v1397
    %v1635 = vunpack.c.l.b16 %v1398
    %v1636 = vunpack.c.h.b16 %v1398
    %v1637 = vunpack.c.l.b16 %v1399
    %v1638 = vunpack.c.h.b16 %v1399
    %v1639 = vunpack.c.l.b16 %v1400
    %v1640 = vunpack.c.h.b16 %v1400
    %v1641 = vunpack.c.l.b16 %v1401
    %v1642 = vunpack.c.h.b16 %v1401
    %v1643 = vunpack.c.l.b16 %v1402
    %v1644 = vunpack.c.h.b16 %v1402
    %v1645 = vunpack.c.l.b16 %v1403
    %v1646 = vunpack.c.h.b16 %v1403
    %v1647 = vunpack.c.l.b16 %v1404
    %v1648 = vunpack.c.h.b16 %v1404
    %v1649 = vunpack.c.l.b16 %v1405
    %v1650 = vunpack.c.h.b16 %v1405
    %v1651 = vunpack.c.l.b16 %v1406
    %v1652 = vunpack.c.h.b16 %v1406
    %v1653 = vunpack.c.l.b16 %v1407
    %v1654 = vunpack.c.h.b16 %v1407
    %v1655 = vunpack.c.l.b16 %v1408
    %v1656 = vunpack.c.h.b16 %v1408
    %v1657 = vunpack.c.l.b16 %v1409
    %v1658 = vunpack.c.h.b16 %v1409
    %v1659 = vunpack.c.l.b16 %v1410
    %v1660 = vunpack.c.h.b16 %v1410
    %v1661 = vunpack.c.l.b16 %v1411
    %v1662 = vunpack.c.h.b16 %v1411
    %v1663 = vunpack.c.l.b16 %v1412
    %v1664 = vunpack.c.h.b16 %v1412
    %v1665 = vunpack.c.l.b16 %v1413
    %v1666 = vunpack.c.h.b16 %v1413
    %v1667 = vunpack.c.l.b16 %v1414
    %v1668 = vunpack.c.h.b16 %v1414
    %v1669 = vunpack.c.l.b16 %v1415
    %v1670 = vunpack.c.h.b16 %v1415
    %v1671 = vunpack.c.l.b16 %v1416
    %v1672 = vunpack.c.h.b16 %v1416
    %v1673 = vunpack.c.l.b16 %v1417
    %v1674 = vunpack.c.h.b16 %v1417
    %v1675 = vunpack.c.l.b16 %v1418
    %v1676 = vunpack.c.h.b16 %v1418
    %v1677 = vunpack.c.l.b16 %v1419
    %v1678 = vunpack.c.h.b16 %v1419
    %v1679 = vunpack.c.l.b16 %v1420
    %v1680 = vunpack.c.h.b16 %v1420
    %v1681 = vunpack.c.l.b16 %v1421
    %v1682 = vunpack.c.h.b16 %v1421
    %v1683 = vunpack.c.l.b16 %v1422
    %v1684 = vunpack.c.h.b16 %v1422
    %v1685 = vunpack.c.l.b16 %v1423
    %v1686 = vunpack.c.h.b16 %v1423
    %v1687 = vunpack.c.l.b16 %v1424
    %v1688 = vunpack.c.h.b16 %v1424
    %v1689 = vunpack.c.l.b16 %v1425
    %v1690 = vunpack.c.h.b16 %v1425
    %v1691 = vunpack.c.l.b16 %v1426
    %v1692 = vunpack.c.h.b16 %v1426
    %v1693 = vunpack.c.l.b16 %v1427
    %v1694 = vunpack.c.h.b16 %v1427
    %v1695 = vunpack.c.l.b16 %v1428
    %v1696 = vunpack.c.h.b16 %v1428
    %v1697 = vunpack.c.l.b16 %v1429
    %v1698 = vunpack.c.h.b16 %v1429
    %v1699 = vunpack.c.l.b16 %v1430
    %v1700 = vunpack.c.h.b16 %v1430
    %v1701 = vunpack.c.l.b16 %v1431
    %v1702 = vunpack.c.h.b16 %v1431
    %v1703 = vunpack.c.l.b16 %v1432
    %v1704 = vunpack.c.h.b16 %v1432
    %v1705 = vunpack.c.l.b16 %v1433
    %v1706 = vunpack.c.h.b16 %v1433
    %v1707 = vunpack.c.l.b16 %v1434
    %v1708 = vunpack.c.h.b16 %v1434
    %v1709 = vunpack.c.l.b16 %v1435
    %v1710 = vunpack.c.h.b16 %v1435
    %v1711 = vunpack.c.l.b16 %v1436
    %v1712 = vunpack.c.h.b16 %v1436
    %v1713 = vunpack.c.l.b16 %v1437
    %v1714 = vunpack.c.h.b16 %v1437
    %v1715 = vunpack.c.l.b16 %v1438
    %v1716 = vunpack.c.h.b16 %v1438
    %v1717 = vunpack.c.l.b16 %v1439
    %v1718 = vunpack.c.h.b16 %v1439
    %v1719 = vunpack.c.l.b16 %v1440
    %v1720 = vunpack.c.h.b16 %v1440
    %v1721 = vunpack.c.l.b16 %v1441
    %v1722 = vunpack.c.h.b16 %v1441
    %v1723 = vunpack.c.l.b16 %v1442
    %v1724 = vunpack.c.h.b16 %v1442
    %v1725 = vunpack.c.l.b16 %v1443
    %v1726 = vunpack.c.h.b16 %v1443
    %v1727 = vunpack.c.l.b16 %v1444
    %v1728 = vunpack.c.h.b16 %v1444
    %v1729 = vunpack.c.l.b16 %v1445
    %v1730 = vunpack.c.h.b16 %v1445
    %v1731 = vunpack.c.l.b16 %v1446
    %v1732 = vunpack.c.h.b16 %v1446
    %v1733 = vunpack.c.l.b16 %v1447
    %v1734 = vunpack.c.h.b16 %v1447
    %v1735 = vunpack.c.l.b16 %v1448
    %v1736 = vunpack.c.h.b16 %v1448
    %v1737 = vunpack.c.l.b16 %v1449
    %v1738 = vunpack.c.h.b16 %v1449
    %v1739 = vunpack.c.l.b16 %v1450
    %v1740 = vunpack.c.h.b16 %v1450
    %v1741 = vunpack.c.l.b16 %v1451
    %v1742 = vunpack.c.h.b16 %v1451
    %v1743 = vunpack.c.l.b16 %v1452
    %v1744 = vunpack.c.h.b16 %v1452
    %v1745 = vunpack.c.l.b16 %v1453
    %v1746 = vunpack.c.h.b16 %v1453
    %v1747 = vunpack.c.l.b16 %v1454
    %v1748 = vunpack.c.h.b16 %v1454
    %v1749 = vpack.c.b16 %v1559, %v1557
    %v1750 = vpack.c.b16 %v1560, %v1558
    %v1751 = vpack.c.b16 %v1563, %v1561
    %v1752 = vpack.c.b16 %v1564, %v1562
    %v1753 = vpack.c.b16 %v1567, %v1565
    %v1754 = vpack.c.b16 %v1568, %v1566
    %v1755 = vpack.c.b16 %v1571, %v1569
    %v1756 = vpack.c.b16 %v1572, %v1570
    %v1757 = vpack.c.b16 %v1575, %v1573
    %v1758 = vpack.c.b16 %v1576, %v1574
    %v1759 = vpack.c.b16 %v1579, %v1577
    %v1760 = vpack.c.b16 %v1580, %v1578
    %v1761 = vpack.c.b16 %v1583, %v1581
    %v1762 = vpack.c.b16 %v1584, %v1582
    %v1763 = vpack.c.b16 %v1587, %v1585
    %v1764 = vpack.c.b16 %v1588, %v1586
    %v1765 = vpack.c.b16 %v1591, %v1589
    %v1766 = vpack.c.b16 %v1592, %v1590
    %v1767 = vpack.c.b16 %v1595, %v1593
    %v1768 = vpack.c.b16 %v1596, %v1594
    %v1769 = vpack.c.b16 %v1599, %v1597
    %v1770 = vpack.c.b16 %v1600, %v1598
    %v1771 = vpack.c.b16 %v1603, %v1601
    %v1772 = vpack.c.b16 %v1604, %v1602
    %v1773 = vpack.c.b16 %v1607, %v1605
    %v1774 = vpack.c.b16 %v1608, %v1606
    %v1775 = vpack.c.b16 %v1611, %v1609
    %v1776 = vpack.c.b16 %v1612, %v1610
    %v1777 = vpack.c.b16 %v1615, %v1613
    %v1778 = vpack.c.b16 %v1616, %v1614
    %v1779 = vpack.c.b16 %v1619, %v1617
    %v1780 = vpack.c.b16 %v1620, %v1618
    %v1781 = vpack.c.b16 %v1623, %v1621
    %v1782 = vpack.c.b16 %v1624, %v1622
    %v1783 = vpack.c.b16 %v1627, %v1625
    %v1784 = vpack.c.b16 %v1628, %v1626
    %v1785 = vpack.c.b16 %v1631, %v1629
    %v1786 = vpack.c.b16 %v1632, %v1630
    %v1787 = vpack.c.b16 %v1635, %v1633
    %v1788 = vpack.c.b16 %v1636, %v1634
    %v1789 = vpack.c.b16 %v1639, %v1637
    %v1790 = vpack.c.b16 %v1640, %v1638
    %v1791 = vpack.c.b16 %v1643, %v1641
    %v1792 = vpack.c.b16 %v1644, %v1642
    %v1793 = vpack.c.b16 %v1647, %v1645
    %v1794 = vpack.c.b16 %v1648, %v1646
    %v1795 = vpack.c.b16 %v1651, %v1649
    %v1796 = vpack.c.b16 %v1652, %v1650
    %v1797 = vpack.c.b16 %v1655, %v1653
    %v1798 = vpack.c.b16 %v1656, %v1654
    %v1799 = vpack.c.b16 %v1659, %v1657
    %v1800 = vpack.c.b16 %v1660, %v1658
    %v1801 = vpack.c.b16 %v1663, %v1661
    %v1802 = vpack.c.b16 %v1664, %v1662
    %v1803 = vpack.c.b16 %v1667, %v1665
    %v1804 = vpack.c.b16 %v1668, %v1666
    %v1805 = vpack.c.b16 %v1671, %v1669
    %v1806 = vpack.c.b16 %v1672, %v1670
    %v1807 = vpack.c.b16 %v1675, %v1673
    %v1808 = vpack.c.b16 %v1676, %v1674
    %v1809 = vpack.c.b16 %v1679, %v1677
    %v1810 = vpack.c.b16 %v1680, %v1678
    %v1811 = vpack.c.b16 %v1683, %v1681
    %v1812 = vpack.c.b16 %v1684, %v1682
    %v1813 = vpack.c.b16 %v1687, %v1685
    %v1814 = vpack.c.b16 %v1688, %v1686
    %v1815 = vpack.c.b16 %v1691, %v1689
    %v1816 = vpack.c.b16 %v1692, %v1690
    %v1817 = vpack.c.b16 %v1695, %v1693
    %v1818 = vpack.c.b16 %v1696, %v1694
    %v1819 = vpack.c.b16 %v1699, %v1697
    %v1820 = vpack.c.b16 %v1700, %v1698
    %v1821 = vpack.c.b16 %v1703, %v1701
    %v1822 = vpack.c.b16 %v1704, %v1702
    %v1823 = vpack.c.b16 %v1707, %v1705
    %v1824 = vpack.c.b16 %v1708, %v1706
    %v1825 = vpack.c.b16 %v1711, %v1709
    %v1826 = vpack.c.b16 %v1712, %v1710
    %v1827 = vpack.c.b16 %v1715, %v1713
    %v1828 = vpack.c.b16 %v1716, %v1714
    %v1829 = vpack.c.b16 %v1719, %v1717
    %v1830 = vpack.c.b16 %v1720, %v1718
    %v1831 = vpack.c.b16 %v1723, %v1721
    %v1832 = vpack.c.b16 %v1724, %v1722
    %v1833 = vpack.c.b16 %v1727, %v1725
    %v1834 = vpack.c.b16 %v1728, %v1726
    %v1835 = vpack.c.b16 %v1731, %v1729
    %v1836 = vpack.c.b16 %v1732, %v1730
    %v1837 = vpack.c.b16 %v1735, %v1733
    %v1838 = vpack.c.b16 %v1736, %v1734
    %v1839 = vpack.c.b16 %v1739, %v1737
    %v1840 = vpack.c.b16 %v1740, %v1738
    %v1841 = vpack.c.b16 %v1743, %v1741
    %v1842 = vpack.c.b16 %v1744, %v1742
    %v1843 = vpack.c.b16 %v1747, %v1745
    %v1844 = vpack.c.b16 %v1748, %v1746
    %1941 = vmatpush.bf16.msra.mxu0 %v1763
    %1942 = vmatpush.bf16.msra.mxu0 %v1761
    %1943 = vmatpush.bf16.msra.mxu0 %v1759
    %1944 = vmatpush.bf16.msra.mxu0 %v1757
    %1945 = vmatpush.bf16.msra.mxu0 %v1755
    %1946 = vmatpush.bf16.msra.mxu0 %v1753
    %1947 = vmatpush.bf16.msra.mxu0 %v1751
    %1948 = vmatpush.bf16.msra.mxu0 %v1749
    %1949 = vmatmul.bf16.gmra.mxu0 %v325
    %v1950 = vpop.f32.mrf.mxu0
    %v1951 = vadd.f32 %v1457, %v1950
    %v1952 = vpop.f32.mrf.mxu0
    %v1953 = vadd.f32 %v1457, %v1952
    %1954 = vmatmul.bf16.gmra.mxu0 %v331
    %v1955 = vpop.f32.mrf.mxu0
    %v1956 = vadd.f32 %v1457, %v1955
    %v1957 = vpop.f32.mrf.mxu0
    %v1958 = vadd.f32 %v1457, %v1957
    %1959 = vmatmul.bf16.gmra.mxu0 %v337
    %v1960 = vpop.f32.mrf.mxu0
    %v1961 = vadd.f32 %v1457, %v1960
    %v1962 = vpop.f32.mrf.mxu0
    %v1963 = vadd.f32 %v1457, %v1962
    %1964 = vmatmul.bf16.gmra.mxu0 %v343
    %v1965 = vpop.f32.mrf.mxu0
    %v1966 = vadd.f32 %v1457, %v1965
    %v1967 = vpop.f32.mrf.mxu0
    %v1968 = vadd.f32 %v1457, %v1967
    %1969 = vdwg.mxu0
    %1970 = vmatpush.bf16.msra.mxu0 %v1779
    %1971 = vmatpush.bf16.msra.mxu0 %v1777
    %1972 = vmatpush.bf16.msra.mxu0 %v1775
    %1973 = vmatpush.bf16.msra.mxu0 %v1773
    %1974 = vmatpush.bf16.msra.mxu0 %v1771
    %1975 = vmatpush.bf16.msra.mxu0 %v1769
    %1976 = vmatpush.bf16.msra.mxu0 %v1767
    %1977 = vmatpush.bf16.msra.mxu0 %v1765
    %1978 = vmatmul.bf16.gmra.mxu0 %v326
    %v1979 = vpop.f32.mrf.mxu0
    %v1980 = vadd.f32 %v1951, %v1979
    %v1981 = vpop.f32.mrf.mxu0
    %v1982 = vadd.f32 %v1953, %v1981
    %1983 = vmatmul.bf16.gmra.mxu0 %v332
    %v1984 = vpop.f32.mrf.mxu0
    %v1985 = vadd.f32 %v1956, %v1984
    %v1986 = vpop.f32.mrf.mxu0
    %v1987 = vadd.f32 %v1958, %v1986
    %1988 = vmatmul.bf16.gmra.mxu0 %v338
    %v1989 = vpop.f32.mrf.mxu0
    %v1990 = vadd.f32 %v1961, %v1989
    %v1991 = vpop.f32.mrf.mxu0
    %v1992 = vadd.f32 %v1963, %v1991
    %1993 = vmatmul.bf16.gmra.mxu0 %v344
    %v1994 = vpop.f32.mrf.mxu0
    %v1995 = vadd.f32 %v1966, %v1994
    %v1996 = vpop.f32.mrf.mxu0
    %v1997 = vadd.f32 %v1968, %v1996
    %1998 = vdwg.mxu0
    %1999 = vmatpush.bf16.msra.mxu0 %v1795
    %2000 = vmatpush.bf16.msra.mxu0 %v1793
    %2001 = vmatpush.bf16.msra.mxu0 %v1791
    %2002 = vmatpush.bf16.msra.mxu0 %v1789
    %2003 = vmatpush.bf16.msra.mxu0 %v1787
    %2004 = vmatpush.bf16.msra.mxu0 %v1785
    %2005 = vmatpush.bf16.msra.mxu0 %v1783
    %2006 = vmatpush.bf16.msra.mxu0 %v1781
    %2007 = vmatmul.bf16.gmra.mxu0 %v327
    %v2008 = vpop.f32.mrf.mxu0
    %v2009 = vadd.f32 %v1980, %v2008
    %v2010 = vpop.f32.mrf.mxu0
    %v2011 = vadd.f32 %v1982, %v2010
    %2012 = vmatmul.bf16.gmra.mxu0 %v333
    %v2013 = vpop.f32.mrf.mxu0
    %v2014 = vadd.f32 %v1985, %v2013
    %v2015 = vpop.f32.mrf.mxu0
    %v2016 = vadd.f32 %v1987, %v2015
    %2017 = vmatmul.bf16.gmra.mxu0 %v339
    %v2018 = vpop.f32.mrf.mxu0
    %v2019 = vadd.f32 %v1990, %v2018
    %v2020 = vpop.f32.mrf.mxu0
    %v2021 = vadd.f32 %v1992, %v2020
    %2022 = vmatmul.bf16.gmra.mxu0 %v345
    %v2023 = vpop.f32.mrf.mxu0
    %v2024 = vadd.f32 %v1995, %v2023
    %v2025 = vpop.f32.mrf.mxu0
    %v2026 = vadd.f32 %v1997, %v2025
    %2027 = vdwg.mxu0
    %2028 = vmatpush.bf16.msra.mxu0 %v1811
    %2029 = vmatpush.bf16.msra.mxu0 %v1809
    %2030 = vmatpush.bf16.msra.mxu0 %v1807
    %2031 = vmatpush.bf16.msra.mxu0 %v1805
    %2032 = vmatpush.bf16.msra.mxu0 %v1803
    %2033 = vmatpush.bf16.msra.mxu0 %v1801
    %2034 = vmatpush.bf16.msra.mxu0 %v1799
    %2035 = vmatpush.bf16.msra.mxu0 %v1797
    %2036 = vmatmul.bf16.gmra.mxu0 %v328
    %v2037 = vpop.f32.mrf.mxu0
    %v2038 = vadd.f32 %v2009, %v2037
    %v2039 = vpop.f32.mrf.mxu0
    %v2040 = vadd.f32 %v2011, %v2039
    %2041 = vmatmul.bf16.gmra.mxu0 %v334
    %v2042 = vpop.f32.mrf.mxu0
    %v2043 = vadd.f32 %v2014, %v2042
    %v2044 = vpop.f32.mrf.mxu0
    %v2045 = vadd.f32 %v2016, %v2044
    %2046 = vmatmul.bf16.gmra.mxu0 %v340
    %v2047 = vpop.f32.mrf.mxu0
    %v2048 = vadd.f32 %v2019, %v2047
    %v2049 = vpop.f32.mrf.mxu0
    %v2050 = vadd.f32 %v2021, %v2049
    %2051 = vmatmul.bf16.gmra.mxu0 %v346
    %v2052 = vpop.f32.mrf.mxu0
    %v2053 = vadd.f32 %v2024, %v2052
    %v2054 = vpop.f32.mrf.mxu0
    %v2055 = vadd.f32 %v2026, %v2054
    %2056 = vdwg.mxu0
    %2057 = vmatpush.bf16.msra.mxu0 %v1827
    %2058 = vmatpush.bf16.msra.mxu0 %v1825
    %2059 = vmatpush.bf16.msra.mxu0 %v1823
    %2060 = vmatpush.bf16.msra.mxu0 %v1821
    %2061 = vmatpush.bf16.msra.mxu0 %v1819
    %2062 = vmatpush.bf16.msra.mxu0 %v1817
    %2063 = vmatpush.bf16.msra.mxu0 %v1815
    %2064 = vmatpush.bf16.msra.mxu0 %v1813
    %2065 = vmatmul.bf16.gmra.mxu0 %v329
    %v2066 = vpop.f32.mrf.mxu0
    %v2067 = vadd.f32 %v2038, %v2066
    %v2068 = vpop.f32.mrf.mxu0
    %v2069 = vadd.f32 %v2040, %v2068
    %2070 = vmatmul.bf16.gmra.mxu0 %v335
    %v2071 = vpop.f32.mrf.mxu0
    %v2072 = vadd.f32 %v2043, %v2071
    %v2073 = vpop.f32.mrf.mxu0
    %v2074 = vadd.f32 %v2045, %v2073
    %2075 = vmatmul.bf16.gmra.mxu0 %v341
    %v2076 = vpop.f32.mrf.mxu0
    %v2077 = vadd.f32 %v2048, %v2076
    %v2078 = vpop.f32.mrf.mxu0
    %v2079 = vadd.f32 %v2050, %v2078
    %2080 = vmatmul.bf16.gmra.mxu0 %v347
    %v2081 = vpop.f32.mrf.mxu0
    %v2082 = vadd.f32 %v2053, %v2081
    %v2083 = vpop.f32.mrf.mxu0
    %v2084 = vadd.f32 %v2055, %v2083
    %2085 = vdwg.mxu0
    %2086 = vmatpush.bf16.msra.mxu0 %v1843
    %2087 = vmatpush.bf16.msra.mxu0 %v1841
    %2088 = vmatpush.bf16.msra.mxu0 %v1839
    %2089 = vmatpush.bf16.msra.mxu0 %v1837
    %2090 = vmatpush.bf16.msra.mxu0 %v1835
    %2091 = vmatpush.bf16.msra.mxu0 %v1833
    %2092 = vmatpush.bf16.msra.mxu0 %v1831
    %2093 = vmatpush.bf16.msra.mxu0 %v1829
    %2094 = vmatmul.bf16.gmra.mxu0 %v330
    %v2095 = vpop.f32.mrf.mxu0
    %v2096 = vadd.f32 %v2067, %v2095
    %v2097 = vpop.f32.mrf.mxu0
    %v2098 = vadd.f32 %v2069, %v2097
    %2099 = vmatmul.bf16.gmra.mxu0 %v336
    %v2100 = vpop.f32.mrf.mxu0
    %v2101 = vadd.f32 %v2072, %v2100
    %v2102 = vpop.f32.mrf.mxu0
    %v2103 = vadd.f32 %v2074, %v2102
    %2104 = vmatmul.bf16.gmra.mxu0 %v342
    %v2105 = vpop.f32.mrf.mxu0
    %v2106 = vadd.f32 %v2077, %v2105
    %v2107 = vpop.f32.mrf.mxu0
    %v2108 = vadd.f32 %v2079, %v2107
    %2109 = vmatmul.bf16.gmra.mxu0 %v348
    %v2110 = vpop.f32.mrf.mxu0
    %v2111 = vadd.f32 %v2082, %v2110
    %v2112 = vpop.f32.mrf.mxu0
    %v2113 = vadd.f32 %v2084, %v2112
    %2114 = vdwg.mxu0
    %2115 = vmatpush.bf16.msra.mxu0 %v1764
    %2116 = vmatpush.bf16.msra.mxu0 %v1762
    %2117 = vmatpush.bf16.msra.mxu0 %v1760
    %2118 = vmatpush.bf16.msra.mxu0 %v1758
    %2119 = vmatpush.bf16.msra.mxu0 %v1756
    %2120 = vmatpush.bf16.msra.mxu0 %v1754
    %2121 = vmatpush.bf16.msra.mxu0 %v1752
    %2122 = vmatpush.bf16.msra.mxu0 %v1750
    %2123 = vmatmul.bf16.gmra.mxu0 %v325
    %v2124 = vpop.f32.mrf.mxu0
    %v2125 = vadd.f32 %v1458, %v2124
    %v2126 = vpop.f32.mrf.mxu0
    %v2127 = vadd.f32 %v1458, %v2126
    %2128 = vmatmul.bf16.gmra.mxu0 %v331
    %v2129 = vpop.f32.mrf.mxu0
    %v2130 = vadd.f32 %v1458, %v2129
    %v2131 = vpop.f32.mrf.mxu0
    %v2132 = vadd.f32 %v1458, %v2131
    %2133 = vmatmul.bf16.gmra.mxu0 %v337
    %v2134 = vpop.f32.mrf.mxu0
    %v2135 = vadd.f32 %v1458, %v2134
    %v2136 = vpop.f32.mrf.mxu0
    %v2137 = vadd.f32 %v1458, %v2136
    %2138 = vmatmul.bf16.gmra.mxu0 %v343
    %v2139 = vpop.f32.mrf.mxu0
    %v2140 = vadd.f32 %v1458, %v2139
    %v2141 = vpop.f32.mrf.mxu0
    %v2142 = vadd.f32 %v1458, %v2141
    %2143 = vdwg.mxu0
    %2144 = vmatpush.bf16.msra.mxu0 %v1780
    %2145 = vmatpush.bf16.msra.mxu0 %v1778
    %2146 = vmatpush.bf16.msra.mxu0 %v1776
    %2147 = vmatpush.bf16.msra.mxu0 %v1774
    %2148 = vmatpush.bf16.msra.mxu0 %v1772
    %2149 = vmatpush.bf16.msra.mxu0 %v1770
    %2150 = vmatpush.bf16.msra.mxu0 %v1768
    %2151 = vmatpush.bf16.msra.mxu0 %v1766
    %2152 = vmatmul.bf16.gmra.mxu0 %v326
    %v2153 = vpop.f32.mrf.mxu0
    %v2154 = vadd.f32 %v2125, %v2153
    %v2155 = vpop.f32.mrf.mxu0
    %v2156 = vadd.f32 %v2127, %v2155
    %2157 = vmatmul.bf16.gmra.mxu0 %v332
    %v2158 = vpop.f32.mrf.mxu0
    %v2159 = vadd.f32 %v2130, %v2158
    %v2160 = vpop.f32.mrf.mxu0
    %v2161 = vadd.f32 %v2132, %v2160
    %2162 = vmatmul.bf16.gmra.mxu0 %v338
    %v2163 = vpop.f32.mrf.mxu0
    %v2164 = vadd.f32 %v2135, %v2163
    %v2165 = vpop.f32.mrf.mxu0
    %v2166 = vadd.f32 %v2137, %v2165
    %2167 = vmatmul.bf16.gmra.mxu0 %v344
    %v2168 = vpop.f32.mrf.mxu0
    %v2169 = vadd.f32 %v2140, %v2168
    %v2170 = vpop.f32.mrf.mxu0
    %v2171 = vadd.f32 %v2142, %v2170
    %2172 = vdwg.mxu0
    %2173 = vmatpush.bf16.msra.mxu0 %v1796
    %2174 = vmatpush.bf16.msra.mxu0 %v1794
    %2175 = vmatpush.bf16.msra.mxu0 %v1792
    %2176 = vmatpush.bf16.msra.mxu0 %v1790
    %2177 = vmatpush.bf16.msra.mxu0 %v1788
    %2178 = vmatpush.bf16.msra.mxu0 %v1786
    %2179 = vmatpush.bf16.msra.mxu0 %v1784
    %2180 = vmatpush.bf16.msra.mxu0 %v1782
    %2181 = vmatmul.bf16.gmra.mxu0 %v327
    %v2182 = vpop.f32.mrf.mxu0
    %v2183 = vadd.f32 %v2154, %v2182
    %v2184 = vpop.f32.mrf.mxu0
    %v2185 = vadd.f32 %v2156, %v2184
    %2186 = vmatmul.bf16.gmra.mxu0 %v333
    %v2187 = vpop.f32.mrf.mxu0
    %v2188 = vadd.f32 %v2159, %v2187
    %v2189 = vpop.f32.mrf.mxu0
    %v2190 = vadd.f32 %v2161, %v2189
    %2191 = vmatmul.bf16.gmra.mxu0 %v339
    %v2192 = vpop.f32.mrf.mxu0
    %v2193 = vadd.f32 %v2164, %v2192
    %v2194 = vpop.f32.mrf.mxu0
    %v2195 = vadd.f32 %v2166, %v2194
    %2196 = vmatmul.bf16.gmra.mxu0 %v345
    %v2197 = vpop.f32.mrf.mxu0
    %v2198 = vadd.f32 %v2169, %v2197
    %v2199 = vpop.f32.mrf.mxu0
    %v2200 = vadd.f32 %v2171, %v2199
    %2201 = vdwg.mxu0
    %2202 = vmatpush.bf16.msra.mxu0 %v1812
    %2203 = vmatpush.bf16.msra.mxu0 %v1810
    %2204 = vmatpush.bf16.msra.mxu0 %v1808
    %2205 = vmatpush.bf16.msra.mxu0 %v1806
    %2206 = vmatpush.bf16.msra.mxu0 %v1804
    %2207 = vmatpush.bf16.msra.mxu0 %v1802
    %2208 = vmatpush.bf16.msra.mxu0 %v1800
    %2209 = vmatpush.bf16.msra.mxu0 %v1798
    %2210 = vmatmul.bf16.gmra.mxu0 %v328
    %v2211 = vpop.f32.mrf.mxu0
    %v2212 = vadd.f32 %v2183, %v2211
    %v2213 = vpop.f32.mrf.mxu0
    %v2214 = vadd.f32 %v2185, %v2213
    %2215 = vmatmul.bf16.gmra.mxu0 %v334
    %v2216 = vpop.f32.mrf.mxu0
    %v2217 = vadd.f32 %v2188, %v2216
    %v2218 = vpop.f32.mrf.mxu0
    %v2219 = vadd.f32 %v2190, %v2218
    %2220 = vmatmul.bf16.gmra.mxu0 %v340
    %v2221 = vpop.f32.mrf.mxu0
    %v2222 = vadd.f32 %v2193, %v2221
    %v2223 = vpop.f32.mrf.mxu0
    %v2224 = vadd.f32 %v2195, %v2223
    %2225 = vmatmul.bf16.gmra.mxu0 %v346
    %v2226 = vpop.f32.mrf.mxu0
    %v2227 = vadd.f32 %v2198, %v2226
    %v2228 = vpop.f32.mrf.mxu0
    %v2229 = vadd.f32 %v2200, %v2228
    %2230 = vdwg.mxu0
    %2231 = vmatpush.bf16.msra.mxu0 %v1828
    %2232 = vmatpush.bf16.msra.mxu0 %v1826
    %2233 = vmatpush.bf16.msra.mxu0 %v1824
    %2234 = vmatpush.bf16.msra.mxu0 %v1822
    %2235 = vmatpush.bf16.msra.mxu0 %v1820
    %2236 = vmatpush.bf16.msra.mxu0 %v1818
    %2237 = vmatpush.bf16.msra.mxu0 %v1816
    %2238 = vmatpush.bf16.msra.mxu0 %v1814
    %2239 = vmatmul.bf16.gmra.mxu0 %v329
    %v2240 = vpop.f32.mrf.mxu0
    %v2241 = vadd.f32 %v2212, %v2240
    %v2242 = vpop.f32.mrf.mxu0
    %v2243 = vadd.f32 %v2214, %v2242
    %2244 = vmatmul.bf16.gmra.mxu0 %v335
    %v2245 = vpop.f32.mrf.mxu0
    %v2246 = vadd.f32 %v2217, %v2245
    %v2247 = vpop.f32.mrf.mxu0
    %v2248 = vadd.f32 %v2219, %v2247
    %2249 = vmatmul.bf16.gmra.mxu0 %v341
    %v2250 = vpop.f32.mrf.mxu0
    %v2251 = vadd.f32 %v2222, %v2250
    %v2252 = vpop.f32.mrf.mxu0
    %v2253 = vadd.f32 %v2224, %v2252
    %2254 = vmatmul.bf16.gmra.mxu0 %v347
    %v2255 = vpop.f32.mrf.mxu0
    %v2256 = vadd.f32 %v2227, %v2255
    %v2257 = vpop.f32.mrf.mxu0
    %v2258 = vadd.f32 %v2229, %v2257
    %2259 = vdwg.mxu0
    %2260 = vmatpush.bf16.msra.mxu0 %v1844
    %2261 = vmatpush.bf16.msra.mxu0 %v1842
    %2262 = vmatpush.bf16.msra.mxu0 %v1840
    %2263 = vmatpush.bf16.msra.mxu0 %v1838
    %2264 = vmatpush.bf16.msra.mxu0 %v1836
    %2265 = vmatpush.bf16.msra.mxu0 %v1834
    %2266 = vmatpush.bf16.msra.mxu0 %v1832
    %2267 = vmatpush.bf16.msra.mxu0 %v1830
    %2268 = vmatmul.bf16.gmra.mxu0 %v330
    %v2269 = vpop.f32.mrf.mxu0
    %v2270 = vadd.f32 %v2241, %v2269
    %v2271 = vpop.f32.mrf.mxu0
    %v2272 = vadd.f32 %v2243, %v2271
    %2273 = vmatmul.bf16.gmra.mxu0 %v336
    %v2274 = vpop.f32.mrf.mxu0
    %v2275 = vadd.f32 %v2246, %v2274
    %v2276 = vpop.f32.mrf.mxu0
    %v2277 = vadd.f32 %v2248, %v2276
    %2278 = vmatmul.bf16.gmra.mxu0 %v342
    %v2279 = vpop.f32.mrf.mxu0
    %v2280 = vadd.f32 %v2251, %v2279
    %v2281 = vpop.f32.mrf.mxu0
    %v2282 = vadd.f32 %v2253, %v2281
    %2283 = vmatmul.bf16.gmra.mxu0 %v348
    %v2284 = vpop.f32.mrf.mxu0
    %v2285 = vadd.f32 %v2256, %v2284
    %v2286 = vpop.f32.mrf.mxu0
    %v2287 = vadd.f32 %v2258, %v2286
    %2288 = vdwg.mxu0
    %v2289 = vpack.c.bf16 %v2098, %v2096
    %v2290 = vpack.c.bf16 %v2272, %v2270
    %v2291 = vpack.c.bf16 %v2103, %v2101
    %v2292 = vpack.c.bf16 %v2277, %v2275
    %v2293 = vpack.c.bf16 %v2108, %v2106
    %v2294 = vpack.c.bf16 %v2282, %v2280
    %v2295 = vpack.c.bf16 %v2113, %v2111
    %v2296 = vpack.c.bf16 %v2287, %v2285
    %v2297 = vld [vmem:[#allocation14] sm:$0xff]
    %v2298 = vld [vmem:[#allocation14 + $0x8] sm:$0xff]
    %v2299 = vld [vmem:[#allocation14 + $0x10] sm:$0xff]
    %v2300 = vld [vmem:[#allocation14 + $0x18] sm:$0xff]
    %v2301 = vld [vmem:[#allocation14 + $0x20] sm:$0xff]
    %v2302 = vld [vmem:[#allocation14 + $0x28] sm:$0xff]
    %v2303 = vld [vmem:[#allocation14 + $0x30] sm:$0xff]
    %v2304 = vld [vmem:[#allocation14 + $0x38] sm:$0xff]
    %v2305 = vld [vmem:[#allocation14 + $0x40] sm:$0xff]
    %v2306 = vld [vmem:[#allocation14 + $0x48] sm:$0xff]
    %v2307 = vld [vmem:[#allocation14 + $0x50] sm:$0xff]
    %v2308 = vld [vmem:[#allocation14 + $0x58] sm:$0xff]
    %v2309 = vld [vmem:[#allocation14 + $0x60] sm:$0xff]
    %v2310 = vld [vmem:[#allocation14 + $0x68] sm:$0xff]
    %v2311 = vld [vmem:[#allocation14 + $0x70] sm:$0xff]
    %v2312 = vld [vmem:[#allocation14 + $0x78] sm:$0xff]
    %v2313 = vld [vmem:[#allocation14 + $0x80] sm:$0xff]
    %v2314 = vld [vmem:[#allocation14 + $0x88] sm:$0xff]
    %v2315 = vld [vmem:[#allocation14 + $0x90] sm:$0xff]
    %v2316 = vld [vmem:[#allocation14 + $0x98] sm:$0xff]
    %v2317 = vld [vmem:[#allocation14 + $0xa0] sm:$0xff]
    %v2318 = vld [vmem:[#allocation14 + $0xa8] sm:$0xff]
    %v2319 = vld [vmem:[#allocation14 + $0xb0] sm:$0xff]
    %v2320 = vld [vmem:[#allocation14 + $0xb8] sm:$0xff]
    %v2321 = vld [vmem:[#allocation14 + $0xc0] sm:$0xff]
    %v2322 = vld [vmem:[#allocation14 + $0xc8] sm:$0xff]
    %v2323 = vld [vmem:[#allocation14 + $0xd0] sm:$0xff]
    %v2324 = vld [vmem:[#allocation14 + $0xd8] sm:$0xff]
    %v2325 = vld [vmem:[#allocation14 + $0xe0] sm:$0xff]
    %v2326 = vld [vmem:[#allocation14 + $0xe8] sm:$0xff]
    %v2327 = vld [vmem:[#allocation14 + $0xf0] sm:$0xff]
    %v2328 = vld [vmem:[#allocation14 + $0xf8] sm:$0xff]
    %v2329 = vld [vmem:[#allocation14 + $0x100] sm:$0xff]
    %v2330 = vld [vmem:[#allocation14 + $0x108] sm:$0xff]
    %v2331 = vld [vmem:[#allocation14 + $0x110] sm:$0xff]
    %v2332 = vld [vmem:[#allocation14 + $0x118] sm:$0xff]
    %v2333 = vld [vmem:[#allocation14 + $0x120] sm:$0xff]
    %v2334 = vld [vmem:[#allocation14 + $0x128] sm:$0xff]
    %v2335 = vld [vmem:[#allocation14 + $0x130] sm:$0xff]
    %v2336 = vld [vmem:[#allocation14 + $0x138] sm:$0xff]
    %v2337 = vld [vmem:[#allocation14 + $0x140] sm:$0xff]
    %v2338 = vld [vmem:[#allocation14 + $0x148] sm:$0xff]
    %v2339 = vld [vmem:[#allocation14 + $0x150] sm:$0xff]
    %v2340 = vld [vmem:[#allocation14 + $0x158] sm:$0xff]
    %v2341 = vld [vmem:[#allocation14 + $0x160] sm:$0xff]
    %v2342 = vld [vmem:[#allocation14 + $0x168] sm:$0xff]
    %v2343 = vld [vmem:[#allocation14 + $0x170] sm:$0xff]
    %v2344 = vld [vmem:[#allocation14 + $0x178] sm:$0xff]
    %v2345 = vld [vmem:[#allocation14 + $0x180] sm:$0xff]
    %v2346 = vld [vmem:[#allocation14 + $0x188] sm:$0xff]
    %v2347 = vld [vmem:[#allocation14 + $0x190] sm:$0xff]
    %v2348 = vld [vmem:[#allocation14 + $0x198] sm:$0xff]
    %v2349 = vld [vmem:[#allocation14 + $0x1a0] sm:$0xff]
    %v2350 = vld [vmem:[#allocation14 + $0x1a8] sm:$0xff]
    %v2351 = vld [vmem:[#allocation14 + $0x1b0] sm:$0xff]
    %v2352 = vld [vmem:[#allocation14 + $0x1b8] sm:$0xff]
    %v2353 = vld [vmem:[#allocation14 + $0x1c0] sm:$0xff]
    %v2354 = vld [vmem:[#allocation14 + $0x1c8] sm:$0xff]
    %v2355 = vld [vmem:[#allocation14 + $0x1d0] sm:$0xff]
    %v2356 = vld [vmem:[#allocation14 + $0x1d8] sm:$0xff]
    %v2357 = vld [vmem:[#allocation14 + $0x1e0] sm:$0xff]
    %v2358 = vld [vmem:[#allocation14 + $0x1e8] sm:$0xff]
    %v2359 = vld [vmem:[#allocation14 + $0x1f0] sm:$0xff]
    %v2360 = vld [vmem:[#allocation14 + $0x1f8] sm:$0xff]
    %v2361 = vld [vmem:[#allocation14 + $0x200] sm:$0xff]
    %v2362 = vld [vmem:[#allocation14 + $0x208] sm:$0xff]
    %v2363 = vld [vmem:[#allocation14 + $0x210] sm:$0xff]
    %v2364 = vld [vmem:[#allocation14 + $0x218] sm:$0xff]
    %v2365 = vld [vmem:[#allocation14 + $0x220] sm:$0xff]
    %v2366 = vld [vmem:[#allocation14 + $0x228] sm:$0xff]
    %v2367 = vld [vmem:[#allocation14 + $0x230] sm:$0xff]
    %v2368 = vld [vmem:[#allocation14 + $0x238] sm:$0xff]
    %v2369 = vld [vmem:[#allocation14 + $0x240] sm:$0xff]
    %v2370 = vld [vmem:[#allocation14 + $0x248] sm:$0xff]
    %v2371 = vld [vmem:[#allocation14 + $0x250] sm:$0xff]
    %v2372 = vld [vmem:[#allocation14 + $0x258] sm:$0xff]
    %v2373 = vld [vmem:[#allocation14 + $0x260] sm:$0xff]
    %v2374 = vld [vmem:[#allocation14 + $0x268] sm:$0xff]
    %v2375 = vld [vmem:[#allocation14 + $0x270] sm:$0xff]
    %v2376 = vld [vmem:[#allocation14 + $0x278] sm:$0xff]
    %v2377 = vld [vmem:[#allocation14 + $0x280] sm:$0xff]
    %v2378 = vld [vmem:[#allocation14 + $0x288] sm:$0xff]
    %v2379 = vld [vmem:[#allocation14 + $0x290] sm:$0xff]
    %v2380 = vld [vmem:[#allocation14 + $0x298] sm:$0xff]
    %v2381 = vld [vmem:[#allocation14 + $0x2a0] sm:$0xff]
    %v2382 = vld [vmem:[#allocation14 + $0x2a8] sm:$0xff]
    %v2383 = vld [vmem:[#allocation14 + $0x2b0] sm:$0xff]
    %v2384 = vld [vmem:[#allocation14 + $0x2b8] sm:$0xff]
    %v2385 = vld [vmem:[#allocation14 + $0x2c0] sm:$0xff]
    %v2386 = vld [vmem:[#allocation14 + $0x2c8] sm:$0xff]
    %v2387 = vld [vmem:[#allocation14 + $0x2d0] sm:$0xff]
    %v2388 = vld [vmem:[#allocation14 + $0x2d8] sm:$0xff]
    %v2389 = vld [vmem:[#allocation14 + $0x2e0] sm:$0xff]
    %v2390 = vld [vmem:[#allocation14 + $0x2e8] sm:$0xff]
    %v2391 = vld [vmem:[#allocation14 + $0x2f0] sm:$0xff]
    %v2392 = vld [vmem:[#allocation14 + $0x2f8] sm:$0xff]
    %v2393 = vld [vmem:[#allocation14 + $0x300] sm:$0xff]
    %v2394 = vld [vmem:[#allocation14 + $0x308] sm:$0xff]
    %v2395 = vld [vmem:[#allocation14 + $0x310] sm:$0xff]
    %v2396 = vld [vmem:[#allocation14 + $0x318] sm:$0xff]
    %v2397 = vld [vmem:[#allocation14 + $0x320] sm:$0xff]
    %v2398 = vld [vmem:[#allocation14 + $0x328] sm:$0xff]
    %v2399 = vld [vmem:[#allocation14 + $0x330] sm:$0xff]
    %v2400 = vld [vmem:[#allocation14 + $0x338] sm:$0xff]
    %v2401 = vld [vmem:[#allocation14 + $0x340] sm:$0xff]
    %v2402 = vld [vmem:[#allocation14 + $0x348] sm:$0xff]
    %v2403 = vld [vmem:[#allocation14 + $0x350] sm:$0xff]
    %v2404 = vld [vmem:[#allocation14 + $0x358] sm:$0xff]
    %v2405 = vld [vmem:[#allocation14 + $0x360] sm:$0xff]
    %v2406 = vld [vmem:[#allocation14 + $0x368] sm:$0xff]
    %v2407 = vld [vmem:[#allocation14 + $0x370] sm:$0xff]
    %v2408 = vld [vmem:[#allocation14 + $0x378] sm:$0xff]
    %v2409 = vld [vmem:[#allocation14 + $0x380] sm:$0xff]
    %v2410 = vld [vmem:[#allocation14 + $0x388] sm:$0xff]
    %v2411 = vld [vmem:[#allocation14 + $0x390] sm:$0xff]
    %v2412 = vld [vmem:[#allocation14 + $0x398] sm:$0xff]
    %v2413 = vld [vmem:[#allocation14 + $0x3a0] sm:$0xff]
    %v2414 = vld [vmem:[#allocation14 + $0x3a8] sm:$0xff]
    %v2415 = vld [vmem:[#allocation14 + $0x3b0] sm:$0xff]
    %v2416 = vld [vmem:[#allocation14 + $0x3b8] sm:$0xff]
    %v2417 = vld [vmem:[#allocation14 + $0x3c0] sm:$0xff]
    %v2418 = vld [vmem:[#allocation14 + $0x3c8] sm:$0xff]
    %v2419 = vld [vmem:[#allocation14 + $0x3d0] sm:$0xff]
    %v2420 = vld [vmem:[#allocation14 + $0x3d8] sm:$0xff]
    %v2421 = vld [vmem:[#allocation14 + $0x3e0] sm:$0xff]
    %v2422 = vld [vmem:[#allocation14 + $0x3e8] sm:$0xff]
    %v2423 = vld [vmem:[#allocation14 + $0x3f0] sm:$0xff]
    %v2424 = vld [vmem:[#allocation14 + $0x3f8] sm:$0xff]
    %v2425 = vld [vmem:[#allocation14 + $0x400] sm:$0xff]
    %v2426 = vld [vmem:[#allocation14 + $0x408] sm:$0xff]
    %v2427 = vld [vmem:[#allocation14 + $0x410] sm:$0xff]
    %v2428 = vld [vmem:[#allocation14 + $0x418] sm:$0xff]
    %v2429 = vld [vmem:[#allocation14 + $0x420] sm:$0xff]
    %v2430 = vld [vmem:[#allocation14 + $0x428] sm:$0xff]
    %v2431 = vld [vmem:[#allocation14 + $0x430] sm:$0xff]
    %v2432 = vld [vmem:[#allocation14 + $0x438] sm:$0xff]
    %v2433 = vld [vmem:[#allocation14 + $0x440] sm:$0xff]
    %v2434 = vld [vmem:[#allocation14 + $0x448] sm:$0xff]
    %v2435 = vld [vmem:[#allocation14 + $0x450] sm:$0xff]
    %v2436 = vld [vmem:[#allocation14 + $0x458] sm:$0xff]
    %v2437 = vld [vmem:[#allocation14 + $0x460] sm:$0xff]
    %v2438 = vld [vmem:[#allocation14 + $0x468] sm:$0xff]
    %v2439 = vld [vmem:[#allocation14 + $0x470] sm:$0xff]
    %v2440 = vld [vmem:[#allocation14 + $0x478] sm:$0xff]
    %v2441 = vld [vmem:[#allocation14 + $0x480] sm:$0xff]
    %v2442 = vld [vmem:[#allocation14 + $0x488] sm:$0xff]
    %v2443 = vld [vmem:[#allocation14 + $0x490] sm:$0xff]
    %v2444 = vld [vmem:[#allocation14 + $0x498] sm:$0xff]
    %v2445 = vld [vmem:[#allocation14 + $0x4a0] sm:$0xff]
    %v2446 = vld [vmem:[#allocation14 + $0x4a8] sm:$0xff]
    %v2447 = vld [vmem:[#allocation14 + $0x4b0] sm:$0xff]
    %v2448 = vld [vmem:[#allocation14 + $0x4b8] sm:$0xff]
    %v2449 = vld [vmem:[#allocation14 + $0x4c0] sm:$0xff]
    %v2450 = vld [vmem:[#allocation14 + $0x4c8] sm:$0xff]
    %v2451 = vld [vmem:[#allocation14 + $0x4d0] sm:$0xff]
    %v2452 = vld [vmem:[#allocation14 + $0x4d8] sm:$0xff]
    %v2453 = vld [vmem:[#allocation14 + $0x4e0] sm:$0xff]
    %v2454 = vld [vmem:[#allocation14 + $0x4e8] sm:$0xff]
    %v2455 = vld [vmem:[#allocation14 + $0x4f0] sm:$0xff]
    %v2456 = vld [vmem:[#allocation14 + $0x4f8] sm:$0xff]
    %v2457 = vld [vmem:[#allocation14 + $0x500] sm:$0xff]
    %v2458 = vld [vmem:[#allocation14 + $0x508] sm:$0xff]
    %v2459 = vld [vmem:[#allocation14 + $0x510] sm:$0xff]
    %v2460 = vld [vmem:[#allocation14 + $0x518] sm:$0xff]
    %v2461 = vld [vmem:[#allocation14 + $0x520] sm:$0xff]
    %v2462 = vld [vmem:[#allocation14 + $0x528] sm:$0xff]
    %v2463 = vld [vmem:[#allocation14 + $0x530] sm:$0xff]
    %v2464 = vld [vmem:[#allocation14 + $0x538] sm:$0xff]
    %v2465 = vld [vmem:[#allocation14 + $0x540] sm:$0xff]
    %v2466 = vld [vmem:[#allocation14 + $0x548] sm:$0xff]
    %v2467 = vld [vmem:[#allocation14 + $0x550] sm:$0xff]
    %v2468 = vld [vmem:[#allocation14 + $0x558] sm:$0xff]
    %v2469 = vld [vmem:[#allocation14 + $0x560] sm:$0xff]
    %v2470 = vld [vmem:[#allocation14 + $0x568] sm:$0xff]
    %v2471 = vld [vmem:[#allocation14 + $0x570] sm:$0xff]
    %v2472 = vld [vmem:[#allocation14 + $0x578] sm:$0xff]
    %v2473 = vld [vmem:[#allocation14 + $0x580] sm:$0xff]
    %v2474 = vld [vmem:[#allocation14 + $0x588] sm:$0xff]
    %v2475 = vld [vmem:[#allocation14 + $0x590] sm:$0xff]
    %v2476 = vld [vmem:[#allocation14 + $0x598] sm:$0xff]
    %v2477 = vld [vmem:[#allocation14 + $0x5a0] sm:$0xff]
    %v2478 = vld [vmem:[#allocation14 + $0x5a8] sm:$0xff]
    %v2479 = vld [vmem:[#allocation14 + $0x5b0] sm:$0xff]
    %v2480 = vld [vmem:[#allocation14 + $0x5b8] sm:$0xff]
    %v2481 = vld [vmem:[#allocation14 + $0x5c0] sm:$0xff]
    %v2482 = vld [vmem:[#allocation14 + $0x5c8] sm:$0xff]
    %v2483 = vld [vmem:[#allocation14 + $0x5d0] sm:$0xff]
    %v2484 = vld [vmem:[#allocation14 + $0x5d8] sm:$0xff]
    %v2485 = vld [vmem:[#allocation14 + $0x5e0] sm:$0xff]
    %v2486 = vld [vmem:[#allocation14 + $0x5e8] sm:$0xff]
    %v2487 = vld [vmem:[#allocation14 + $0x5f0] sm:$0xff]
    %v2488 = vld [vmem:[#allocation14 + $0x5f8] sm:$0xff]
    %v2489 = vld [vmem:[#allocation14 + $0x600] sm:$0xff]
    %v2490 = vld [vmem:[#allocation14 + $0x608] sm:$0xff]
    %v2491 = vld [vmem:[#allocation14 + $0x610] sm:$0xff]
    %v2492 = vld [vmem:[#allocation14 + $0x618] sm:$0xff]
    %v2493 = vld [vmem:[#allocation14 + $0x620] sm:$0xff]
    %v2494 = vld [vmem:[#allocation14 + $0x628] sm:$0xff]
    %v2495 = vld [vmem:[#allocation14 + $0x630] sm:$0xff]
    %v2496 = vld [vmem:[#allocation14 + $0x638] sm:$0xff]
    %v2497 = vld [vmem:[#allocation14 + $0x640] sm:$0xff]
    %v2498 = vld [vmem:[#allocation14 + $0x648] sm:$0xff]
    %v2499 = vld [vmem:[#allocation14 + $0x650] sm:$0xff]
    %v2500 = vld [vmem:[#allocation14 + $0x658] sm:$0xff]
    %v2501 = vld [vmem:[#allocation14 + $0x660] sm:$0xff]
    %v2502 = vld [vmem:[#allocation14 + $0x668] sm:$0xff]
    %v2503 = vld [vmem:[#allocation14 + $0x670] sm:$0xff]
    %v2504 = vld [vmem:[#allocation14 + $0x678] sm:$0xff]
    %v2505 = vld [vmem:[#allocation14 + $0x680] sm:$0xff]
    %v2506 = vld [vmem:[#allocation14 + $0x688] sm:$0xff]
    %v2507 = vld [vmem:[#allocation14 + $0x690] sm:$0xff]
    %v2508 = vld [vmem:[#allocation14 + $0x698] sm:$0xff]
    %v2509 = vld [vmem:[#allocation14 + $0x6a0] sm:$0xff]
    %v2510 = vld [vmem:[#allocation14 + $0x6a8] sm:$0xff]
    %v2511 = vld [vmem:[#allocation14 + $0x6b0] sm:$0xff]
    %v2512 = vld [vmem:[#allocation14 + $0x6b8] sm:$0xff]
    %v2513 = vld [vmem:[#allocation14 + $0x6c0] sm:$0xff]
    %v2514 = vld [vmem:[#allocation14 + $0x6c8] sm:$0xff]
    %v2515 = vld [vmem:[#allocation14 + $0x6d0] sm:$0xff]
    %v2516 = vld [vmem:[#allocation14 + $0x6d8] sm:$0xff]
    %v2517 = vld [vmem:[#allocation14 + $0x6e0] sm:$0xff]
    %v2518 = vld [vmem:[#allocation14 + $0x6e8] sm:$0xff]
    %v2519 = vld [vmem:[#allocation14 + $0x6f0] sm:$0xff]
    %v2520 = vld [vmem:[#allocation14 + $0x6f8] sm:$0xff]
    %v2521 = vld [vmem:[#allocation14 + $0x700] sm:$0xff]
    %v2522 = vld [vmem:[#allocation14 + $0x708] sm:$0xff]
    %v2523 = vld [vmem:[#allocation14 + $0x710] sm:$0xff]
    %v2524 = vld [vmem:[#allocation14 + $0x718] sm:$0xff]
    %v2525 = vld [vmem:[#allocation14 + $0x720] sm:$0xff]
    %v2526 = vld [vmem:[#allocation14 + $0x728] sm:$0xff]
    %v2527 = vld [vmem:[#allocation14 + $0x730] sm:$0xff]
    %v2528 = vld [vmem:[#allocation14 + $0x738] sm:$0xff]
    %v2529 = vld [vmem:[#allocation14 + $0x740] sm:$0xff]
    %v2530 = vld [vmem:[#allocation14 + $0x748] sm:$0xff]
    %v2531 = vld [vmem:[#allocation14 + $0x750] sm:$0xff]
    %v2532 = vld [vmem:[#allocation14 + $0x758] sm:$0xff]
    %v2533 = vld [vmem:[#allocation14 + $0x760] sm:$0xff]
    %v2534 = vld [vmem:[#allocation14 + $0x768] sm:$0xff]
    %v2535 = vld [vmem:[#allocation14 + $0x770] sm:$0xff]
    %v2536 = vld [vmem:[#allocation14 + $0x778] sm:$0xff]
    %v2537 = vld [vmem:[#allocation14 + $0x780] sm:$0xff]
    %v2538 = vld [vmem:[#allocation14 + $0x788] sm:$0xff]
    %v2539 = vld [vmem:[#allocation14 + $0x790] sm:$0xff]
    %v2540 = vld [vmem:[#allocation14 + $0x798] sm:$0xff]
    %v2541 = vld [vmem:[#allocation14 + $0x7a0] sm:$0xff]
    %v2542 = vld [vmem:[#allocation14 + $0x7a8] sm:$0xff]
    %v2543 = vld [vmem:[#allocation14 + $0x7b0] sm:$0xff]
    %v2544 = vld [vmem:[#allocation14 + $0x7b8] sm:$0xff]
    %v2545 = vld [vmem:[#allocation14 + $0x7c0] sm:$0xff]
    %v2546 = vld [vmem:[#allocation14 + $0x7c8] sm:$0xff]
    %v2547 = vld [vmem:[#allocation14 + $0x7d0] sm:$0xff]
    %v2548 = vld [vmem:[#allocation14 + $0x7d8] sm:$0xff]
    %v2549 = vld [vmem:[#allocation14 + $0x7e0] sm:$0xff]
    %v2550 = vld [vmem:[#allocation14 + $0x7e8] sm:$0xff]
    %v2551 = vld [vmem:[#allocation14 + $0x7f0] sm:$0xff]
    %v2552 = vld [vmem:[#allocation14 + $0x7f8] sm:$0xff]
    %v2553 = vld [vmem:[#allocation14 + $0x800] sm:$0xff]
    %v2554 = vld [vmem:[#allocation14 + $0x808] sm:$0xff]
    %v2555 = vld [vmem:[#allocation14 + $0x810] sm:$0xff]
    %v2556 = vld [vmem:[#allocation14 + $0x818] sm:$0xff]
    %v2557 = vld [vmem:[#allocation14 + $0x820] sm:$0xff]
    %v2558 = vld [vmem:[#allocation14 + $0x828] sm:$0xff]
    %v2559 = vld [vmem:[#allocation14 + $0x830] sm:$0xff]
    %v2560 = vld [vmem:[#allocation14 + $0x838] sm:$0xff]
    %v2561 = vld [vmem:[#allocation14 + $0x840] sm:$0xff]
    %v2562 = vld [vmem:[#allocation14 + $0x848] sm:$0xff]
    %v2563 = vld [vmem:[#allocation14 + $0x850] sm:$0xff]
    %v2564 = vld [vmem:[#allocation14 + $0x858] sm:$0xff]
    %v2565 = vld [vmem:[#allocation14 + $0x860] sm:$0xff]
    %v2566 = vld [vmem:[#allocation14 + $0x868] sm:$0xff]
    %v2567 = vld [vmem:[#allocation14 + $0x870] sm:$0xff]
    %v2568 = vld [vmem:[#allocation14 + $0x878] sm:$0xff]
    %v2569 = vld [vmem:[#allocation14 + $0x880] sm:$0xff]
    %v2570 = vld [vmem:[#allocation14 + $0x888] sm:$0xff]
    %v2571 = vld [vmem:[#allocation14 + $0x890] sm:$0xff]
    %v2572 = vld [vmem:[#allocation14 + $0x898] sm:$0xff]
    %v2573 = vld [vmem:[#allocation14 + $0x8a0] sm:$0xff]
    %v2574 = vld [vmem:[#allocation14 + $0x8a8] sm:$0xff]
    %v2575 = vld [vmem:[#allocation14 + $0x8b0] sm:$0xff]
    %v2576 = vld [vmem:[#allocation14 + $0x8b8] sm:$0xff]
    %v2577 = vld [vmem:[#allocation14 + $0x8c0] sm:$0xff]
    %v2578 = vld [vmem:[#allocation14 + $0x8c8] sm:$0xff]
    %v2579 = vld [vmem:[#allocation14 + $0x8d0] sm:$0xff]
    %v2580 = vld [vmem:[#allocation14 + $0x8d8] sm:$0xff]
    %v2581 = vld [vmem:[#allocation14 + $0x8e0] sm:$0xff]
    %v2582 = vld [vmem:[#allocation14 + $0x8e8] sm:$0xff]
    %v2583 = vld [vmem:[#allocation14 + $0x8f0] sm:$0xff]
    %v2584 = vld [vmem:[#allocation14 + $0x8f8] sm:$0xff]
    %v2585 = vld [vmem:[#allocation16] sm:$0x3f]
    %v2587 = vperm.slane %v2585, 0
    %v2588 = vperm.slane %v2585, 1
    %v2589 = vperm.slane %v2585, 2
    %v2590 = vperm.slane %v2585, 3
    %v2591 = vperm.slane %v2585, 4
    %v2592 = vperm.slane %v2585, 5
    %v2887 = vunpack.c.l.b16 %v2297
    %v2888 = vunpack.c.h.b16 %v2297
    %v2889 = vunpack.c.l.b16 %v2298
    %v2890 = vunpack.c.h.b16 %v2298
    %v2891 = vunpack.c.l.b16 %v2299
    %v2892 = vunpack.c.h.b16 %v2299
    %v2893 = vunpack.c.l.b16 %v2300
    %v2894 = vunpack.c.h.b16 %v2300
    %v2895 = vunpack.c.l.b16 %v2301
    %v2896 = vunpack.c.h.b16 %v2301
    %v2897 = vunpack.c.l.b16 %v2302
    %v2898 = vunpack.c.h.b16 %v2302
    %v2899 = vunpack.c.l.b16 %v2303
    %v2900 = vunpack.c.h.b16 %v2303
    %v2901 = vunpack.c.l.b16 %v2304
    %v2902 = vunpack.c.h.b16 %v2304
    %v2903 = vunpack.c.l.b16 %v2305
    %v2904 = vunpack.c.h.b16 %v2305
    %v2905 = vunpack.c.l.b16 %v2306
    %v2906 = vunpack.c.h.b16 %v2306
    %v2907 = vunpack.c.l.b16 %v2307
    %v2908 = vunpack.c.h.b16 %v2307
    %v2909 = vunpack.c.l.b16 %v2308
    %v2910 = vunpack.c.h.b16 %v2308
    %v2911 = vunpack.c.l.b16 %v2309
    %v2912 = vunpack.c.h.b16 %v2309
    %v2913 = vunpack.c.l.b16 %v2310
    %v2914 = vunpack.c.h.b16 %v2310
    %v2915 = vunpack.c.l.b16 %v2311
    %v2916 = vunpack.c.h.b16 %v2311
    %v2917 = vunpack.c.l.b16 %v2312
    %v2918 = vunpack.c.h.b16 %v2312
    %v2919 = vunpack.c.l.b16 %v2313
    %v2920 = vunpack.c.h.b16 %v2313
    %v2921 = vunpack.c.l.b16 %v2314
    %v2922 = vunpack.c.h.b16 %v2314
    %v2923 = vunpack.c.l.b16 %v2315
    %v2924 = vunpack.c.h.b16 %v2315
    %v2925 = vunpack.c.l.b16 %v2316
    %v2926 = vunpack.c.h.b16 %v2316
    %v2927 = vunpack.c.l.b16 %v2317
    %v2928 = vunpack.c.h.b16 %v2317
    %v2929 = vunpack.c.l.b16 %v2318
    %v2930 = vunpack.c.h.b16 %v2318
    %v2931 = vunpack.c.l.b16 %v2319
    %v2932 = vunpack.c.h.b16 %v2319
    %v2933 = vunpack.c.l.b16 %v2320
    %v2934 = vunpack.c.h.b16 %v2320
    %v2935 = vunpack.c.l.b16 %v2321
    %v2936 = vunpack.c.h.b16 %v2321
    %v2937 = vunpack.c.l.b16 %v2322
    %v2938 = vunpack.c.h.b16 %v2322
    %v2939 = vunpack.c.l.b16 %v2323
    %v2940 = vunpack.c.h.b16 %v2323
    %v2941 = vunpack.c.l.b16 %v2324
    %v2942 = vunpack.c.h.b16 %v2324
    %v2943 = vunpack.c.l.b16 %v2325
    %v2944 = vunpack.c.h.b16 %v2325
    %v2945 = vunpack.c.l.b16 %v2326
    %v2946 = vunpack.c.h.b16 %v2326
    %v2947 = vunpack.c.l.b16 %v2327
    %v2948 = vunpack.c.h.b16 %v2327
    %v2949 = vunpack.c.l.b16 %v2328
    %v2950 = vunpack.c.h.b16 %v2328
    %v2951 = vunpack.c.l.b16 %v2329
    %v2952 = vunpack.c.h.b16 %v2329
    %v2953 = vunpack.c.l.b16 %v2330
    %v2954 = vunpack.c.h.b16 %v2330
    %v2955 = vunpack.c.l.b16 %v2331
    %v2956 = vunpack.c.h.b16 %v2331
    %v2957 = vunpack.c.l.b16 %v2332
    %v2958 = vunpack.c.h.b16 %v2332
    %v2959 = vunpack.c.l.b16 %v2333
    %v2960 = vunpack.c.h.b16 %v2333
    %v2961 = vunpack.c.l.b16 %v2334
    %v2962 = vunpack.c.h.b16 %v2334
    %v2963 = vunpack.c.l.b16 %v2335
    %v2964 = vunpack.c.h.b16 %v2335
    %v2965 = vunpack.c.l.b16 %v2336
    %v2966 = vunpack.c.h.b16 %v2336
    %v2967 = vunpack.c.l.b16 %v2337
    %v2968 = vunpack.c.h.b16 %v2337
    %v2969 = vunpack.c.l.b16 %v2338
    %v2970 = vunpack.c.h.b16 %v2338
    %v2971 = vunpack.c.l.b16 %v2339
    %v2972 = vunpack.c.h.b16 %v2339
    %v2973 = vunpack.c.l.b16 %v2340
    %v2974 = vunpack.c.h.b16 %v2340
    %v2975 = vunpack.c.l.b16 %v2341
    %v2976 = vunpack.c.h.b16 %v2341
    %v2977 = vunpack.c.l.b16 %v2342
    %v2978 = vunpack.c.h.b16 %v2342
    %v2979 = vunpack.c.l.b16 %v2343
    %v2980 = vunpack.c.h.b16 %v2343
    %v2981 = vunpack.c.l.b16 %v2344
    %v2982 = vunpack.c.h.b16 %v2344
    %v2983 = vunpack.c.l.b16 %v2345
    %v2984 = vunpack.c.h.b16 %v2345
    %v2985 = vunpack.c.l.b16 %v2346
    %v2986 = vunpack.c.h.b16 %v2346
    %v2987 = vunpack.c.l.b16 %v2347
    %v2988 = vunpack.c.h.b16 %v2347
    %v2989 = vunpack.c.l.b16 %v2348
    %v2990 = vunpack.c.h.b16 %v2348
    %v2991 = vunpack.c.l.b16 %v2349
    %v2992 = vunpack.c.h.b16 %v2349
    %v2993 = vunpack.c.l.b16 %v2350
    %v2994 = vunpack.c.h.b16 %v2350
    %v2995 = vunpack.c.l.b16 %v2351
    %v2996 = vunpack.c.h.b16 %v2351
    %v2997 = vunpack.c.l.b16 %v2352
    %v2998 = vunpack.c.h.b16 %v2352
    %v2999 = vunpack.c.l.b16 %v2353
    %v3000 = vunpack.c.h.b16 %v2353
    %v3001 = vunpack.c.l.b16 %v2354
    %v3002 = vunpack.c.h.b16 %v2354
    %v3003 = vunpack.c.l.b16 %v2355
    %v3004 = vunpack.c.h.b16 %v2355
    %v3005 = vunpack.c.l.b16 %v2356
    %v3006 = vunpack.c.h.b16 %v2356
    %v3007 = vunpack.c.l.b16 %v2357
    %v3008 = vunpack.c.h.b16 %v2357
    %v3009 = vunpack.c.l.b16 %v2358
    %v3010 = vunpack.c.h.b16 %v2358
    %v3011 = vunpack.c.l.b16 %v2359
    %v3012 = vunpack.c.h.b16 %v2359
    %v3013 = vunpack.c.l.b16 %v2360
    %v3014 = vunpack.c.h.b16 %v2360
    %v3015 = vunpack.c.l.b16 %v2361
    %v3016 = vunpack.c.h.b16 %v2361
    %v3017 = vunpack.c.l.b16 %v2362
    %v3018 = vunpack.c.h.b16 %v2362
    %v3019 = vunpack.c.l.b16 %v2363
    %v3020 = vunpack.c.h.b16 %v2363
    %v3021 = vunpack.c.l.b16 %v2364
    %v3022 = vunpack.c.h.b16 %v2364
    %v3023 = vunpack.c.l.b16 %v2365
    %v3024 = vunpack.c.h.b16 %v2365
    %v3025 = vunpack.c.l.b16 %v2366
    %v3026 = vunpack.c.h.b16 %v2366
    %v3027 = vunpack.c.l.b16 %v2367
    %v3028 = vunpack.c.h.b16 %v2367
    %v3029 = vunpack.c.l.b16 %v2368
    %v3030 = vunpack.c.h.b16 %v2368
    %v3031 = vunpack.c.l.b16 %v2369
    %v3032 = vunpack.c.h.b16 %v2369
    %v3033 = vunpack.c.l.b16 %v2370
    %v3034 = vunpack.c.h.b16 %v2370
    %v3035 = vunpack.c.l.b16 %v2371
    %v3036 = vunpack.c.h.b16 %v2371
    %v3037 = vunpack.c.l.b16 %v2372
    %v3038 = vunpack.c.h.b16 %v2372
    %v3039 = vunpack.c.l.b16 %v2373
    %v3040 = vunpack.c.h.b16 %v2373
    %v3041 = vunpack.c.l.b16 %v2374
    %v3042 = vunpack.c.h.b16 %v2374
    %v3043 = vunpack.c.l.b16 %v2375
    %v3044 = vunpack.c.h.b16 %v2375
    %v3045 = vunpack.c.l.b16 %v2376
    %v3046 = vunpack.c.h.b16 %v2376
    %v3047 = vunpack.c.l.b16 %v2377
    %v3048 = vunpack.c.h.b16 %v2377
    %v3049 = vunpack.c.l.b16 %v2378
    %v3050 = vunpack.c.h.b16 %v2378
    %v3051 = vunpack.c.l.b16 %v2379
    %v3052 = vunpack.c.h.b16 %v2379
    %v3053 = vunpack.c.l.b16 %v2380
    %v3054 = vunpack.c.h.b16 %v2380
    %v3055 = vunpack.c.l.b16 %v2381
    %v3056 = vunpack.c.h.b16 %v2381
    %v3057 = vunpack.c.l.b16 %v2382
    %v3058 = vunpack.c.h.b16 %v2382
    %v3059 = vunpack.c.l.b16 %v2383
    %v3060 = vunpack.c.h.b16 %v2383
    %v3061 = vunpack.c.l.b16 %v2384
    %v3062 = vunpack.c.h.b16 %v2384
    %v3063 = vunpack.c.l.b16 %v2385
    %v3064 = vunpack.c.h.b16 %v2385
    %v3065 = vunpack.c.l.b16 %v2386
    %v3066 = vunpack.c.h.b16 %v2386
    %v3067 = vunpack.c.l.b16 %v2387
    %v3068 = vunpack.c.h.b16 %v2387
    %v3069 = vunpack.c.l.b16 %v2388
    %v3070 = vunpack.c.h.b16 %v2388
    %v3071 = vunpack.c.l.b16 %v2389
    %v3072 = vunpack.c.h.b16 %v2389
    %v3073 = vunpack.c.l.b16 %v2390
    %v3074 = vunpack.c.h.b16 %v2390
    %v3075 = vunpack.c.l.b16 %v2391
    %v3076 = vunpack.c.h.b16 %v2391
    %v3077 = vunpack.c.l.b16 %v2392
    %v3078 = vunpack.c.h.b16 %v2392
    %v3079 = vunpack.c.l.b16 %v2393
    %v3080 = vunpack.c.h.b16 %v2393
    %v3081 = vunpack.c.l.b16 %v2394
    %v3082 = vunpack.c.h.b16 %v2394
    %v3083 = vunpack.c.l.b16 %v2395
    %v3084 = vunpack.c.h.b16 %v2395
    %v3085 = vunpack.c.l.b16 %v2396
    %v3086 = vunpack.c.h.b16 %v2396
    %v3087 = vunpack.c.l.b16 %v2397
    %v3088 = vunpack.c.h.b16 %v2397
    %v3089 = vunpack.c.l.b16 %v2398
    %v3090 = vunpack.c.h.b16 %v2398
    %v3091 = vunpack.c.l.b16 %v2399
    %v3092 = vunpack.c.h.b16 %v2399
    %v3093 = vunpack.c.l.b16 %v2400
    %v3094 = vunpack.c.h.b16 %v2400
    %v3095 = vunpack.c.l.b16 %v2401
    %v3096 = vunpack.c.h.b16 %v2401
    %v3097 = vunpack.c.l.b16 %v2402
    %v3098 = vunpack.c.h.b16 %v2402
    %v3099 = vunpack.c.l.b16 %v2403
    %v3100 = vunpack.c.h.b16 %v2403
    %v3101 = vunpack.c.l.b16 %v2404
    %v3102 = vunpack.c.h.b16 %v2404
    %v3103 = vunpack.c.l.b16 %v2405
    %v3104 = vunpack.c.h.b16 %v2405
    %v3105 = vunpack.c.l.b16 %v2406
    %v3106 = vunpack.c.h.b16 %v2406
    %v3107 = vunpack.c.l.b16 %v2407
    %v3108 = vunpack.c.h.b16 %v2407
    %v3109 = vunpack.c.l.b16 %v2408
    %v3110 = vunpack.c.h.b16 %v2408
    %v3111 = vunpack.c.l.b16 %v2409
    %v3112 = vunpack.c.h.b16 %v2409
    %v3113 = vunpack.c.l.b16 %v2410
    %v3114 = vunpack.c.h.b16 %v2410
    %v3115 = vunpack.c.l.b16 %v2411
    %v3116 = vunpack.c.h.b16 %v2411
    %v3117 = vunpack.c.l.b16 %v2412
    %v3118 = vunpack.c.h.b16 %v2412
    %v3119 = vunpack.c.l.b16 %v2413
    %v3120 = vunpack.c.h.b16 %v2413
    %v3121 = vunpack.c.l.b16 %v2414
    %v3122 = vunpack.c.h.b16 %v2414
    %v3123 = vunpack.c.l.b16 %v2415
    %v3124 = vunpack.c.h.b16 %v2415
    %v3125 = vunpack.c.l.b16 %v2416
    %v3126 = vunpack.c.h.b16 %v2416
    %v3127 = vunpack.c.l.b16 %v2417
    %v3128 = vunpack.c.h.b16 %v2417
    %v3129 = vunpack.c.l.b16 %v2418
    %v3130 = vunpack.c.h.b16 %v2418
    %v3131 = vunpack.c.l.b16 %v2419
    %v3132 = vunpack.c.h.b16 %v2419
    %v3133 = vunpack.c.l.b16 %v2420
    %v3134 = vunpack.c.h.b16 %v2420
    %v3135 = vunpack.c.l.b16 %v2421
    %v3136 = vunpack.c.h.b16 %v2421
    %v3137 = vunpack.c.l.b16 %v2422
    %v3138 = vunpack.c.h.b16 %v2422
    %v3139 = vunpack.c.l.b16 %v2423
    %v3140 = vunpack.c.h.b16 %v2423
    %v3141 = vunpack.c.l.b16 %v2424
    %v3142 = vunpack.c.h.b16 %v2424
    %v3143 = vunpack.c.l.b16 %v2425
    %v3144 = vunpack.c.h.b16 %v2425
    %v3145 = vunpack.c.l.b16 %v2426
    %v3146 = vunpack.c.h.b16 %v2426
    %v3147 = vunpack.c.l.b16 %v2427
    %v3148 = vunpack.c.h.b16 %v2427
    %v3149 = vunpack.c.l.b16 %v2428
    %v3150 = vunpack.c.h.b16 %v2428
    %v3151 = vunpack.c.l.b16 %v2429
    %v3152 = vunpack.c.h.b16 %v2429
    %v3153 = vunpack.c.l.b16 %v2430
    %v3154 = vunpack.c.h.b16 %v2430
    %v3155 = vunpack.c.l.b16 %v2431
    %v3156 = vunpack.c.h.b16 %v2431
    %v3157 = vunpack.c.l.b16 %v2432
    %v3158 = vunpack.c.h.b16 %v2432
    %v3159 = vunpack.c.l.b16 %v2433
    %v3160 = vunpack.c.h.b16 %v2433
    %v3161 = vunpack.c.l.b16 %v2434
    %v3162 = vunpack.c.h.b16 %v2434
    %v3163 = vunpack.c.l.b16 %v2435
    %v3164 = vunpack.c.h.b16 %v2435
    %v3165 = vunpack.c.l.b16 %v2436
    %v3166 = vunpack.c.h.b16 %v2436
    %v3167 = vunpack.c.l.b16 %v2437
    %v3168 = vunpack.c.h.b16 %v2437
    %v3169 = vunpack.c.l.b16 %v2438
    %v3170 = vunpack.c.h.b16 %v2438
    %v3171 = vunpack.c.l.b16 %v2439
    %v3172 = vunpack.c.h.b16 %v2439
    %v3173 = vunpack.c.l.b16 %v2440
    %v3174 = vunpack.c.h.b16 %v2440
    %v3175 = vunpack.c.l.b16 %v2441
    %v3176 = vunpack.c.h.b16 %v2441
    %v3177 = vunpack.c.l.b16 %v2442
    %v3178 = vunpack.c.h.b16 %v2442
    %v3179 = vunpack.c.l.b16 %v2443
    %v3180 = vunpack.c.h.b16 %v2443
    %v3181 = vunpack.c.l.b16 %v2444
    %v3182 = vunpack.c.h.b16 %v2444
    %v3183 = vunpack.c.l.b16 %v2445
    %v3184 = vunpack.c.h.b16 %v2445
    %v3185 = vunpack.c.l.b16 %v2446
    %v3186 = vunpack.c.h.b16 %v2446
    %v3187 = vunpack.c.l.b16 %v2447
    %v3188 = vunpack.c.h.b16 %v2447
    %v3189 = vunpack.c.l.b16 %v2448
    %v3190 = vunpack.c.h.b16 %v2448
    %v3191 = vunpack.c.l.b16 %v2449
    %v3192 = vunpack.c.h.b16 %v2449
    %v3193 = vunpack.c.l.b16 %v2450
    %v3194 = vunpack.c.h.b16 %v2450
    %v3195 = vunpack.c.l.b16 %v2451
    %v3196 = vunpack.c.h.b16 %v2451
    %v3197 = vunpack.c.l.b16 %v2452
    %v3198 = vunpack.c.h.b16 %v2452
    %v3199 = vunpack.c.l.b16 %v2453
    %v3200 = vunpack.c.h.b16 %v2453
    %v3201 = vunpack.c.l.b16 %v2454
    %v3202 = vunpack.c.h.b16 %v2454
    %v3203 = vunpack.c.l.b16 %v2455
    %v3204 = vunpack.c.h.b16 %v2455
    %v3205 = vunpack.c.l.b16 %v2456
    %v3206 = vunpack.c.h.b16 %v2456
    %v3207 = vunpack.c.l.b16 %v2457
    %v3208 = vunpack.c.h.b16 %v2457
    %v3209 = vunpack.c.l.b16 %v2458
    %v3210 = vunpack.c.h.b16 %v2458
    %v3211 = vunpack.c.l.b16 %v2459
    %v3212 = vunpack.c.h.b16 %v2459
    %v3213 = vunpack.c.l.b16 %v2460
    %v3214 = vunpack.c.h.b16 %v2460
    %v3215 = vunpack.c.l.b16 %v2461
    %v3216 = vunpack.c.h.b16 %v2461
    %v3217 = vunpack.c.l.b16 %v2462
    %v3218 = vunpack.c.h.b16 %v2462
    %v3219 = vunpack.c.l.b16 %v2463
    %v3220 = vunpack.c.h.b16 %v2463
    %v3221 = vunpack.c.l.b16 %v2464
    %v3222 = vunpack.c.h.b16 %v2464
    %v3223 = vunpack.c.l.b16 %v2465
    %v3224 = vunpack.c.h.b16 %v2465
    %v3225 = vunpack.c.l.b16 %v2466
    %v3226 = vunpack.c.h.b16 %v2466
    %v3227 = vunpack.c.l.b16 %v2467
    %v3228 = vunpack.c.h.b16 %v2467
    %v3229 = vunpack.c.l.b16 %v2468
    %v3230 = vunpack.c.h.b16 %v2468
    %v3231 = vunpack.c.l.b16 %v2469
    %v3232 = vunpack.c.h.b16 %v2469
    %v3233 = vunpack.c.l.b16 %v2470
    %v3234 = vunpack.c.h.b16 %v2470
    %v3235 = vunpack.c.l.b16 %v2471
    %v3236 = vunpack.c.h.b16 %v2471
    %v3237 = vunpack.c.l.b16 %v2472
    %v3238 = vunpack.c.h.b16 %v2472
    %v3239 = vunpack.c.l.b16 %v2473
    %v3240 = vunpack.c.h.b16 %v2473
    %v3241 = vunpack.c.l.b16 %v2474
    %v3242 = vunpack.c.h.b16 %v2474
    %v3243 = vunpack.c.l.b16 %v2475
    %v3244 = vunpack.c.h.b16 %v2475
    %v3245 = vunpack.c.l.b16 %v2476
    %v3246 = vunpack.c.h.b16 %v2476
    %v3247 = vunpack.c.l.b16 %v2477
    %v3248 = vunpack.c.h.b16 %v2477
    %v3249 = vunpack.c.l.b16 %v2478
    %v3250 = vunpack.c.h.b16 %v2478
    %v3251 = vunpack.c.l.b16 %v2479
    %v3252 = vunpack.c.h.b16 %v2479
    %v3253 = vunpack.c.l.b16 %v2480
    %v3254 = vunpack.c.h.b16 %v2480
    %v3255 = vunpack.c.l.b16 %v2481
    %v3256 = vunpack.c.h.b16 %v2481
    %v3257 = vunpack.c.l.b16 %v2482
    %v3258 = vunpack.c.h.b16 %v2482
    %v3259 = vunpack.c.l.b16 %v2483
    %v3260 = vunpack.c.h.b16 %v2483
    %v3261 = vunpack.c.l.b16 %v2484
    %v3262 = vunpack.c.h.b16 %v2484
    %v3263 = vunpack.c.l.b16 %v2485
    %v3264 = vunpack.c.h.b16 %v2485
    %v3265 = vunpack.c.l.b16 %v2486
    %v3266 = vunpack.c.h.b16 %v2486
    %v3267 = vunpack.c.l.b16 %v2487
    %v3268 = vunpack.c.h.b16 %v2487
    %v3269 = vunpack.c.l.b16 %v2488
    %v3270 = vunpack.c.h.b16 %v2488
    %v3271 = vunpack.c.l.b16 %v2489
    %v3272 = vunpack.c.h.b16 %v2489
    %v3273 = vunpack.c.l.b16 %v2490
    %v3274 = vunpack.c.h.b16 %v2490
    %v3275 = vunpack.c.l.b16 %v2491
    %v3276 = vunpack.c.h.b16 %v2491
    %v3277 = vunpack.c.l.b16 %v2492
    %v3278 = vunpack.c.h.b16 %v2492
    %v3279 = vunpack.c.l.b16 %v2493
    %v3280 = vunpack.c.h.b16 %v2493
    %v3281 = vunpack.c.l.b16 %v2494
    %v3282 = vunpack.c.h.b16 %v2494
    %v3283 = vunpack.c.l.b16 %v2495
    %v3284 = vunpack.c.h.b16 %v2495
    %v3285 = vunpack.c.l.b16 %v2496
    %v3286 = vunpack.c.h.b16 %v2496
    %v3287 = vunpack.c.l.b16 %v2497
    %v3288 = vunpack.c.h.b16 %v2497
    %v3289 = vunpack.c.l.b16 %v2498
    %v3290 = vunpack.c.h.b16 %v2498
    %v3291 = vunpack.c.l.b16 %v2499
    %v3292 = vunpack.c.h.b16 %v2499
    %v3293 = vunpack.c.l.b16 %v2500
    %v3294 = vunpack.c.h.b16 %v2500
    %v3295 = vunpack.c.l.b16 %v2501
    %v3296 = vunpack.c.h.b16 %v2501
    %v3297 = vunpack.c.l.b16 %v2502
    %v3298 = vunpack.c.h.b16 %v2502
    %v3299 = vunpack.c.l.b16 %v2503
    %v3300 = vunpack.c.h.b16 %v2503
    %v3301 = vunpack.c.l.b16 %v2504
    %v3302 = vunpack.c.h.b16 %v2504
    %v3303 = vunpack.c.l.b16 %v2505
    %v3304 = vunpack.c.h.b16 %v2505
    %v3305 = vunpack.c.l.b16 %v2506
    %v3306 = vunpack.c.h.b16 %v2506
    %v3307 = vunpack.c.l.b16 %v2507
    %v3308 = vunpack.c.h.b16 %v2507
    %v3309 = vunpack.c.l.b16 %v2508
    %v3310 = vunpack.c.h.b16 %v2508
    %v3311 = vunpack.c.l.b16 %v2509
    %v3312 = vunpack.c.h.b16 %v2509
    %v3313 = vunpack.c.l.b16 %v2510
    %v3314 = vunpack.c.h.b16 %v2510
    %v3315 = vunpack.c.l.b16 %v2511
    %v3316 = vunpack.c.h.b16 %v2511
    %v3317 = vunpack.c.l.b16 %v2512
    %v3318 = vunpack.c.h.b16 %v2512
    %v3319 = vunpack.c.l.b16 %v2513
    %v3320 = vunpack.c.h.b16 %v2513
    %v3321 = vunpack.c.l.b16 %v2514
    %v3322 = vunpack.c.h.b16 %v2514
    %v3323 = vunpack.c.l.b16 %v2515
    %v3324 = vunpack.c.h.b16 %v2515
    %v3325 = vunpack.c.l.b16 %v2516
    %v3326 = vunpack.c.h.b16 %v2516
    %v3327 = vunpack.c.l.b16 %v2517
    %v3328 = vunpack.c.h.b16 %v2517
    %v3329 = vunpack.c.l.b16 %v2518
    %v3330 = vunpack.c.h.b16 %v2518
    %v3331 = vunpack.c.l.b16 %v2519
    %v3332 = vunpack.c.h.b16 %v2519
    %v3333 = vunpack.c.l.b16 %v2520
    %v3334 = vunpack.c.h.b16 %v2520
    %v3335 = vunpack.c.l.b16 %v2521
    %v3336 = vunpack.c.h.b16 %v2521
    %v3337 = vunpack.c.l.b16 %v2522
    %v3338 = vunpack.c.h.b16 %v2522
    %v3339 = vunpack.c.l.b16 %v2523
    %v3340 = vunpack.c.h.b16 %v2523
    %v3341 = vunpack.c.l.b16 %v2524
    %v3342 = vunpack.c.h.b16 %v2524
    %v3343 = vunpack.c.l.b16 %v2525
    %v3344 = vunpack.c.h.b16 %v2525
    %v3345 = vunpack.c.l.b16 %v2526
    %v3346 = vunpack.c.h.b16 %v2526
    %v3347 = vunpack.c.l.b16 %v2527
    %v3348 = vunpack.c.h.b16 %v2527
    %v3349 = vunpack.c.l.b16 %v2528
    %v3350 = vunpack.c.h.b16 %v2528
    %v3351 = vunpack.c.l.b16 %v2529
    %v3352 = vunpack.c.h.b16 %v2529
    %v3353 = vunpack.c.l.b16 %v2530
    %v3354 = vunpack.c.h.b16 %v2530
    %v3355 = vunpack.c.l.b16 %v2531
    %v3356 = vunpack.c.h.b16 %v2531
    %v3357 = vunpack.c.l.b16 %v2532
    %v3358 = vunpack.c.h.b16 %v2532
    %v3359 = vunpack.c.l.b16 %v2533
    %v3360 = vunpack.c.h.b16 %v2533
    %v3361 = vunpack.c.l.b16 %v2534
    %v3362 = vunpack.c.h.b16 %v2534
    %v3363 = vunpack.c.l.b16 %v2535
    %v3364 = vunpack.c.h.b16 %v2535
    %v3365 = vunpack.c.l.b16 %v2536
    %v3366 = vunpack.c.h.b16 %v2536
    %v3367 = vunpack.c.l.b16 %v2537
    %v3368 = vunpack.c.h.b16 %v2537
    %v3369 = vunpack.c.l.b16 %v2538
    %v3370 = vunpack.c.h.b16 %v2538
    %v3371 = vunpack.c.l.b16 %v2539
    %v3372 = vunpack.c.h.b16 %v2539
    %v3373 = vunpack.c.l.b16 %v2540
    %v3374 = vunpack.c.h.b16 %v2540
    %v3375 = vunpack.c.l.b16 %v2541
    %v3376 = vunpack.c.h.b16 %v2541
    %v3377 = vunpack.c.l.b16 %v2542
    %v3378 = vunpack.c.h.b16 %v2542
    %v3379 = vunpack.c.l.b16 %v2543
    %v3380 = vunpack.c.h.b16 %v2543
    %v3381 = vunpack.c.l.b16 %v2544
    %v3382 = vunpack.c.h.b16 %v2544
    %v3383 = vunpack.c.l.b16 %v2545
    %v3384 = vunpack.c.h.b16 %v2545
    %v3385 = vunpack.c.l.b16 %v2546
    %v3386 = vunpack.c.h.b16 %v2546
    %v3387 = vunpack.c.l.b16 %v2547
    %v3388 = vunpack.c.h.b16 %v2547
    %v3389 = vunpack.c.l.b16 %v2548
    %v3390 = vunpack.c.h.b16 %v2548
    %v3391 = vunpack.c.l.b16 %v2549
    %v3392 = vunpack.c.h.b16 %v2549
    %v3393 = vunpack.c.l.b16 %v2550
    %v3394 = vunpack.c.h.b16 %v2550
    %v3395 = vunpack.c.l.b16 %v2551
    %v3396 = vunpack.c.h.b16 %v2551
    %v3397 = vunpack.c.l.b16 %v2552
    %v3398 = vunpack.c.h.b16 %v2552
    %v3399 = vunpack.c.l.b16 %v2553
    %v3400 = vunpack.c.h.b16 %v2553
    %v3401 = vunpack.c.l.b16 %v2554
    %v3402 = vunpack.c.h.b16 %v2554
    %v3403 = vunpack.c.l.b16 %v2555
    %v3404 = vunpack.c.h.b16 %v2555
    %v3405 = vunpack.c.l.b16 %v2556
    %v3406 = vunpack.c.h.b16 %v2556
    %v3407 = vunpack.c.l.b16 %v2557
    %v3408 = vunpack.c.h.b16 %v2557
    %v3409 = vunpack.c.l.b16 %v2558
    %v3410 = vunpack.c.h.b16 %v2558
    %v3411 = vunpack.c.l.b16 %v2559
    %v3412 = vunpack.c.h.b16 %v2559
    %v3413 = vunpack.c.l.b16 %v2560
    %v3414 = vunpack.c.h.b16 %v2560
    %v3415 = vunpack.c.l.b16 %v2561
    %v3416 = vunpack.c.h.b16 %v2561
    %v3417 = vunpack.c.l.b16 %v2562
    %v3418 = vunpack.c.h.b16 %v2562
    %v3419 = vunpack.c.l.b16 %v2563
    %v3420 = vunpack.c.h.b16 %v2563
    %v3421 = vunpack.c.l.b16 %v2564
    %v3422 = vunpack.c.h.b16 %v2564
    %v3423 = vunpack.c.l.b16 %v2565
    %v3424 = vunpack.c.h.b16 %v2565
    %v3425 = vunpack.c.l.b16 %v2566
    %v3426 = vunpack.c.h.b16 %v2566
    %v3427 = vunpack.c.l.b16 %v2567
    %v3428 = vunpack.c.h.b16 %v2567
    %v3429 = vunpack.c.l.b16 %v2568
    %v3430 = vunpack.c.h.b16 %v2568
    %v3431 = vunpack.c.l.b16 %v2569
    %v3432 = vunpack.c.h.b16 %v2569
    %v3433 = vunpack.c.l.b16 %v2570
    %v3434 = vunpack.c.h.b16 %v2570
    %v3435 = vunpack.c.l.b16 %v2571
    %v3436 = vunpack.c.h.b16 %v2571
    %v3437 = vunpack.c.l.b16 %v2572
    %v3438 = vunpack.c.h.b16 %v2572
    %v3439 = vunpack.c.l.b16 %v2573
    %v3440 = vunpack.c.h.b16 %v2573
    %v3441 = vunpack.c.l.b16 %v2574
    %v3442 = vunpack.c.h.b16 %v2574
    %v3443 = vunpack.c.l.b16 %v2575
    %v3444 = vunpack.c.h.b16 %v2575
    %v3445 = vunpack.c.l.b16 %v2576
    %v3446 = vunpack.c.h.b16 %v2576
    %v3447 = vunpack.c.l.b16 %v2577
    %v3448 = vunpack.c.h.b16 %v2577
    %v3449 = vunpack.c.l.b16 %v2578
    %v3450 = vunpack.c.h.b16 %v2578
    %v3451 = vunpack.c.l.b16 %v2579
    %v3452 = vunpack.c.h.b16 %v2579
    %v3453 = vunpack.c.l.b16 %v2580
    %v3454 = vunpack.c.h.b16 %v2580
    %v3455 = vunpack.c.l.b16 %v2581
    %v3456 = vunpack.c.h.b16 %v2581
    %v3457 = vunpack.c.l.b16 %v2582
    %v3458 = vunpack.c.h.b16 %v2582
    %v3459 = vunpack.c.l.b16 %v2583
    %v3460 = vunpack.c.h.b16 %v2583
    %v3461 = vunpack.c.l.b16 %v2584
    %v3462 = vunpack.c.h.b16 %v2584
    %v3463 = vpack.c.b16 %v2893, %v2887
    %v3464 = vpack.c.b16 %v2894, %v2888
    %v3465 = vpack.c.b16 %v2895, %v2889
    %v3466 = vpack.c.b16 %v2896, %v2890
    %v3467 = vpack.c.b16 %v2897, %v2891
    %v3468 = vpack.c.b16 %v2898, %v2892
    %v3469 = vpack.c.b16 %v2905, %v2899
    %v3470 = vpack.c.b16 %v2906, %v2900
    %v3471 = vpack.c.b16 %v2907, %v2901
    %v3472 = vpack.c.b16 %v2908, %v2902
    %v3473 = vpack.c.b16 %v2909, %v2903
    %v3474 = vpack.c.b16 %v2910, %v2904
    %v3475 = vpack.c.b16 %v2917, %v2911
    %v3476 = vpack.c.b16 %v2918, %v2912
    %v3477 = vpack.c.b16 %v2919, %v2913
    %v3478 = vpack.c.b16 %v2920, %v2914
    %v3479 = vpack.c.b16 %v2921, %v2915
    %v3480 = vpack.c.b16 %v2922, %v2916
    %v3481 = vpack.c.b16 %v2929, %v2923
    %v3482 = vpack.c.b16 %v2930, %v2924
    %v3483 = vpack.c.b16 %v2931, %v2925
    %v3484 = vpack.c.b16 %v2932, %v2926
    %v3485 = vpack.c.b16 %v2933, %v2927
    %v3486 = vpack.c.b16 %v2934, %v2928
    %v3487 = vpack.c.b16 %v2941, %v2935
    %v3488 = vpack.c.b16 %v2942, %v2936
    %v3489 = vpack.c.b16 %v2943, %v2937
    %v3490 = vpack.c.b16 %v2944, %v2938
    %v3491 = vpack.c.b16 %v2945, %v2939
    %v3492 = vpack.c.b16 %v2946, %v2940
    %v3493 = vpack.c.b16 %v2953, %v2947
    %v3494 = vpack.c.b16 %v2954, %v2948
    %v3495 = vpack.c.b16 %v2955, %v2949
    %v3496 = vpack.c.b16 %v2956, %v2950
    %v3497 = vpack.c.b16 %v2957, %v2951
    %v3498 = vpack.c.b16 %v2958, %v2952
    %v3499 = vpack.c.b16 %v2965, %v2959
    %v3500 = vpack.c.b16 %v2966, %v2960
    %v3501 = vpack.c.b16 %v2967, %v2961
    %v3502 = vpack.c.b16 %v2968, %v2962
    %v3503 = vpack.c.b16 %v2969, %v2963
    %v3504 = vpack.c.b16 %v2970, %v2964
    %v3505 = vpack.c.b16 %v2977, %v2971
    %v3506 = vpack.c.b16 %v2978, %v2972
    %v3507 = vpack.c.b16 %v2979, %v2973
    %v3508 = vpack.c.b16 %v2980, %v2974
    %v3509 = vpack.c.b16 %v2981, %v2975
    %v3510 = vpack.c.b16 %v2982, %v2976
    %v3511 = vpack.c.b16 %v2989, %v2983
    %v3512 = vpack.c.b16 %v2990, %v2984
    %v3513 = vpack.c.b16 %v2991, %v2985
    %v3514 = vpack.c.b16 %v2992, %v2986
    %v3515 = vpack.c.b16 %v2993, %v2987
    %v3516 = vpack.c.b16 %v2994, %v2988
    %v3517 = vpack.c.b16 %v3001, %v2995
    %v3518 = vpack.c.b16 %v3002, %v2996
    %v3519 = vpack.c.b16 %v3003, %v2997
    %v3520 = vpack.c.b16 %v3004, %v2998
    %v3521 = vpack.c.b16 %v3005, %v2999
    %v3522 = vpack.c.b16 %v3006, %v3000
    %v3523 = vpack.c.b16 %v3013, %v3007
    %v3524 = vpack.c.b16 %v3014, %v3008
    %v3525 = vpack.c.b16 %v3015, %v3009
    %v3526 = vpack.c.b16 %v3016, %v3010
    %v3527 = vpack.c.b16 %v3017, %v3011
    %v3528 = vpack.c.b16 %v3018, %v3012
    %v3529 = vpack.c.b16 %v3025, %v3019
    %v3530 = vpack.c.b16 %v3026, %v3020
    %v3531 = vpack.c.b16 %v3027, %v3021
    %v3532 = vpack.c.b16 %v3028, %v3022
    %v3533 = vpack.c.b16 %v3029, %v3023
    %v3534 = vpack.c.b16 %v3030, %v3024
    %v3535 = vpack.c.b16 %v3037, %v3031
    %v3536 = vpack.c.b16 %v3038, %v3032
    %v3537 = vpack.c.b16 %v3039, %v3033
    %v3538 = vpack.c.b16 %v3040, %v3034
    %v3539 = vpack.c.b16 %v3041, %v3035
    %v3540 = vpack.c.b16 %v3042, %v3036
    %v3541 = vpack.c.b16 %v3049, %v3043
    %v3542 = vpack.c.b16 %v3050, %v3044
    %v3543 = vpack.c.b16 %v3051, %v3045
    %v3544 = vpack.c.b16 %v3052, %v3046
    %v3545 = vpack.c.b16 %v3053, %v3047
    %v3546 = vpack.c.b16 %v3054, %v3048
    %v3547 = vpack.c.b16 %v3061, %v3055
    %v3548 = vpack.c.b16 %v3062, %v3056
    %v3549 = vpack.c.b16 %v3063, %v3057
    %v3550 = vpack.c.b16 %v3064, %v3058
    %v3551 = vpack.c.b16 %v3065, %v3059
    %v3552 = vpack.c.b16 %v3066, %v3060
    %v3553 = vpack.c.b16 %v3073, %v3067
    %v3554 = vpack.c.b16 %v3074, %v3068
    %v3555 = vpack.c.b16 %v3075, %v3069
    %v3556 = vpack.c.b16 %v3076, %v3070
    %v3557 = vpack.c.b16 %v3077, %v3071
    %v3558 = vpack.c.b16 %v3078, %v3072
    %v3559 = vpack.c.b16 %v3085, %v3079
    %v3560 = vpack.c.b16 %v3086, %v3080
    %v3561 = vpack.c.b16 %v3087, %v3081
    %v3562 = vpack.c.b16 %v3088, %v3082
    %v3563 = vpack.c.b16 %v3089, %v3083
    %v3564 = vpack.c.b16 %v3090, %v3084
    %v3565 = vpack.c.b16 %v3097, %v3091
    %v3566 = vpack.c.b16 %v3098, %v3092
    %v3567 = vpack.c.b16 %v3099, %v3093
    %v3568 = vpack.c.b16 %v3100, %v3094
    %v3569 = vpack.c.b16 %v3101, %v3095
    %v3570 = vpack.c.b16 %v3102, %v3096
    %v3571 = vpack.c.b16 %v3109, %v3103
    %v3572 = vpack.c.b16 %v3110, %v3104
    %v3573 = vpack.c.b16 %v3111, %v3105
    %v3574 = vpack.c.b16 %v3112, %v3106
    %v3575 = vpack.c.b16 %v3113, %v3107
    %v3576 = vpack.c.b16 %v3114, %v3108
    %v3577 = vpack.c.b16 %v3121, %v3115
    %v3578 = vpack.c.b16 %v3122, %v3116
    %v3579 = vpack.c.b16 %v3123, %v3117
    %v3580 = vpack.c.b16 %v3124, %v3118
    %v3581 = vpack.c.b16 %v3125, %v3119
    %v3582 = vpack.c.b16 %v3126, %v3120
    %v3583 = vpack.c.b16 %v3133, %v3127
    %v3584 = vpack.c.b16 %v3134, %v3128
    %v3585 = vpack.c.b16 %v3135, %v3129
    %v3586 = vpack.c.b16 %v3136, %v3130
    %v3587 = vpack.c.b16 %v3137, %v3131
    %v3588 = vpack.c.b16 %v3138, %v3132
    %v3589 = vpack.c.b16 %v3145, %v3139
    %v3590 = vpack.c.b16 %v3146, %v3140
    %v3591 = vpack.c.b16 %v3147, %v3141
    %v3592 = vpack.c.b16 %v3148, %v3142
    %v3593 = vpack.c.b16 %v3149, %v3143
    %v3594 = vpack.c.b16 %v3150, %v3144
    %v3595 = vpack.c.b16 %v3157, %v3151
    %v3596 = vpack.c.b16 %v3158, %v3152
    %v3597 = vpack.c.b16 %v3159, %v3153
    %v3598 = vpack.c.b16 %v3160, %v3154
    %v3599 = vpack.c.b16 %v3161, %v3155
    %v3600 = vpack.c.b16 %v3162, %v3156
    %v3601 = vpack.c.b16 %v3169, %v3163
    %v3602 = vpack.c.b16 %v3170, %v3164
    %v3603 = vpack.c.b16 %v3171, %v3165
    %v3604 = vpack.c.b16 %v3172, %v3166
    %v3605 = vpack.c.b16 %v3173, %v3167
    %v3606 = vpack.c.b16 %v3174, %v3168
    %v3607 = vpack.c.b16 %v3181, %v3175
    %v3608 = vpack.c.b16 %v3182, %v3176
    %v3609 = vpack.c.b16 %v3183, %v3177
    %v3610 = vpack.c.b16 %v3184, %v3178
    %v3611 = vpack.c.b16 %v3185, %v3179
    %v3612 = vpack.c.b16 %v3186, %v3180
    %v3613 = vpack.c.b16 %v3193, %v3187
    %v3614 = vpack.c.b16 %v3194, %v3188
    %v3615 = vpack.c.b16 %v3195, %v3189
    %v3616 = vpack.c.b16 %v3196, %v3190
    %v3617 = vpack.c.b16 %v3197, %v3191
    %v3618 = vpack.c.b16 %v3198, %v3192
    %v3619 = vpack.c.b16 %v3205, %v3199
    %v3620 = vpack.c.b16 %v3206, %v3200
    %v3621 = vpack.c.b16 %v3207, %v3201
    %v3622 = vpack.c.b16 %v3208, %v3202
    %v3623 = vpack.c.b16 %v3209, %v3203
    %v3624 = vpack.c.b16 %v3210, %v3204
    %v3625 = vpack.c.b16 %v3217, %v3211
    %v3626 = vpack.c.b16 %v3218, %v3212
    %v3627 = vpack.c.b16 %v3219, %v3213
    %v3628 = vpack.c.b16 %v3220, %v3214
    %v3629 = vpack.c.b16 %v3221, %v3215
    %v3630 = vpack.c.b16 %v3222, %v3216
    %v3631 = vpack.c.b16 %v3229, %v3223
    %v3632 = vpack.c.b16 %v3230, %v3224
    %v3633 = vpack.c.b16 %v3231, %v3225
    %v3634 = vpack.c.b16 %v3232, %v3226
    %v3635 = vpack.c.b16 %v3233, %v3227
    %v3636 = vpack.c.b16 %v3234, %v3228
    %v3637 = vpack.c.b16 %v3241, %v3235
    %v3638 = vpack.c.b16 %v3242, %v3236
    %v3639 = vpack.c.b16 %v3243, %v3237
    %v3640 = vpack.c.b16 %v3244, %v3238
    %v3641 = vpack.c.b16 %v3245, %v3239
    %v3642 = vpack.c.b16 %v3246, %v3240
    %v3643 = vpack.c.b16 %v3253, %v3247
    %v3644 = vpack.c.b16 %v3254, %v3248
    %v3645 = vpack.c.b16 %v3255, %v3249
    %v3646 = vpack.c.b16 %v3256, %v3250
    %v3647 = vpack.c.b16 %v3257, %v3251
    %v3648 = vpack.c.b16 %v3258, %v3252
    %v3649 = vpack.c.b16 %v3265, %v3259
    %v3650 = vpack.c.b16 %v3266, %v3260
    %v3651 = vpack.c.b16 %v3267, %v3261
    %v3652 = vpack.c.b16 %v3268, %v3262
    %v3653 = vpack.c.b16 %v3269, %v3263
    %v3654 = vpack.c.b16 %v3270, %v3264
    %v3655 = vpack.c.b16 %v3277, %v3271
    %v3656 = vpack.c.b16 %v3278, %v3272
    %v3657 = vpack.c.b16 %v3279, %v3273
    %v3658 = vpack.c.b16 %v3280, %v3274
    %v3659 = vpack.c.b16 %v3281, %v3275
    %v3660 = vpack.c.b16 %v3282, %v3276
    %v3661 = vpack.c.b16 %v3289, %v3283
    %v3662 = vpack.c.b16 %v3290, %v3284
    %v3663 = vpack.c.b16 %v3291, %v3285
    %v3664 = vpack.c.b16 %v3292, %v3286
    %v3665 = vpack.c.b16 %v3293, %v3287
    %v3666 = vpack.c.b16 %v3294, %v3288
    %v3667 = vpack.c.b16 %v3301, %v3295
    %v3668 = vpack.c.b16 %v3302, %v3296
    %v3669 = vpack.c.b16 %v3303, %v3297
    %v3670 = vpack.c.b16 %v3304, %v3298
    %v3671 = vpack.c.b16 %v3305, %v3299
    %v3672 = vpack.c.b16 %v3306, %v3300
    %v3673 = vpack.c.b16 %v3313, %v3307
    %v3674 = vpack.c.b16 %v3314, %v3308
    %v3675 = vpack.c.b16 %v3315, %v3309
    %v3676 = vpack.c.b16 %v3316, %v3310
    %v3677 = vpack.c.b16 %v3317, %v3311
    %v3678 = vpack.c.b16 %v3318, %v3312
    %v3679 = vpack.c.b16 %v3325, %v3319
    %v3680 = vpack.c.b16 %v3326, %v3320
    %v3681 = vpack.c.b16 %v3327, %v3321
    %v3682 = vpack.c.b16 %v3328, %v3322
    %v3683 = vpack.c.b16 %v3329, %v3323
    %v3684 = vpack.c.b16 %v3330, %v3324
    %v3685 = vpack.c.b16 %v3337, %v3331
    %v3686 = vpack.c.b16 %v3338, %v3332
    %v3687 = vpack.c.b16 %v3339, %v3333
    %v3688 = vpack.c.b16 %v3340, %v3334
    %v3689 = vpack.c.b16 %v3341, %v3335
    %v3690 = vpack.c.b16 %v3342, %v3336
    %v3691 = vpack.c.b16 %v3349, %v3343
    %v3692 = vpack.c.b16 %v3350, %v3344
    %v3693 = vpack.c.b16 %v3351, %v3345
    %v3694 = vpack.c.b16 %v3352, %v3346
    %v3695 = vpack.c.b16 %v3353, %v3347
    %v3696 = vpack.c.b16 %v3354, %v3348
    %v3697 = vpack.c.b16 %v3361, %v3355
    %v3698 = vpack.c.b16 %v3362, %v3356
    %v3699 = vpack.c.b16 %v3363, %v3357
    %v3700 = vpack.c.b16 %v3364, %v3358
    %v3701 = vpack.c.b16 %v3365, %v3359
    %v3702 = vpack.c.b16 %v3366, %v3360
    %v3703 = vpack.c.b16 %v3373, %v3367
    %v3704 = vpack.c.b16 %v3374, %v3368
    %v3705 = vpack.c.b16 %v3375, %v3369
    %v3706 = vpack.c.b16 %v3376, %v3370
    %v3707 = vpack.c.b16 %v3377, %v3371
    %v3708 = vpack.c.b16 %v3378, %v3372
    %v3709 = vpack.c.b16 %v3385, %v3379
    %v3710 = vpack.c.b16 %v3386, %v3380
    %v3711 = vpack.c.b16 %v3387, %v3381
    %v3712 = vpack.c.b16 %v3388, %v3382
    %v3713 = vpack.c.b16 %v3389, %v3383
    %v3714 = vpack.c.b16 %v3390, %v3384
    %v3715 = vpack.c.b16 %v3397, %v3391
    %v3716 = vpack.c.b16 %v3398, %v3392
    %v3717 = vpack.c.b16 %v3399, %v3393
    %v3718 = vpack.c.b16 %v3400, %v3394
    %v3719 = vpack.c.b16 %v3401, %v3395
    %v3720 = vpack.c.b16 %v3402, %v3396
    %v3721 = vpack.c.b16 %v3409, %v3403
    %v3722 = vpack.c.b16 %v3410, %v3404
    %v3723 = vpack.c.b16 %v3411, %v3405
    %v3724 = vpack.c.b16 %v3412, %v3406
    %v3725 = vpack.c.b16 %v3413, %v3407
    %v3726 = vpack.c.b16 %v3414, %v3408
    %v3727 = vpack.c.b16 %v3421, %v3415
    %v3728 = vpack.c.b16 %v3422, %v3416
    %v3729 = vpack.c.b16 %v3423, %v3417
    %v3730 = vpack.c.b16 %v3424, %v3418
    %v3731 = vpack.c.b16 %v3425, %v3419
    %v3732 = vpack.c.b16 %v3426, %v3420
    %v3733 = vpack.c.b16 %v3433, %v3427
    %v3734 = vpack.c.b16 %v3434, %v3428
    %v3735 = vpack.c.b16 %v3435, %v3429
    %v3736 = vpack.c.b16 %v3436, %v3430
    %v3737 = vpack.c.b16 %v3437, %v3431
    %v3738 = vpack.c.b16 %v3438, %v3432
    %v3739 = vpack.c.b16 %v3445, %v3439
    %v3740 = vpack.c.b16 %v3446, %v3440
    %v3741 = vpack.c.b16 %v3447, %v3441
    %v3742 = vpack.c.b16 %v3448, %v3442
    %v3743 = vpack.c.b16 %v3449, %v3443
    %v3744 = vpack.c.b16 %v3450, %v3444
    %v3745 = vpack.c.b16 %v3457, %v3451
    %v3746 = vpack.c.b16 %v3458, %v3452
    %v3747 = vpack.c.b16 %v3459, %v3453
    %v3748 = vpack.c.b16 %v3460, %v3454
    %v3749 = vpack.c.b16 %v3461, %v3455
    %v3750 = vpack.c.b16 %v3462, %v3456
    %4039 = vmatpush.bf16.msra.mxu0 %v3505
    %4040 = vmatpush.bf16.msra.mxu0 %v3499
    %4041 = vmatpush.bf16.msra.mxu0 %v3493
    %4042 = vmatpush.bf16.msra.mxu0 %v3487
    %4043 = vmatpush.bf16.msra.mxu0 %v3481
    %4044 = vmatpush.bf16.msra.mxu0 %v3475
    %4045 = vmatpush.bf16.msra.mxu0 %v3469
    %4046 = vmatpush.bf16.msra.mxu0 %v3463
    %4047 = vmatmul.bf16.gmra.mxu0 %v397
    %v4048 = vpop.f32.mrf.mxu0
    %v4049 = vadd.f32 %v2587, %v4048
    %v4050 = vpop.f32.mrf.mxu0
    %v4051 = vadd.f32 %v2587, %v4050
    %4052 = vmatmul.bf16.gmra.mxu0 %v403
    %v4053 = vpop.f32.mrf.mxu0
    %v4054 = vadd.f32 %v2587, %v4053
    %v4055 = vpop.f32.mrf.mxu0
    %v4056 = vadd.f32 %v2587, %v4055
    %4057 = vmatmul.bf16.gmra.mxu0 %v409
    %v4058 = vpop.f32.mrf.mxu0
    %v4059 = vadd.f32 %v2587, %v4058
    %v4060 = vpop.f32.mrf.mxu0
    %v4061 = vadd.f32 %v2587, %v4060
    %4062 = vmatmul.bf16.gmra.mxu0 %v415
    %v4063 = vpop.f32.mrf.mxu0
    %v4064 = vadd.f32 %v2587, %v4063
    %v4065 = vpop.f32.mrf.mxu0
    %v4066 = vadd.f32 %v2587, %v4065
    %4067 = vdwg.mxu0
    %4068 = vmatpush.bf16.msra.mxu0 %v3553
    %4069 = vmatpush.bf16.msra.mxu0 %v3547
    %4070 = vmatpush.bf16.msra.mxu0 %v3541
    %4071 = vmatpush.bf16.msra.mxu0 %v3535
    %4072 = vmatpush.bf16.msra.mxu0 %v3529
    %4073 = vmatpush.bf16.msra.mxu0 %v3523
    %4074 = vmatpush.bf16.msra.mxu0 %v3517
    %4075 = vmatpush.bf16.msra.mxu0 %v3511
    %4076 = vmatmul.bf16.gmra.mxu0 %v398
    %v4077 = vpop.f32.mrf.mxu0
    %v4078 = vadd.f32 %v4049, %v4077
    %v4079 = vpop.f32.mrf.mxu0
    %v4080 = vadd.f32 %v4051, %v4079
    %4081 = vmatmul.bf16.gmra.mxu0 %v404
    %v4082 = vpop.f32.mrf.mxu0
    %v4083 = vadd.f32 %v4054, %v4082
    %v4084 = vpop.f32.mrf.mxu0
    %v4085 = vadd.f32 %v4056, %v4084
    %4086 = vmatmul.bf16.gmra.mxu0 %v410
    %v4087 = vpop.f32.mrf.mxu0
    %v4088 = vadd.f32 %v4059, %v4087
    %v4089 = vpop.f32.mrf.mxu0
    %v4090 = vadd.f32 %v4061, %v4089
    %4091 = vmatmul.bf16.gmra.mxu0 %v416
    %v4092 = vpop.f32.mrf.mxu0
    %v4093 = vadd.f32 %v4064, %v4092
    %v4094 = vpop.f32.mrf.mxu0
    %v4095 = vadd.f32 %v4066, %v4094
    %4096 = vdwg.mxu0
    %4097 = vmatpush.bf16.msra.mxu0 %v3601
    %4098 = vmatpush.bf16.msra.mxu0 %v3595
    %4099 = vmatpush.bf16.msra.mxu0 %v3589
    %4100 = vmatpush.bf16.msra.mxu0 %v3583
    %4101 = vmatpush.bf16.msra.mxu0 %v3577
    %4102 = vmatpush.bf16.msra.mxu0 %v3571
    %4103 = vmatpush.bf16.msra.mxu0 %v3565
    %4104 = vmatpush.bf16.msra.mxu0 %v3559
    %4105 = vmatmul.bf16.gmra.mxu0 %v399
    %v4106 = vpop.f32.mrf.mxu0
    %v4107 = vadd.f32 %v4078, %v4106
    %v4108 = vpop.f32.mrf.mxu0
    %v4109 = vadd.f32 %v4080, %v4108
    %4110 = vmatmul.bf16.gmra.mxu0 %v405
    %v4111 = vpop.f32.mrf.mxu0
    %v4112 = vadd.f32 %v4083, %v4111
    %v4113 = vpop.f32.mrf.mxu0
    %v4114 = vadd.f32 %v4085, %v4113
    %4115 = vmatmul.bf16.gmra.mxu0 %v411
    %v4116 = vpop.f32.mrf.mxu0
    %v4117 = vadd.f32 %v4088, %v4116
    %v4118 = vpop.f32.mrf.mxu0
    %v4119 = vadd.f32 %v4090, %v4118
    %4120 = vmatmul.bf16.gmra.mxu0 %v417
    %v4121 = vpop.f32.mrf.mxu0
    %v4122 = vadd.f32 %v4093, %v4121
    %v4123 = vpop.f32.mrf.mxu0
    %v4124 = vadd.f32 %v4095, %v4123
    %4125 = vdwg.mxu0
    %4126 = vmatpush.bf16.msra.mxu0 %v3649
    %4127 = vmatpush.bf16.msra.mxu0 %v3643
    %4128 = vmatpush.bf16.msra.mxu0 %v3637
    %4129 = vmatpush.bf16.msra.mxu0 %v3631
    %4130 = vmatpush.bf16.msra.mxu0 %v3625
    %4131 = vmatpush.bf16.msra.mxu0 %v3619
    %4132 = vmatpush.bf16.msra.mxu0 %v3613
    %4133 = vmatpush.bf16.msra.mxu0 %v3607
    %4134 = vmatmul.bf16.gmra.mxu0 %v400
    %v4135 = vpop.f32.mrf.mxu0
    %v4136 = vadd.f32 %v4107, %v4135
    %v4137 = vpop.f32.mrf.mxu0
    %v4138 = vadd.f32 %v4109, %v4137
    %4139 = vmatmul.bf16.gmra.mxu0 %v406
    %v4140 = vpop.f32.mrf.mxu0
    %v4141 = vadd.f32 %v4112, %v4140
    %v4142 = vpop.f32.mrf.mxu0
    %v4143 = vadd.f32 %v4114, %v4142
    %4144 = vmatmul.bf16.gmra.mxu0 %v412
    %v4145 = vpop.f32.mrf.mxu0
    %v4146 = vadd.f32 %v4117, %v4145
    %v4147 = vpop.f32.mrf.mxu0
    %v4148 = vadd.f32 %v4119, %v4147
    %4149 = vmatmul.bf16.gmra.mxu0 %v418
    %v4150 = vpop.f32.mrf.mxu0
    %v4151 = vadd.f32 %v4122, %v4150
    %v4152 = vpop.f32.mrf.mxu0
    %v4153 = vadd.f32 %v4124, %v4152
    %4154 = vdwg.mxu0
    %4155 = vmatpush.bf16.msra.mxu0 %v3697
    %4156 = vmatpush.bf16.msra.mxu0 %v3691
    %4157 = vmatpush.bf16.msra.mxu0 %v3685
    %4158 = vmatpush.bf16.msra.mxu0 %v3679
    %4159 = vmatpush.bf16.msra.mxu0 %v3673
    %4160 = vmatpush.bf16.msra.mxu0 %v3667
    %4161 = vmatpush.bf16.msra.mxu0 %v3661
    %4162 = vmatpush.bf16.msra.mxu0 %v3655
    %4163 = vmatmul.bf16.gmra.mxu0 %v401
    %v4164 = vpop.f32.mrf.mxu0
    %v4165 = vadd.f32 %v4136, %v4164
    %v4166 = vpop.f32.mrf.mxu0
    %v4167 = vadd.f32 %v4138, %v4166
    %4168 = vmatmul.bf16.gmra.mxu0 %v407
    %v4169 = vpop.f32.mrf.mxu0
    %v4170 = vadd.f32 %v4141, %v4169
    %v4171 = vpop.f32.mrf.mxu0
    %v4172 = vadd.f32 %v4143, %v4171
    %4173 = vmatmul.bf16.gmra.mxu0 %v413
    %v4174 = vpop.f32.mrf.mxu0
    %v4175 = vadd.f32 %v4146, %v4174
    %v4176 = vpop.f32.mrf.mxu0
    %v4177 = vadd.f32 %v4148, %v4176
    %4178 = vmatmul.bf16.gmra.mxu0 %v419
    %v4179 = vpop.f32.mrf.mxu0
    %v4180 = vadd.f32 %v4151, %v4179
    %v4181 = vpop.f32.mrf.mxu0
    %v4182 = vadd.f32 %v4153, %v4181
    %4183 = vdwg.mxu0
    %4184 = vmatpush.bf16.msra.mxu0 %v3745
    %4185 = vmatpush.bf16.msra.mxu0 %v3739
    %4186 = vmatpush.bf16.msra.mxu0 %v3733
    %4187 = vmatpush.bf16.msra.mxu0 %v3727
    %4188 = vmatpush.bf16.msra.mxu0 %v3721
    %4189 = vmatpush.bf16.msra.mxu0 %v3715
    %4190 = vmatpush.bf16.msra.mxu0 %v3709
    %4191 = vmatpush.bf16.msra.mxu0 %v3703
    %4192 = vmatmul.bf16.gmra.mxu0 %v402
    %v4193 = vpop.f32.mrf.mxu0
    %v4194 = vadd.f32 %v4165, %v4193
    %v4195 = vpop.f32.mrf.mxu0
    %v4196 = vadd.f32 %v4167, %v4195
    %4197 = vmatmul.bf16.gmra.mxu0 %v408
    %v4198 = vpop.f32.mrf.mxu0
    %v4199 = vadd.f32 %v4170, %v4198
    %v4200 = vpop.f32.mrf.mxu0
    %v4201 = vadd.f32 %v4172, %v4200
    %4202 = vmatmul.bf16.gmra.mxu0 %v414
    %v4203 = vpop.f32.mrf.mxu0
    %v4204 = vadd.f32 %v4175, %v4203
    %v4205 = vpop.f32.mrf.mxu0
    %v4206 = vadd.f32 %v4177, %v4205
    %4207 = vmatmul.bf16.gmra.mxu0 %v420
    %v4208 = vpop.f32.mrf.mxu0
    %v4209 = vadd.f32 %v4180, %v4208
    %v4210 = vpop.f32.mrf.mxu0
    %v4211 = vadd.f32 %v4182, %v4210
    %4212 = vdwg.mxu0
    %4213 = vmatpush.bf16.msra.mxu0 %v3506
    %4214 = vmatpush.bf16.msra.mxu0 %v3500
    %4215 = vmatpush.bf16.msra.mxu0 %v3494
    %4216 = vmatpush.bf16.msra.mxu0 %v3488
    %4217 = vmatpush.bf16.msra.mxu0 %v3482
    %4218 = vmatpush.bf16.msra.mxu0 %v3476
    %4219 = vmatpush.bf16.msra.mxu0 %v3470
    %4220 = vmatpush.bf16.msra.mxu0 %v3464
    %4221 = vmatmul.bf16.gmra.mxu0 %v397
    %v4222 = vpop.f32.mrf.mxu0
    %v4223 = vadd.f32 %v2588, %v4222
    %v4224 = vpop.f32.mrf.mxu0
    %v4225 = vadd.f32 %v2588, %v4224
    %4226 = vmatmul.bf16.gmra.mxu0 %v403
    %v4227 = vpop.f32.mrf.mxu0
    %v4228 = vadd.f32 %v2588, %v4227
    %v4229 = vpop.f32.mrf.mxu0
    %v4230 = vadd.f32 %v2588, %v4229
    %4231 = vmatmul.bf16.gmra.mxu0 %v409
    %v4232 = vpop.f32.mrf.mxu0
    %v4233 = vadd.f32 %v2588, %v4232
    %v4234 = vpop.f32.mrf.mxu0
    %v4235 = vadd.f32 %v2588, %v4234
    %4236 = vmatmul.bf16.gmra.mxu0 %v415
    %v4237 = vpop.f32.mrf.mxu0
    %v4238 = vadd.f32 %v2588, %v4237
    %v4239 = vpop.f32.mrf.mxu0
    %v4240 = vadd.f32 %v2588, %v4239
    %4241 = vdwg.mxu0
    %4242 = vmatpush.bf16.msra.mxu0 %v3554
    %4243 = vmatpush.bf16.msra.mxu0 %v3548
    %4244 = vmatpush.bf16.msra.mxu0 %v3542
    %4245 = vmatpush.bf16.msra.mxu0 %v3536
    %4246 = vmatpush.bf16.msra.mxu0 %v3530
    %4247 = vmatpush.bf16.msra.mxu0 %v3524
    %4248 = vmatpush.bf16.msra.mxu0 %v3518
    %4249 = vmatpush.bf16.msra.mxu0 %v3512
    %4250 = vmatmul.bf16.gmra.mxu0 %v398
    %v4251 = vpop.f32.mrf.mxu0
    %v4252 = vadd.f32 %v4223, %v4251
    %v4253 = vpop.f32.mrf.mxu0
    %v4254 = vadd.f32 %v4225, %v4253
    %4255 = vmatmul.bf16.gmra.mxu0 %v404
    %v4256 = vpop.f32.mrf.mxu0
    %v4257 = vadd.f32 %v4228, %v4256
    %v4258 = vpop.f32.mrf.mxu0
    %v4259 = vadd.f32 %v4230, %v4258
    %4260 = vmatmul.bf16.gmra.mxu0 %v410
    %v4261 = vpop.f32.mrf.mxu0
    %v4262 = vadd.f32 %v4233, %v4261
    %v4263 = vpop.f32.mrf.mxu0
    %v4264 = vadd.f32 %v4235, %v4263
    %4265 = vmatmul.bf16.gmra.mxu0 %v416
    %v4266 = vpop.f32.mrf.mxu0
    %v4267 = vadd.f32 %v4238, %v4266
    %v4268 = vpop.f32.mrf.mxu0
    %v4269 = vadd.f32 %v4240, %v4268
    %4270 = vdwg.mxu0
    %4271 = vmatpush.bf16.msra.mxu0 %v3602
    %4272 = vmatpush.bf16.msra.mxu0 %v3596
    %4273 = vmatpush.bf16.msra.mxu0 %v3590
    %4274 = vmatpush.bf16.msra.mxu0 %v3584
    %4275 = vmatpush.bf16.msra.mxu0 %v3578
    %4276 = vmatpush.bf16.msra.mxu0 %v3572
    %4277 = vmatpush.bf16.msra.mxu0 %v3566
    %4278 = vmatpush.bf16.msra.mxu0 %v3560
    %4279 = vmatmul.bf16.gmra.mxu0 %v399
    %v4280 = vpop.f32.mrf.mxu0
    %v4281 = vadd.f32 %v4252, %v4280
    %v4282 = vpop.f32.mrf.mxu0
    %v4283 = vadd.f32 %v4254, %v4282
    %4284 = vmatmul.bf16.gmra.mxu0 %v405
    %v4285 = vpop.f32.mrf.mxu0
    %v4286 = vadd.f32 %v4257, %v4285
    %v4287 = vpop.f32.mrf.mxu0
    %v4288 = vadd.f32 %v4259, %v4287
    %4289 = vmatmul.bf16.gmra.mxu0 %v411
    %v4290 = vpop.f32.mrf.mxu0
    %v4291 = vadd.f32 %v4262, %v4290
    %v4292 = vpop.f32.mrf.mxu0
    %v4293 = vadd.f32 %v4264, %v4292
    %4294 = vmatmul.bf16.gmra.mxu0 %v417
    %v4295 = vpop.f32.mrf.mxu0
    %v4296 = vadd.f32 %v4267, %v4295
    %v4297 = vpop.f32.mrf.mxu0
    %v4298 = vadd.f32 %v4269, %v4297
    %4299 = vdwg.mxu0
    %4300 = vmatpush.bf16.msra.mxu0 %v3650
    %4301 = vmatpush.bf16.msra.mxu0 %v3644
    %4302 = vmatpush.bf16.msra.mxu0 %v3638
    %4303 = vmatpush.bf16.msra.mxu0 %v3632
    %4304 = vmatpush.bf16.msra.mxu0 %v3626
    %4305 = vmatpush.bf16.msra.mxu0 %v3620
    %4306 = vmatpush.bf16.msra.mxu0 %v3614
    %4307 = vmatpush.bf16.msra.mxu0 %v3608
    %4308 = vmatmul.bf16.gmra.mxu0 %v400
    %v4309 = vpop.f32.mrf.mxu0
    %v4310 = vadd.f32 %v4281, %v4309
    %v4311 = vpop.f32.mrf.mxu0
    %v4312 = vadd.f32 %v4283, %v4311
    %4313 = vmatmul.bf16.gmra.mxu0 %v406
    %v4314 = vpop.f32.mrf.mxu0
    %v4315 = vadd.f32 %v4286, %v4314
    %v4316 = vpop.f32.mrf.mxu0
    %v4317 = vadd.f32 %v4288, %v4316
    %4318 = vmatmul.bf16.gmra.mxu0 %v412
    %v4319 = vpop.f32.mrf.mxu0
    %v4320 = vadd.f32 %v4291, %v4319
    %v4321 = vpop.f32.mrf.mxu0
    %v4322 = vadd.f32 %v4293, %v4321
    %4323 = vmatmul.bf16.gmra.mxu0 %v418
    %v4324 = vpop.f32.mrf.mxu0
    %v4325 = vadd.f32 %v4296, %v4324
    %v4326 = vpop.f32.mrf.mxu0
    %v4327 = vadd.f32 %v4298, %v4326
    %4328 = vdwg.mxu0
    %4329 = vmatpush.bf16.msra.mxu0 %v3698
    %4330 = vmatpush.bf16.msra.mxu0 %v3692
    %4331 = vmatpush.bf16.msra.mxu0 %v3686
    %4332 = vmatpush.bf16.msra.mxu0 %v3680
    %4333 = vmatpush.bf16.msra.mxu0 %v3674
    %4334 = vmatpush.bf16.msra.mxu0 %v3668
    %4335 = vmatpush.bf16.msra.mxu0 %v3662
    %4336 = vmatpush.bf16.msra.mxu0 %v3656
    %4337 = vmatmul.bf16.gmra.mxu0 %v401
    %v4338 = vpop.f32.mrf.mxu0
    %v4339 = vadd.f32 %v4310, %v4338
    %v4340 = vpop.f32.mrf.mxu0
    %v4341 = vadd.f32 %v4312, %v4340
    %4342 = vmatmul.bf16.gmra.mxu0 %v407
    %v4343 = vpop.f32.mrf.mxu0
    %v4344 = vadd.f32 %v4315, %v4343
    %v4345 = vpop.f32.mrf.mxu0
    %v4346 = vadd.f32 %v4317, %v4345
    %4347 = vmatmul.bf16.gmra.mxu0 %v413
    %v4348 = vpop.f32.mrf.mxu0
    %v4349 = vadd.f32 %v4320, %v4348
    %v4350 = vpop.f32.mrf.mxu0
    %v4351 = vadd.f32 %v4322, %v4350
    %4352 = vmatmul.bf16.gmra.mxu0 %v419
    %v4353 = vpop.f32.mrf.mxu0
    %v4354 = vadd.f32 %v4325, %v4353
    %v4355 = vpop.f32.mrf.mxu0
    %v4356 = vadd.f32 %v4327, %v4355
    %4357 = vdwg.mxu0
    %4358 = vmatpush.bf16.msra.mxu0 %v3746
    %4359 = vmatpush.bf16.msra.mxu0 %v3740
    %4360 = vmatpush.bf16.msra.mxu0 %v3734
    %4361 = vmatpush.bf16.msra.mxu0 %v3728
    %4362 = vmatpush.bf16.msra.mxu0 %v3722
    %4363 = vmatpush.bf16.msra.mxu0 %v3716
    %4364 = vmatpush.bf16.msra.mxu0 %v3710
    %4365 = vmatpush.bf16.msra.mxu0 %v3704
    %4366 = vmatmul.bf16.gmra.mxu0 %v402
    %v4367 = vpop.f32.mrf.mxu0
    %v4368 = vadd.f32 %v4339, %v4367
    %v4369 = vpop.f32.mrf.mxu0
    %v4370 = vadd.f32 %v4341, %v4369
    %4371 = vmatmul.bf16.gmra.mxu0 %v408
    %v4372 = vpop.f32.mrf.mxu0
    %v4373 = vadd.f32 %v4344, %v4372
    %v4374 = vpop.f32.mrf.mxu0
    %v4375 = vadd.f32 %v4346, %v4374
    %4376 = vmatmul.bf16.gmra.mxu0 %v414
    %v4377 = vpop.f32.mrf.mxu0
    %v4378 = vadd.f32 %v4349, %v4377
    %v4379 = vpop.f32.mrf.mxu0
    %v4380 = vadd.f32 %v4351, %v4379
    %4381 = vmatmul.bf16.gmra.mxu0 %v420
    %v4382 = vpop.f32.mrf.mxu0
    %v4383 = vadd.f32 %v4354, %v4382
    %v4384 = vpop.f32.mrf.mxu0
    %v4385 = vadd.f32 %v4356, %v4384
    %4386 = vdwg.mxu0
    %4387 = vmatpush.bf16.msra.mxu0 %v3507
    %4388 = vmatpush.bf16.msra.mxu0 %v3501
    %4389 = vmatpush.bf16.msra.mxu0 %v3495
    %4390 = vmatpush.bf16.msra.mxu0 %v3489
    %4391 = vmatpush.bf16.msra.mxu0 %v3483
    %4392 = vmatpush.bf16.msra.mxu0 %v3477
    %4393 = vmatpush.bf16.msra.mxu0 %v3471
    %4394 = vmatpush.bf16.msra.mxu0 %v3465
    %4395 = vmatmul.bf16.gmra.mxu0 %v397
    %v4396 = vpop.f32.mrf.mxu0
    %v4397 = vadd.f32 %v2589, %v4396
    %v4398 = vpop.f32.mrf.mxu0
    %v4399 = vadd.f32 %v2589, %v4398
    %4400 = vmatmul.bf16.gmra.mxu0 %v403
    %v4401 = vpop.f32.mrf.mxu0
    %v4402 = vadd.f32 %v2589, %v4401
    %v4403 = vpop.f32.mrf.mxu0
    %v4404 = vadd.f32 %v2589, %v4403
    %4405 = vmatmul.bf16.gmra.mxu0 %v409
    %v4406 = vpop.f32.mrf.mxu0
    %v4407 = vadd.f32 %v2589, %v4406
    %v4408 = vpop.f32.mrf.mxu0
    %v4409 = vadd.f32 %v2589, %v4408
    %4410 = vmatmul.bf16.gmra.mxu0 %v415
    %v4411 = vpop.f32.mrf.mxu0
    %v4412 = vadd.f32 %v2589, %v4411
    %v4413 = vpop.f32.mrf.mxu0
    %v4414 = vadd.f32 %v2589, %v4413
    %4415 = vdwg.mxu0
    %4416 = vmatpush.bf16.msra.mxu0 %v3555
    %4417 = vmatpush.bf16.msra.mxu0 %v3549
    %4418 = vmatpush.bf16.msra.mxu0 %v3543
    %4419 = vmatpush.bf16.msra.mxu0 %v3537
    %4420 = vmatpush.bf16.msra.mxu0 %v3531
    %4421 = vmatpush.bf16.msra.mxu0 %v3525
    %4422 = vmatpush.bf16.msra.mxu0 %v3519
    %4423 = vmatpush.bf16.msra.mxu0 %v3513
    %4424 = vmatmul.bf16.gmra.mxu0 %v398
    %v4425 = vpop.f32.mrf.mxu0
    %v4426 = vadd.f32 %v4397, %v4425
    %v4427 = vpop.f32.mrf.mxu0
    %v4428 = vadd.f32 %v4399, %v4427
    %4429 = vmatmul.bf16.gmra.mxu0 %v404
    %v4430 = vpop.f32.mrf.mxu0
    %v4431 = vadd.f32 %v4402, %v4430
    %v4432 = vpop.f32.mrf.mxu0
    %v4433 = vadd.f32 %v4404, %v4432
    %4434 = vmatmul.bf16.gmra.mxu0 %v410
    %v4435 = vpop.f32.mrf.mxu0
    %v4436 = vadd.f32 %v4407, %v4435
    %v4437 = vpop.f32.mrf.mxu0
    %v4438 = vadd.f32 %v4409, %v4437
    %4439 = vmatmul.bf16.gmra.mxu0 %v416
    %v4440 = vpop.f32.mrf.mxu0
    %v4441 = vadd.f32 %v4412, %v4440
    %v4442 = vpop.f32.mrf.mxu0
    %v4443 = vadd.f32 %v4414, %v4442
    %4444 = vdwg.mxu0
    %4445 = vmatpush.bf16.msra.mxu0 %v3603
    %4446 = vmatpush.bf16.msra.mxu0 %v3597
    %4447 = vmatpush.bf16.msra.mxu0 %v3591
    %4448 = vmatpush.bf16.msra.mxu0 %v3585
    %4449 = vmatpush.bf16.msra.mxu0 %v3579
    %4450 = vmatpush.bf16.msra.mxu0 %v3573
    %4451 = vmatpush.bf16.msra.mxu0 %v3567
    %4452 = vmatpush.bf16.msra.mxu0 %v3561
    %4453 = vmatmul.bf16.gmra.mxu0 %v399
    %v4454 = vpop.f32.mrf.mxu0
    %v4455 = vadd.f32 %v4426, %v4454
    %v4456 = vpop.f32.mrf.mxu0
    %v4457 = vadd.f32 %v4428, %v4456
    %4458 = vmatmul.bf16.gmra.mxu0 %v405
    %v4459 = vpop.f32.mrf.mxu0
    %v4460 = vadd.f32 %v4431, %v4459
    %v4461 = vpop.f32.mrf.mxu0
    %v4462 = vadd.f32 %v4433, %v4461
    %4463 = vmatmul.bf16.gmra.mxu0 %v411
    %v4464 = vpop.f32.mrf.mxu0
    %v4465 = vadd.f32 %v4436, %v4464
    %v4466 = vpop.f32.mrf.mxu0
    %v4467 = vadd.f32 %v4438, %v4466
    %4468 = vmatmul.bf16.gmra.mxu0 %v417
    %v4469 = vpop.f32.mrf.mxu0
    %v4470 = vadd.f32 %v4441, %v4469
    %v4471 = vpop.f32.mrf.mxu0
    %v4472 = vadd.f32 %v4443, %v4471
    %4473 = vdwg.mxu0
    %4474 = vmatpush.bf16.msra.mxu0 %v3651
    %4475 = vmatpush.bf16.msra.mxu0 %v3645
    %4476 = vmatpush.bf16.msra.mxu0 %v3639
    %4477 = vmatpush.bf16.msra.mxu0 %v3633
    %4478 = vmatpush.bf16.msra.mxu0 %v3627
    %4479 = vmatpush.bf16.msra.mxu0 %v3621
    %4480 = vmatpush.bf16.msra.mxu0 %v3615
    %4481 = vmatpush.bf16.msra.mxu0 %v3609
    %4482 = vmatmul.bf16.gmra.mxu0 %v400
    %v4483 = vpop.f32.mrf.mxu0
    %v4484 = vadd.f32 %v4455, %v4483
    %v4485 = vpop.f32.mrf.mxu0
    %v4486 = vadd.f32 %v4457, %v4485
    %4487 = vmatmul.bf16.gmra.mxu0 %v406
    %v4488 = vpop.f32.mrf.mxu0
    %v4489 = vadd.f32 %v4460, %v4488
    %v4490 = vpop.f32.mrf.mxu0
    %v4491 = vadd.f32 %v4462, %v4490
    %4492 = vmatmul.bf16.gmra.mxu0 %v412
    %v4493 = vpop.f32.mrf.mxu0
    %v4494 = vadd.f32 %v4465, %v4493
    %v4495 = vpop.f32.mrf.mxu0
    %v4496 = vadd.f32 %v4467, %v4495
    %4497 = vmatmul.bf16.gmra.mxu0 %v418
    %v4498 = vpop.f32.mrf.mxu0
    %v4499 = vadd.f32 %v4470, %v4498
    %v4500 = vpop.f32.mrf.mxu0
    %v4501 = vadd.f32 %v4472, %v4500
    %4502 = vdwg.mxu0
    %4503 = vmatpush.bf16.msra.mxu0 %v3699
    %4504 = vmatpush.bf16.msra.mxu0 %v3693
    %4505 = vmatpush.bf16.msra.mxu0 %v3687
    %4506 = vmatpush.bf16.msra.mxu0 %v3681
    %4507 = vmatpush.bf16.msra.mxu0 %v3675
    %4508 = vmatpush.bf16.msra.mxu0 %v3669
    %4509 = vmatpush.bf16.msra.mxu0 %v3663
    %4510 = vmatpush.bf16.msra.mxu0 %v3657
    %4511 = vmatmul.bf16.gmra.mxu0 %v401
    %v4512 = vpop.f32.mrf.mxu0
    %v4513 = vadd.f32 %v4484, %v4512
    %v4514 = vpop.f32.mrf.mxu0
    %v4515 = vadd.f32 %v4486, %v4514
    %4516 = vmatmul.bf16.gmra.mxu0 %v407
    %v4517 = vpop.f32.mrf.mxu0
    %v4518 = vadd.f32 %v4489, %v4517
    %v4519 = vpop.f32.mrf.mxu0
    %v4520 = vadd.f32 %v4491, %v4519
    %4521 = vmatmul.bf16.gmra.mxu0 %v413
    %v4522 = vpop.f32.mrf.mxu0
    %v4523 = vadd.f32 %v4494, %v4522
    %v4524 = vpop.f32.mrf.mxu0
    %v4525 = vadd.f32 %v4496, %v4524
    %4526 = vmatmul.bf16.gmra.mxu0 %v419
    %v4527 = vpop.f32.mrf.mxu0
    %v4528 = vadd.f32 %v4499, %v4527
    %v4529 = vpop.f32.mrf.mxu0
    %v4530 = vadd.f32 %v4501, %v4529
    %4531 = vdwg.mxu0
    %4532 = vmatpush.bf16.msra.mxu0 %v3747
    %4533 = vmatpush.bf16.msra.mxu0 %v3741
    %4534 = vmatpush.bf16.msra.mxu0 %v3735
    %4535 = vmatpush.bf16.msra.mxu0 %v3729
    %4536 = vmatpush.bf16.msra.mxu0 %v3723
    %4537 = vmatpush.bf16.msra.mxu0 %v3717
    %4538 = vmatpush.bf16.msra.mxu0 %v3711
    %4539 = vmatpush.bf16.msra.mxu0 %v3705
    %4540 = vmatmul.bf16.gmra.mxu0 %v402
    %v4541 = vpop.f32.mrf.mxu0
    %v4542 = vadd.f32 %v4513, %v4541
    %v4543 = vpop.f32.mrf.mxu0
    %v4544 = vadd.f32 %v4515, %v4543
    %4545 = vmatmul.bf16.gmra.mxu0 %v408
    %v4546 = vpop.f32.mrf.mxu0
    %v4547 = vadd.f32 %v4518, %v4546
    %v4548 = vpop.f32.mrf.mxu0
    %v4549 = vadd.f32 %v4520, %v4548
    %4550 = vmatmul.bf16.gmra.mxu0 %v414
    %v4551 = vpop.f32.mrf.mxu0
    %v4552 = vadd.f32 %v4523, %v4551
    %v4553 = vpop.f32.mrf.mxu0
    %v4554 = vadd.f32 %v4525, %v4553
    %4555 = vmatmul.bf16.gmra.mxu0 %v420
    %v4556 = vpop.f32.mrf.mxu0
    %v4557 = vadd.f32 %v4528, %v4556
    %v4558 = vpop.f32.mrf.mxu0
    %v4559 = vadd.f32 %v4530, %v4558
    %4560 = vdwg.mxu0
    %4561 = vmatpush.bf16.msra.mxu0 %v3508
    %4562 = vmatpush.bf16.msra.mxu0 %v3502
    %4563 = vmatpush.bf16.msra.mxu0 %v3496
    %4564 = vmatpush.bf16.msra.mxu0 %v3490
    %4565 = vmatpush.bf16.msra.mxu0 %v3484
    %4566 = vmatpush.bf16.msra.mxu0 %v3478
    %4567 = vmatpush.bf16.msra.mxu0 %v3472
    %4568 = vmatpush.bf16.msra.mxu0 %v3466
    %4569 = vmatmul.bf16.gmra.mxu0 %v397
    %v4570 = vpop.f32.mrf.mxu0
    %v4571 = vadd.f32 %v2590, %v4570
    %v4572 = vpop.f32.mrf.mxu0
    %v4573 = vadd.f32 %v2590, %v4572
    %4574 = vmatmul.bf16.gmra.mxu0 %v403
    %v4575 = vpop.f32.mrf.mxu0
    %v4576 = vadd.f32 %v2590, %v4575
    %v4577 = vpop.f32.mrf.mxu0
    %v4578 = vadd.f32 %v2590, %v4577
    %4579 = vmatmul.bf16.gmra.mxu0 %v409
    %v4580 = vpop.f32.mrf.mxu0
    %v4581 = vadd.f32 %v2590, %v4580
    %v4582 = vpop.f32.mrf.mxu0
    %v4583 = vadd.f32 %v2590, %v4582
    %4584 = vmatmul.bf16.gmra.mxu0 %v415
    %v4585 = vpop.f32.mrf.mxu0
    %v4586 = vadd.f32 %v2590, %v4585
    %v4587 = vpop.f32.mrf.mxu0
    %v4588 = vadd.f32 %v2590, %v4587
    %4589 = vdwg.mxu0
    %4590 = vmatpush.bf16.msra.mxu0 %v3556
    %4591 = vmatpush.bf16.msra.mxu0 %v3550
    %4592 = vmatpush.bf16.msra.mxu0 %v3544
    %4593 = vmatpush.bf16.msra.mxu0 %v3538
    %4594 = vmatpush.bf16.msra.mxu0 %v3532
    %4595 = vmatpush.bf16.msra.mxu0 %v3526
    %4596 = vmatpush.bf16.msra.mxu0 %v3520
    %4597 = vmatpush.bf16.msra.mxu0 %v3514
    %4598 = vmatmul.bf16.gmra.mxu0 %v398
    %v4599 = vpop.f32.mrf.mxu0
    %v4600 = vadd.f32 %v4571, %v4599
    %v4601 = vpop.f32.mrf.mxu0
    %v4602 = vadd.f32 %v4573, %v4601
    %4603 = vmatmul.bf16.gmra.mxu0 %v404
    %v4604 = vpop.f32.mrf.mxu0
    %v4605 = vadd.f32 %v4576, %v4604
    %v4606 = vpop.f32.mrf.mxu0
    %v4607 = vadd.f32 %v4578, %v4606
    %4608 = vmatmul.bf16.gmra.mxu0 %v410
    %v4609 = vpop.f32.mrf.mxu0
    %v4610 = vadd.f32 %v4581, %v4609
    %v4611 = vpop.f32.mrf.mxu0
    %v4612 = vadd.f32 %v4583, %v4611
    %4613 = vmatmul.bf16.gmra.mxu0 %v416
    %v4614 = vpop.f32.mrf.mxu0
    %v4615 = vadd.f32 %v4586, %v4614
    %v4616 = vpop.f32.mrf.mxu0
    %v4617 = vadd.f32 %v4588, %v4616
    %4618 = vdwg.mxu0
    %4619 = vmatpush.bf16.msra.mxu0 %v3604
    %4620 = vmatpush.bf16.msra.mxu0 %v3598
    %4621 = vmatpush.bf16.msra.mxu0 %v3592
    %4622 = vmatpush.bf16.msra.mxu0 %v3586
    %4623 = vmatpush.bf16.msra.mxu0 %v3580
    %4624 = vmatpush.bf16.msra.mxu0 %v3574
    %4625 = vmatpush.bf16.msra.mxu0 %v3568
    %4626 = vmatpush.bf16.msra.mxu0 %v3562
    %4627 = vmatmul.bf16.gmra.mxu0 %v399
    %v4628 = vpop.f32.mrf.mxu0
    %v4629 = vadd.f32 %v4600, %v4628
    %v4630 = vpop.f32.mrf.mxu0
    %v4631 = vadd.f32 %v4602, %v4630
    %4632 = vmatmul.bf16.gmra.mxu0 %v405
    %v4633 = vpop.f32.mrf.mxu0
    %v4634 = vadd.f32 %v4605, %v4633
    %v4635 = vpop.f32.mrf.mxu0
    %v4636 = vadd.f32 %v4607, %v4635
    %4637 = vmatmul.bf16.gmra.mxu0 %v411
    %v4638 = vpop.f32.mrf.mxu0
    %v4639 = vadd.f32 %v4610, %v4638
    %v4640 = vpop.f32.mrf.mxu0
    %v4641 = vadd.f32 %v4612, %v4640
    %4642 = vmatmul.bf16.gmra.mxu0 %v417
    %v4643 = vpop.f32.mrf.mxu0
    %v4644 = vadd.f32 %v4615, %v4643
    %v4645 = vpop.f32.mrf.mxu0
    %v4646 = vadd.f32 %v4617, %v4645
    %4647 = vdwg.mxu0
    %4648 = vmatpush.bf16.msra.mxu0 %v3652
    %4649 = vmatpush.bf16.msra.mxu0 %v3646
    %4650 = vmatpush.bf16.msra.mxu0 %v3640
    %4651 = vmatpush.bf16.msra.mxu0 %v3634
    %4652 = vmatpush.bf16.msra.mxu0 %v3628
    %4653 = vmatpush.bf16.msra.mxu0 %v3622
    %4654 = vmatpush.bf16.msra.mxu0 %v3616
    %4655 = vmatpush.bf16.msra.mxu0 %v3610
    %4656 = vmatmul.bf16.gmra.mxu0 %v400
    %v4657 = vpop.f32.mrf.mxu0
    %v4658 = vadd.f32 %v4629, %v4657
    %v4659 = vpop.f32.mrf.mxu0
    %v4660 = vadd.f32 %v4631, %v4659
    %4661 = vmatmul.bf16.gmra.mxu0 %v406
    %v4662 = vpop.f32.mrf.mxu0
    %v4663 = vadd.f32 %v4634, %v4662
    %v4664 = vpop.f32.mrf.mxu0
    %v4665 = vadd.f32 %v4636, %v4664
    %4666 = vmatmul.bf16.gmra.mxu0 %v412
    %v4667 = vpop.f32.mrf.mxu0
    %v4668 = vadd.f32 %v4639, %v4667
    %v4669 = vpop.f32.mrf.mxu0
    %v4670 = vadd.f32 %v4641, %v4669
    %4671 = vmatmul.bf16.gmra.mxu0 %v418
    %v4672 = vpop.f32.mrf.mxu0
    %v4673 = vadd.f32 %v4644, %v4672
    %v4674 = vpop.f32.mrf.mxu0
    %v4675 = vadd.f32 %v4646, %v4674
    %4676 = vdwg.mxu0
    %4677 = vmatpush.bf16.msra.mxu0 %v3700
    %4678 = vmatpush.bf16.msra.mxu0 %v3694
    %4679 = vmatpush.bf16.msra.mxu0 %v3688
    %4680 = vmatpush.bf16.msra.mxu0 %v3682
    %4681 = vmatpush.bf16.msra.mxu0 %v3676
    %4682 = vmatpush.bf16.msra.mxu0 %v3670
    %4683 = vmatpush.bf16.msra.mxu0 %v3664
    %4684 = vmatpush.bf16.msra.mxu0 %v3658
    %4685 = vmatmul.bf16.gmra.mxu0 %v401
    %v4686 = vpop.f32.mrf.mxu0
    %v4687 = vadd.f32 %v4658, %v4686
    %v4688 = vpop.f32.mrf.mxu0
    %v4689 = vadd.f32 %v4660, %v4688
    %4690 = vmatmul.bf16.gmra.mxu0 %v407
    %v4691 = vpop.f32.mrf.mxu0
    %v4692 = vadd.f32 %v4663, %v4691
    %v4693 = vpop.f32.mrf.mxu0
    %v4694 = vadd.f32 %v4665, %v4693
    %4695 = vmatmul.bf16.gmra.mxu0 %v413
    %v4696 = vpop.f32.mrf.mxu0
    %v4697 = vadd.f32 %v4668, %v4696
    %v4698 = vpop.f32.mrf.mxu0
    %v4699 = vadd.f32 %v4670, %v4698
    %4700 = vmatmul.bf16.gmra.mxu0 %v419
    %v4701 = vpop.f32.mrf.mxu0
    %v4702 = vadd.f32 %v4673, %v4701
    %v4703 = vpop.f32.mrf.mxu0
    %v4704 = vadd.f32 %v4675, %v4703
    %4705 = vdwg.mxu0
    %4706 = vmatpush.bf16.msra.mxu0 %v3748
    %4707 = vmatpush.bf16.msra.mxu0 %v3742
    %4708 = vmatpush.bf16.msra.mxu0 %v3736
    %4709 = vmatpush.bf16.msra.mxu0 %v3730
    %4710 = vmatpush.bf16.msra.mxu0 %v3724
    %4711 = vmatpush.bf16.msra.mxu0 %v3718
    %4712 = vmatpush.bf16.msra.mxu0 %v3712
    %4713 = vmatpush.bf16.msra.mxu0 %v3706
    %4714 = vmatmul.bf16.gmra.mxu0 %v402
    %v4715 = vpop.f32.mrf.mxu0
    %v4716 = vadd.f32 %v4687, %v4715
    %v4717 = vpop.f32.mrf.mxu0
    %v4718 = vadd.f32 %v4689, %v4717
    %4719 = vmatmul.bf16.gmra.mxu0 %v408
    %v4720 = vpop.f32.mrf.mxu0
    %v4721 = vadd.f32 %v4692, %v4720
    %v4722 = vpop.f32.mrf.mxu0
    %v4723 = vadd.f32 %v4694, %v4722
    %4724 = vmatmul.bf16.gmra.mxu0 %v414
    %v4725 = vpop.f32.mrf.mxu0
    %v4726 = vadd.f32 %v4697, %v4725
    %v4727 = vpop.f32.mrf.mxu0
    %v4728 = vadd.f32 %v4699, %v4727
    %4729 = vmatmul.bf16.gmra.mxu0 %v420
    %v4730 = vpop.f32.mrf.mxu0
    %v4731 = vadd.f32 %v4702, %v4730
    %v4732 = vpop.f32.mrf.mxu0
    %v4733 = vadd.f32 %v4704, %v4732
    %4734 = vdwg.mxu0
    %4735 = vmatpush.bf16.msra.mxu0 %v3509
    %4736 = vmatpush.bf16.msra.mxu0 %v3503
    %4737 = vmatpush.bf16.msra.mxu0 %v3497
    %4738 = vmatpush.bf16.msra.mxu0 %v3491
    %4739 = vmatpush.bf16.msra.mxu0 %v3485
    %4740 = vmatpush.bf16.msra.mxu0 %v3479
    %4741 = vmatpush.bf16.msra.mxu0 %v3473
    %4742 = vmatpush.bf16.msra.mxu0 %v3467
    %4743 = vmatmul.bf16.gmra.mxu0 %v397
    %v4744 = vpop.f32.mrf.mxu0
    %v4745 = vadd.f32 %v2591, %v4744
    %v4746 = vpop.f32.mrf.mxu0
    %v4747 = vadd.f32 %v2591, %v4746
    %4748 = vmatmul.bf16.gmra.mxu0 %v403
    %v4749 = vpop.f32.mrf.mxu0
    %v4750 = vadd.f32 %v2591, %v4749
    %v4751 = vpop.f32.mrf.mxu0
    %v4752 = vadd.f32 %v2591, %v4751
    %4753 = vmatmul.bf16.gmra.mxu0 %v409
    %v4754 = vpop.f32.mrf.mxu0
    %v4755 = vadd.f32 %v2591, %v4754
    %v4756 = vpop.f32.mrf.mxu0
    %v4757 = vadd.f32 %v2591, %v4756
    %4758 = vmatmul.bf16.gmra.mxu0 %v415
    %v4759 = vpop.f32.mrf.mxu0
    %v4760 = vadd.f32 %v2591, %v4759
    %v4761 = vpop.f32.mrf.mxu0
    %v4762 = vadd.f32 %v2591, %v4761
    %4763 = vdwg.mxu0
    %4764 = vmatpush.bf16.msra.mxu0 %v3557
    %4765 = vmatpush.bf16.msra.mxu0 %v3551
    %4766 = vmatpush.bf16.msra.mxu0 %v3545
    %4767 = vmatpush.bf16.msra.mxu0 %v3539
    %4768 = vmatpush.bf16.msra.mxu0 %v3533
    %4769 = vmatpush.bf16.msra.mxu0 %v3527
    %4770 = vmatpush.bf16.msra.mxu0 %v3521
    %4771 = vmatpush.bf16.msra.mxu0 %v3515
    %4772 = vmatmul.bf16.gmra.mxu0 %v398
    %v4773 = vpop.f32.mrf.mxu0
    %v4774 = vadd.f32 %v4745, %v4773
    %v4775 = vpop.f32.mrf.mxu0
    %v4776 = vadd.f32 %v4747, %v4775
    %4777 = vmatmul.bf16.gmra.mxu0 %v404
    %v4778 = vpop.f32.mrf.mxu0
    %v4779 = vadd.f32 %v4750, %v4778
    %v4780 = vpop.f32.mrf.mxu0
    %v4781 = vadd.f32 %v4752, %v4780
    %4782 = vmatmul.bf16.gmra.mxu0 %v410
    %v4783 = vpop.f32.mrf.mxu0
    %v4784 = vadd.f32 %v4755, %v4783
    %v4785 = vpop.f32.mrf.mxu0
    %v4786 = vadd.f32 %v4757, %v4785
    %4787 = vmatmul.bf16.gmra.mxu0 %v416
    %v4788 = vpop.f32.mrf.mxu0
    %v4789 = vadd.f32 %v4760, %v4788
    %v4790 = vpop.f32.mrf.mxu0
    %v4791 = vadd.f32 %v4762, %v4790
    %4792 = vdwg.mxu0
    %4793 = vmatpush.bf16.msra.mxu0 %v3605
    %4794 = vmatpush.bf16.msra.mxu0 %v3599
    %4795 = vmatpush.bf16.msra.mxu0 %v3593
    %4796 = vmatpush.bf16.msra.mxu0 %v3587
    %4797 = vmatpush.bf16.msra.mxu0 %v3581
    %4798 = vmatpush.bf16.msra.mxu0 %v3575
    %4799 = vmatpush.bf16.msra.mxu0 %v3569
    %4800 = vmatpush.bf16.msra.mxu0 %v3563
    %4801 = vmatmul.bf16.gmra.mxu0 %v399
    %v4802 = vpop.f32.mrf.mxu0
    %v4803 = vadd.f32 %v4774, %v4802
    %v4804 = vpop.f32.mrf.mxu0
    %v4805 = vadd.f32 %v4776, %v4804
    %4806 = vmatmul.bf16.gmra.mxu0 %v405
    %v4807 = vpop.f32.mrf.mxu0
    %v4808 = vadd.f32 %v4779, %v4807
    %v4809 = vpop.f32.mrf.mxu0
    %v4810 = vadd.f32 %v4781, %v4809
    %4811 = vmatmul.bf16.gmra.mxu0 %v411
    %v4812 = vpop.f32.mrf.mxu0
    %v4813 = vadd.f32 %v4784, %v4812
    %v4814 = vpop.f32.mrf.mxu0
    %v4815 = vadd.f32 %v4786, %v4814
    %4816 = vmatmul.bf16.gmra.mxu0 %v417
    %v4817 = vpop.f32.mrf.mxu0
    %v4818 = vadd.f32 %v4789, %v4817
    %v4819 = vpop.f32.mrf.mxu0
    %v4820 = vadd.f32 %v4791, %v4819
    %4821 = vdwg.mxu0
    %4822 = vmatpush.bf16.msra.mxu0 %v3653
    %4823 = vmatpush.bf16.msra.mxu0 %v3647
    %4824 = vmatpush.bf16.msra.mxu0 %v3641
    %4825 = vmatpush.bf16.msra.mxu0 %v3635
    %4826 = vmatpush.bf16.msra.mxu0 %v3629
    %4827 = vmatpush.bf16.msra.mxu0 %v3623
    %4828 = vmatpush.bf16.msra.mxu0 %v3617
    %4829 = vmatpush.bf16.msra.mxu0 %v3611
    %4830 = vmatmul.bf16.gmra.mxu0 %v400
    %v4831 = vpop.f32.mrf.mxu0
    %v4832 = vadd.f32 %v4803, %v4831
    %v4833 = vpop.f32.mrf.mxu0
    %v4834 = vadd.f32 %v4805, %v4833
    %4835 = vmatmul.bf16.gmra.mxu0 %v406
    %v4836 = vpop.f32.mrf.mxu0
    %v4837 = vadd.f32 %v4808, %v4836
    %v4838 = vpop.f32.mrf.mxu0
    %v4839 = vadd.f32 %v4810, %v4838
    %4840 = vmatmul.bf16.gmra.mxu0 %v412
    %v4841 = vpop.f32.mrf.mxu0
    %v4842 = vadd.f32 %v4813, %v4841
    %v4843 = vpop.f32.mrf.mxu0
    %v4844 = vadd.f32 %v4815, %v4843
    %4845 = vmatmul.bf16.gmra.mxu0 %v418
    %v4846 = vpop.f32.mrf.mxu0
    %v4847 = vadd.f32 %v4818, %v4846
    %v4848 = vpop.f32.mrf.mxu0
    %v4849 = vadd.f32 %v4820, %v4848
    %4850 = vdwg.mxu0
    %4851 = vmatpush.bf16.msra.mxu0 %v3701
    %4852 = vmatpush.bf16.msra.mxu0 %v3695
    %4853 = vmatpush.bf16.msra.mxu0 %v3689
    %4854 = vmatpush.bf16.msra.mxu0 %v3683
    %4855 = vmatpush.bf16.msra.mxu0 %v3677
    %4856 = vmatpush.bf16.msra.mxu0 %v3671
    %4857 = vmatpush.bf16.msra.mxu0 %v3665
    %4858 = vmatpush.bf16.msra.mxu0 %v3659
    %4859 = vmatmul.bf16.gmra.mxu0 %v401
    %v4860 = vpop.f32.mrf.mxu0
    %v4861 = vadd.f32 %v4832, %v4860
    %v4862 = vpop.f32.mrf.mxu0
    %v4863 = vadd.f32 %v4834, %v4862
    %4864 = vmatmul.bf16.gmra.mxu0 %v407
    %v4865 = vpop.f32.mrf.mxu0
    %v4866 = vadd.f32 %v4837, %v4865
    %v4867 = vpop.f32.mrf.mxu0
    %v4868 = vadd.f32 %v4839, %v4867
    %4869 = vmatmul.bf16.gmra.mxu0 %v413
    %v4870 = vpop.f32.mrf.mxu0
    %v4871 = vadd.f32 %v4842, %v4870
    %v4872 = vpop.f32.mrf.mxu0
    %v4873 = vadd.f32 %v4844, %v4872
    %4874 = vmatmul.bf16.gmra.mxu0 %v419
    %v4875 = vpop.f32.mrf.mxu0
    %v4876 = vadd.f32 %v4847, %v4875
    %v4877 = vpop.f32.mrf.mxu0
    %v4878 = vadd.f32 %v4849, %v4877
    %4879 = vdwg.mxu0
    %4880 = vmatpush.bf16.msra.mxu0 %v3749
    %4881 = vmatpush.bf16.msra.mxu0 %v3743
    %4882 = vmatpush.bf16.msra.mxu0 %v3737
    %4883 = vmatpush.bf16.msra.mxu0 %v3731
    %4884 = vmatpush.bf16.msra.mxu0 %v3725
    %4885 = vmatpush.bf16.msra.mxu0 %v3719
    %4886 = vmatpush.bf16.msra.mxu0 %v3713
    %4887 = vmatpush.bf16.msra.mxu0 %v3707
    %4888 = vmatmul.bf16.gmra.mxu0 %v402
    %v4889 = vpop.f32.mrf.mxu0
    %v4890 = vadd.f32 %v4861, %v4889
    %v4891 = vpop.f32.mrf.mxu0
    %v4892 = vadd.f32 %v4863, %v4891
    %4893 = vmatmul.bf16.gmra.mxu0 %v408
    %v4894 = vpop.f32.mrf.mxu0
    %v4895 = vadd.f32 %v4866, %v4894
    %v4896 = vpop.f32.mrf.mxu0
    %v4897 = vadd.f32 %v4868, %v4896
    %4898 = vmatmul.bf16.gmra.mxu0 %v414
    %v4899 = vpop.f32.mrf.mxu0
    %v4900 = vadd.f32 %v4871, %v4899
    %v4901 = vpop.f32.mrf.mxu0
    %v4902 = vadd.f32 %v4873, %v4901
    %4903 = vmatmul.bf16.gmra.mxu0 %v420
    %v4904 = vpop.f32.mrf.mxu0
    %v4905 = vadd.f32 %v4876, %v4904
    %v4906 = vpop.f32.mrf.mxu0
    %v4907 = vadd.f32 %v4878, %v4906
    %4908 = vdwg.mxu0
    %4909 = vmatpush.bf16.msra.mxu0 %v3510
    %4910 = vmatpush.bf16.msra.mxu0 %v3504
    %4911 = vmatpush.bf16.msra.mxu0 %v3498
    %4912 = vmatpush.bf16.msra.mxu0 %v3492
    %4913 = vmatpush.bf16.msra.mxu0 %v3486
    %4914 = vmatpush.bf16.msra.mxu0 %v3480
    %4915 = vmatpush.bf16.msra.mxu0 %v3474
    %4916 = vmatpush.bf16.msra.mxu0 %v3468
    %4917 = vmatmul.bf16.gmra.mxu0 %v397
    %v4918 = vpop.f32.mrf.mxu0
    %v4919 = vadd.f32 %v2592, %v4918
    %v4920 = vpop.f32.mrf.mxu0
    %v4921 = vadd.f32 %v2592, %v4920
    %4922 = vmatmul.bf16.gmra.mxu0 %v403
    %v4923 = vpop.f32.mrf.mxu0
    %v4924 = vadd.f32 %v2592, %v4923
    %v4925 = vpop.f32.mrf.mxu0
    %v4926 = vadd.f32 %v2592, %v4925
    %4927 = vmatmul.bf16.gmra.mxu0 %v409
    %v4928 = vpop.f32.mrf.mxu0
    %v4929 = vadd.f32 %v2592, %v4928
    %v4930 = vpop.f32.mrf.mxu0
    %v4931 = vadd.f32 %v2592, %v4930
    %4932 = vmatmul.bf16.gmra.mxu0 %v415
    %v4933 = vpop.f32.mrf.mxu0
    %v4934 = vadd.f32 %v2592, %v4933
    %v4935 = vpop.f32.mrf.mxu0
    %v4936 = vadd.f32 %v2592, %v4935
    %4937 = vdwg.mxu0
    %4938 = vmatpush.bf16.msra.mxu0 %v3558
    %4939 = vmatpush.bf16.msra.mxu0 %v3552
    %4940 = vmatpush.bf16.msra.mxu0 %v3546
    %4941 = vmatpush.bf16.msra.mxu0 %v3540
    %4942 = vmatpush.bf16.msra.mxu0 %v3534
    %4943 = vmatpush.bf16.msra.mxu0 %v3528
    %4944 = vmatpush.bf16.msra.mxu0 %v3522
    %4945 = vmatpush.bf16.msra.mxu0 %v3516
    %4946 = vmatmul.bf16.gmra.mxu0 %v398
    %v4947 = vpop.f32.mrf.mxu0
    %v4948 = vadd.f32 %v4919, %v4947
    %v4949 = vpop.f32.mrf.mxu0
    %v4950 = vadd.f32 %v4921, %v4949
    %4951 = vmatmul.bf16.gmra.mxu0 %v404
    %v4952 = vpop.f32.mrf.mxu0
    %v4953 = vadd.f32 %v4924, %v4952
    %v4954 = vpop.f32.mrf.mxu0
    %v4955 = vadd.f32 %v4926, %v4954
    %4956 = vmatmul.bf16.gmra.mxu0 %v410
    %v4957 = vpop.f32.mrf.mxu0
    %v4958 = vadd.f32 %v4929, %v4957
    %v4959 = vpop.f32.mrf.mxu0
    %v4960 = vadd.f32 %v4931, %v4959
    %4961 = vmatmul.bf16.gmra.mxu0 %v416
    %v4962 = vpop.f32.mrf.mxu0
    %v4963 = vadd.f32 %v4934, %v4962
    %v4964 = vpop.f32.mrf.mxu0
    %v4965 = vadd.f32 %v4936, %v4964
    %4966 = vdwg.mxu0
    %4967 = vmatpush.bf16.msra.mxu0 %v3606
    %4968 = vmatpush.bf16.msra.mxu0 %v3600
    %4969 = vmatpush.bf16.msra.mxu0 %v3594
    %4970 = vmatpush.bf16.msra.mxu0 %v3588
    %4971 = vmatpush.bf16.msra.mxu0 %v3582
    %4972 = vmatpush.bf16.msra.mxu0 %v3576
    %4973 = vmatpush.bf16.msra.mxu0 %v3570
    %4974 = vmatpush.bf16.msra.mxu0 %v3564
    %4975 = vmatmul.bf16.gmra.mxu0 %v399
    %v4976 = vpop.f32.mrf.mxu0
    %v4977 = vadd.f32 %v4948, %v4976
    %v4978 = vpop.f32.mrf.mxu0
    %v4979 = vadd.f32 %v4950, %v4978
    %4980 = vmatmul.bf16.gmra.mxu0 %v405
    %v4981 = vpop.f32.mrf.mxu0
    %v4982 = vadd.f32 %v4953, %v4981
    %v4983 = vpop.f32.mrf.mxu0
    %v4984 = vadd.f32 %v4955, %v4983
    %4985 = vmatmul.bf16.gmra.mxu0 %v411
    %v4986 = vpop.f32.mrf.mxu0
    %v4987 = vadd.f32 %v4958, %v4986
    %v4988 = vpop.f32.mrf.mxu0
    %v4989 = vadd.f32 %v4960, %v4988
    %4990 = vmatmul.bf16.gmra.mxu0 %v417
    %v4991 = vpop.f32.mrf.mxu0
    %v4992 = vadd.f32 %v4963, %v4991
    %v4993 = vpop.f32.mrf.mxu0
    %v4994 = vadd.f32 %v4965, %v4993
    %4995 = vdwg.mxu0
    %4996 = vmatpush.bf16.msra.mxu0 %v3654
    %4997 = vmatpush.bf16.msra.mxu0 %v3648
    %4998 = vmatpush.bf16.msra.mxu0 %v3642
    %4999 = vmatpush.bf16.msra.mxu0 %v3636
    %5000 = vmatpush.bf16.msra.mxu0 %v3630
    %5001 = vmatpush.bf16.msra.mxu0 %v3624
    %5002 = vmatpush.bf16.msra.mxu0 %v3618
    %5003 = vmatpush.bf16.msra.mxu0 %v3612
    %5004 = vmatmul.bf16.gmra.mxu0 %v400
    %v5005 = vpop.f32.mrf.mxu0
    %v5006 = vadd.f32 %v4977, %v5005
    %v5007 = vpop.f32.mrf.mxu0
    %v5008 = vadd.f32 %v4979, %v5007
    %5009 = vmatmul.bf16.gmra.mxu0 %v406
    %v5010 = vpop.f32.mrf.mxu0
    %v5011 = vadd.f32 %v4982, %v5010
    %v5012 = vpop.f32.mrf.mxu0
    %v5013 = vadd.f32 %v4984, %v5012
    %5014 = vmatmul.bf16.gmra.mxu0 %v412
    %v5015 = vpop.f32.mrf.mxu0
    %v5016 = vadd.f32 %v4987, %v5015
    %v5017 = vpop.f32.mrf.mxu0
    %v5018 = vadd.f32 %v4989, %v5017
    %5019 = vmatmul.bf16.gmra.mxu0 %v418
    %v5020 = vpop.f32.mrf.mxu0
    %v5021 = vadd.f32 %v4992, %v5020
    %v5022 = vpop.f32.mrf.mxu0
    %v5023 = vadd.f32 %v4994, %v5022
    %5024 = vdwg.mxu0
    %5025 = vmatpush.bf16.msra.mxu0 %v3702
    %5026 = vmatpush.bf16.msra.mxu0 %v3696
    %5027 = vmatpush.bf16.msra.mxu0 %v3690
    %5028 = vmatpush.bf16.msra.mxu0 %v3684
    %5029 = vmatpush.bf16.msra.mxu0 %v3678
    %5030 = vmatpush.bf16.msra.mxu0 %v3672
    %5031 = vmatpush.bf16.msra.mxu0 %v3666
    %5032 = vmatpush.bf16.msra.mxu0 %v3660
    %5033 = vmatmul.bf16.gmra.mxu0 %v401
    %v5034 = vpop.f32.mrf.mxu0
    %v5035 = vadd.f32 %v5006, %v5034
    %v5036 = vpop.f32.mrf.mxu0
    %v5037 = vadd.f32 %v5008, %v5036
    %5038 = vmatmul.bf16.gmra.mxu0 %v407
    %v5039 = vpop.f32.mrf.mxu0
    %v5040 = vadd.f32 %v5011, %v5039
    %v5041 = vpop.f32.mrf.mxu0
    %v5042 = vadd.f32 %v5013, %v5041
    %5043 = vmatmul.bf16.gmra.mxu0 %v413
    %v5044 = vpop.f32.mrf.mxu0
    %v5045 = vadd.f32 %v5016, %v5044
    %v5046 = vpop.f32.mrf.mxu0
    %v5047 = vadd.f32 %v5018, %v5046
    %5048 = vmatmul.bf16.gmra.mxu0 %v419
    %v5049 = vpop.f32.mrf.mxu0
    %v5050 = vadd.f32 %v5021, %v5049
    %v5051 = vpop.f32.mrf.mxu0
    %v5052 = vadd.f32 %v5023, %v5051
    %5053 = vdwg.mxu0
    %5054 = vmatpush.bf16.msra.mxu0 %v3750
    %5055 = vmatpush.bf16.msra.mxu0 %v3744
    %5056 = vmatpush.bf16.msra.mxu0 %v3738
    %5057 = vmatpush.bf16.msra.mxu0 %v3732
    %5058 = vmatpush.bf16.msra.mxu0 %v3726
    %5059 = vmatpush.bf16.msra.mxu0 %v3720
    %5060 = vmatpush.bf16.msra.mxu0 %v3714
    %5061 = vmatpush.bf16.msra.mxu0 %v3708
    %5062 = vmatmul.bf16.gmra.mxu0 %v402
    %v5063 = vpop.f32.mrf.mxu0
    %v5064 = vadd.f32 %v5035, %v5063
    %v5065 = vpop.f32.mrf.mxu0
    %v5066 = vadd.f32 %v5037, %v5065
    %5067 = vmatmul.bf16.gmra.mxu0 %v408
    %v5068 = vpop.f32.mrf.mxu0
    %v5069 = vadd.f32 %v5040, %v5068
    %v5070 = vpop.f32.mrf.mxu0
    %v5071 = vadd.f32 %v5042, %v5070
    %5072 = vmatmul.bf16.gmra.mxu0 %v414
    %v5073 = vpop.f32.mrf.mxu0
    %v5074 = vadd.f32 %v5045, %v5073
    %v5075 = vpop.f32.mrf.mxu0
    %v5076 = vadd.f32 %v5047, %v5075
    %5077 = vmatmul.bf16.gmra.mxu0 %v420
    %v5078 = vpop.f32.mrf.mxu0
    %v5079 = vadd.f32 %v5050, %v5078
    %v5080 = vpop.f32.mrf.mxu0
    %v5081 = vadd.f32 %v5052, %v5080
    %5082 = vdwg.mxu0
    %v5083 = vpack.c.bf16 %v4196, %v4194
    %v5084 = vpack.c.bf16 %v4370, %v4368
    %v5085 = vpack.c.bf16 %v4544, %v4542
    %v5086 = vpack.c.bf16 %v4718, %v4716
    %v5087 = vpack.c.bf16 %v4892, %v4890
    %v5088 = vpack.c.bf16 %v5066, %v5064
    %v5089 = vpack.c.bf16 %v4201, %v4199
    %v5090 = vpack.c.bf16 %v4375, %v4373
    %v5091 = vpack.c.bf16 %v4549, %v4547
    %v5092 = vpack.c.bf16 %v4723, %v4721
    %v5093 = vpack.c.bf16 %v4897, %v4895
    %v5094 = vpack.c.bf16 %v5071, %v5069
    %v5095 = vpack.c.bf16 %v4206, %v4204
    %v5096 = vpack.c.bf16 %v4380, %v4378
    %v5097 = vpack.c.bf16 %v4554, %v4552
    %v5098 = vpack.c.bf16 %v4728, %v4726
    %v5099 = vpack.c.bf16 %v4902, %v4900
    %v5100 = vpack.c.bf16 %v5076, %v5074
    %v5101 = vpack.c.bf16 %v4211, %v4209
    %v5102 = vpack.c.bf16 %v4385, %v4383
    %v5103 = vpack.c.bf16 %v4559, %v4557
    %v5104 = vpack.c.bf16 %v4733, %v4731
    %v5105 = vpack.c.bf16 %v4907, %v4905
    %v5106 = vpack.c.bf16 %v5081, %v5079
    %5107 = vmatpush.bf16.xpose.msra.mxu0 0
    %5108 = vmatpush.bf16.xpose.msra.mxu0 0
    %5109 = vmatpush.bf16.xpose.msra.mxu0 0
    %5110 = vmatpush.bf16.xpose.msra.mxu0 0
    %5111 = vmatpush.bf16.xpose.msra.mxu0 %v2295
    %5112 = vmatpush.bf16.xpose.msra.mxu0 %v2293
    %5113 = vmatpush.bf16.xpose.msra.mxu0 %v2291
    %5114 = vmatpush.bf16.xpose.msra.mxu0 %v2289
    %5115 = vmatmul.bf16.gmra.mxu0 %v1351
    %v5116 = vpop.f32.mrf.mxu0
    %v5117 = vadd.f32 0.0, %v5116
    %v5118 = vpop.f32.mrf.mxu0
    %v5119 = vadd.f32 0.0, %v5118
    %5120 = vmatmul.bf16.gmra.mxu0 %v1353
    %v5121 = vpop.f32.mrf.mxu0
    %v5122 = vadd.f32 0.0, %v5121
    %v5123 = vpop.f32.mrf.mxu0
    %v5124 = vadd.f32 0.0, %v5123
    %5125 = vmatmul.bf16.gmra.mxu0 %v1355
    %v5126 = vpop.f32.mrf.mxu0
    %v5127 = vadd.f32 0.0, %v5126
    %v5128 = vpop.f32.mrf.mxu0
    %v5129 = vadd.f32 0.0, %v5128
    %5130 = vmatmul.bf16.gmra.mxu0 %v1357
    %v5131 = vpop.f32.mrf.mxu0
    %v5132 = vadd.f32 0.0, %v5131
    %v5133 = vpop.f32.mrf.mxu0
    %v5134 = vadd.f32 0.0, %v5133
    %5135 = vdwg.mxu0
    %5136 = vmatpush.bf16.xpose.msra.mxu0 0
    %5137 = vmatpush.bf16.xpose.msra.mxu0 0
    %5138 = vmatpush.bf16.xpose.msra.mxu0 0
    %5139 = vmatpush.bf16.xpose.msra.mxu0 0
    %5140 = vmatpush.bf16.xpose.msra.mxu0 %v2296
    %5141 = vmatpush.bf16.xpose.msra.mxu0 %v2294
    %5142 = vmatpush.bf16.xpose.msra.mxu0 %v2292
    %5143 = vmatpush.bf16.xpose.msra.mxu0 %v2290
    %5144 = vmatmul.bf16.gmra.mxu0 %v1352
    %v5145 = vpop.f32.mrf.mxu0
    %v5146 = vadd.f32 %v5117, %v5145
    %v5147 = vpop.f32.mrf.mxu0
    %v5148 = vadd.f32 %v5119, %v5147
    %5149 = vmatmul.bf16.gmra.mxu0 %v1354
    %v5150 = vpop.f32.mrf.mxu0
    %v5151 = vadd.f32 %v5122, %v5150
    %v5152 = vpop.f32.mrf.mxu0
    %v5153 = vadd.f32 %v5124, %v5152
    %5154 = vmatmul.bf16.gmra.mxu0 %v1356
    %v5155 = vpop.f32.mrf.mxu0
    %v5156 = vadd.f32 %v5127, %v5155
    %v5157 = vpop.f32.mrf.mxu0
    %v5158 = vadd.f32 %v5129, %v5157
    %5159 = vmatmul.bf16.gmra.mxu0 %v1358
    %v5160 = vpop.f32.mrf.mxu0
    %v5161 = vadd.f32 %v5132, %v5160
    %v5162 = vpop.f32.mrf.mxu0
    %v5163 = vadd.f32 %v5134, %v5162
    %5164 = vdwg.mxu0
    %v5165 = vld [vmem:[#allocation17] sm:$0xff]
    %v5166 = vld [vmem:[#allocation17 + $0x8] sm:$0xff]
    %v5167 = vld [vmem:[#allocation17 + $0x10] sm:$0xff]
    %v5168 = vld [vmem:[#allocation17 + $0x18] sm:$0xff]
    %v5169 = vld [vmem:[#allocation17 + $0x20] sm:$0xff]
    %v5170 = vld [vmem:[#allocation17 + $0x28] sm:$0xff]
    %v5171 = vld [vmem:[#allocation17 + $0x30] sm:$0xff]
    %v5172 = vld [vmem:[#allocation17 + $0x38] sm:$0xff]
    %v5173 = vmul.f32 %v5146, %v5165
    %v5174 = vmul.f32 %v5148, %v5166
    %v5175 = vmul.f32 %v5151, %v5167
    %v5176 = vmul.f32 %v5153, %v5168
    %v5177 = vmul.f32 %v5156, %v5169
    %v5178 = vmul.f32 %v5158, %v5170
    %v5179 = vmul.f32 %v5161, %v5171
    %v5180 = vmul.f32 %v5163, %v5172
    %v5181 = vld [vmem:[#allocation19] sm:$0xff]
    %v5182 = vld [vmem:[#allocation19 + $0x8] sm:$0xff]
    %v5183 = vld [vmem:[#allocation19 + $0x10] sm:$0xff]
    %v5184 = vld [vmem:[#allocation19 + $0x18] sm:$0xff]
    %v5185 = vld [vmem:[#allocation19 + $0x20] sm:$0xff]
    %v5186 = vld [vmem:[#allocation19 + $0x28] sm:$0xff]
    %v5187 = vld [vmem:[#allocation19 + $0x30] sm:$0xff]
    %v5188 = vld [vmem:[#allocation19 + $0x38] sm:$0xff]
    %v5189 = vadd.f32 %v5173, %v5181
    %v5190 = vadd.f32 %v5174, %v5182
    %v5191 = vadd.f32 %v5175, %v5183
    %v5192 = vadd.f32 %v5176, %v5184
    %v5193 = vadd.f32 %v5177, %v5185
    %v5194 = vadd.f32 %v5178, %v5186
    %v5195 = vadd.f32 %v5179, %v5187
    %v5196 = vadd.f32 %v5180, %v5188
    %vm5197 = vcmask 523264
    %v5198 = vsel %vm5197, %v5189, -inf
    %5199 = vmax.xlane.f32.xlu0 %v5198
    %v5200 = vpop.xlane.xlu0 %5199
    %v5201 = vsel %vm5197, %v5190, -inf
    %5202 = vmax.xlane.f32.xlu0 %v5201
    %v5203 = vpop.xlane.xlu0 %5202
    %v5204 = vsel %vm5197, %v5191, -inf
    %5205 = vmax.xlane.f32.xlu0 %v5204
    %v5206 = vpop.xlane.xlu0 %5205
    %v5207 = vsel %vm5197, %v5192, -inf
    %5208 = vmax.xlane.f32.xlu0 %v5207
    %v5209 = vpop.xlane.xlu0 %5208
    %v5210 = vsel %vm5197, %v5193, -inf
    %5211 = vmax.xlane.f32.xlu0 %v5210
    %v5212 = vpop.xlane.xlu0 %5211
    %v5213 = vsel %vm5197, %v5194, -inf
    %5214 = vmax.xlane.f32.xlu0 %v5213
    %v5215 = vpop.xlane.xlu0 %5214
    %v5216 = vsel %vm5197, %v5195, -inf
    %5217 = vmax.xlane.f32.xlu0 %v5216
    %v5218 = vpop.xlane.xlu0 %5217
    %v5219 = vsel %vm5197, %v5196, -inf
    %5220 = vmax.xlane.f32.xlu0 %v5219
    %v5221 = vpop.xlane.xlu0 %5220
    %v5222 = vsub.f32 %v5189, %v5200
    %v5223 = vsub.f32 %v5190, %v5203
    %v5224 = vsub.f32 %v5191, %v5206
    %v5225 = vsub.f32 %v5192, %v5209
    %v5226 = vsub.f32 %v5193, %v5212
    %v5227 = vsub.f32 %v5194, %v5215
    %v5228 = vsub.f32 %v5195, %v5218
    %v5229 = vsub.f32 %v5196, %v5221
    %v5230 = vmul.f32 %v5222, 1.442695
    %v5231 = vpow.pop %v5230
    %v5232 = vmul.f32 %v5223, 1.442695
    %v5233 = vpow.pop %v5232
    %v5234 = vmul.f32 %v5224, 1.442695
    %v5235 = vpow.pop %v5234
    %v5236 = vmul.f32 %v5225, 1.442695
    %v5237 = vpow.pop %v5236
    %v5238 = vmul.f32 %v5226, 1.442695
    %v5239 = vpow.pop %v5238
    %v5240 = vmul.f32 %v5227, 1.442695
    %v5241 = vpow.pop %v5240
    %v5242 = vmul.f32 %v5228, 1.442695
    %v5243 = vpow.pop %v5242
    %v5244 = vmul.f32 %v5229, 1.442695
    %v5245 = vpow.pop %v5244
    %v5246 = vsel %vm5197, %v5231, 0.0
    %5247 = vadd.xlane.f32.xlu0 %v5246
    %v5248 = vpop.xlane.xlu0 %5247
    %v5249 = vsel %vm5197, %v5233, 0.0
    %5250 = vadd.xlane.f32.xlu0 %v5249
    %v5251 = vpop.xlane.xlu0 %5250
    %v5252 = vsel %vm5197, %v5235, 0.0
    %5253 = vadd.xlane.f32.xlu0 %v5252
    %v5254 = vpop.xlane.xlu0 %5253
    %v5255 = vsel %vm5197, %v5237, 0.0
    %5256 = vadd.xlane.f32.xlu0 %v5255
    %v5257 = vpop.xlane.xlu0 %5256
    %v5258 = vsel %vm5197, %v5239, 0.0
    %5259 = vadd.xlane.f32.xlu0 %v5258
    %v5260 = vpop.xlane.xlu0 %5259
    %v5261 = vsel %vm5197, %v5241, 0.0
    %5262 = vadd.xlane.f32.xlu0 %v5261
    %v5263 = vpop.xlane.xlu0 %5262
    %v5264 = vsel %vm5197, %v5243, 0.0
    %5265 = vadd.xlane.f32.xlu0 %v5264
    %v5266 = vpop.xlane.xlu0 %5265
    %v5267 = vsel %vm5197, %v5245, 0.0
    %5268 = vadd.xlane.f32.xlu0 %v5267
    %v5269 = vpop.xlane.xlu0 %5268
    %v5270 = vrcp.pop %v5248
    %v5271 = vrcp.pop %v5251
    %v5272 = vrcp.pop %v5254
    %v5273 = vrcp.pop %v5257
    %v5274 = vrcp.pop %v5260
    %v5275 = vrcp.pop %v5263
    %v5276 = vrcp.pop %v5266
    %v5277 = vrcp.pop %v5269
    %v5278 = vmul.f32 %v5231, %v5270
    %v5279 = vmul.f32 %v5233, %v5271
    %v5280 = vmul.f32 %v5235, %v5272
    %v5281 = vmul.f32 %v5237, %v5273
    %v5282 = vmul.f32 %v5239, %v5274
    %v5283 = vmul.f32 %v5241, %v5275
    %v5284 = vmul.f32 %v5243, %v5276
    %v5285 = vmul.f32 %v5245, %v5277
    %v5286 = vpack.c.bf16 %v5279, %v5278
    %v5287 = vpack.c.bf16 %v5281, %v5280
    %v5288 = vpack.c.bf16 %v5283, %v5282
    %v5289 = vpack.c.bf16 %v5285, %v5284
    %v5291 = vsel %vm5197, %v5286, 0
    %v5294 = vsel %vm5197, %v5287, 0
    %v5297 = vsel %vm5197, %v5288, 0
    %v5300 = vsel %vm5197, %v5289, 0
    %5302 = vmatpush.bf16.msra.mxu0 0
    %5303 = vmatpush.bf16.msra.mxu0 0
    %5304 = vmatpush.bf16.msra.mxu0 0
    %5305 = vmatpush.bf16.msra.mxu0 0
    %5306 = vmatpush.bf16.msra.mxu0 %v5101
    %5307 = vmatpush.bf16.msra.mxu0 %v5095
    %5308 = vmatpush.bf16.msra.mxu0 %v5089
    %5309 = vmatpush.bf16.msra.mxu0 %v5083
    %5310 = vmatmul.bf16.gmra.mxu0 %v5291
    %v5311 = vpop.f32.mrf.mxu0
    %v5312 = vadd.f32 0.0, %v5311
    %v5313 = vpop.f32.mrf.mxu0
    %v5314 = vadd.f32 0.0, %v5313
    %5315 = vmatmul.bf16.gmra.mxu0 %v5294
    %v5316 = vpop.f32.mrf.mxu0
    %v5317 = vadd.f32 0.0, %v5316
    %v5318 = vpop.f32.mrf.mxu0
    %v5319 = vadd.f32 0.0, %v5318
    %5320 = vmatmul.bf16.gmra.mxu0 %v5297
    %v5321 = vpop.f32.mrf.mxu0
    %v5322 = vadd.f32 0.0, %v5321
    %v5323 = vpop.f32.mrf.mxu0
    %v5324 = vadd.f32 0.0, %v5323
    %5325 = vmatmul.bf16.gmra.mxu0 %v5300
    %v5326 = vpop.f32.mrf.mxu0
    %v5327 = vadd.f32 0.0, %v5326
    %v5328 = vpop.f32.mrf.mxu0
    %v5329 = vadd.f32 0.0, %v5328
    %5330 = vdwg.mxu0
    %5331 = vmatpush.bf16.msra.mxu0 0
    %5332 = vmatpush.bf16.msra.mxu0 0
    %5333 = vmatpush.bf16.msra.mxu0 0
    %5334 = vmatpush.bf16.msra.mxu0 0
    %5335 = vmatpush.bf16.msra.mxu0 %v5102
    %5336 = vmatpush.bf16.msra.mxu0 %v5096
    %5337 = vmatpush.bf16.msra.mxu0 %v5090
    %5338 = vmatpush.bf16.msra.mxu0 %v5084
    %5339 = vmatmul.bf16.gmra.mxu0 %v5291
    %v5340 = vpop.f32.mrf.mxu0
    %v5341 = vadd.f32 0.0, %v5340
    %v5342 = vpop.f32.mrf.mxu0
    %v5343 = vadd.f32 0.0, %v5342
    %5344 = vmatmul.bf16.gmra.mxu0 %v5294
    %v5345 = vpop.f32.mrf.mxu0
    %v5346 = vadd.f32 0.0, %v5345
    %v5347 = vpop.f32.mrf.mxu0
    %v5348 = vadd.f32 0.0, %v5347
    %5349 = vmatmul.bf16.gmra.mxu0 %v5297
    %v5350 = vpop.f32.mrf.mxu0
    %v5351 = vadd.f32 0.0, %v5350
    %v5352 = vpop.f32.mrf.mxu0
    %v5353 = vadd.f32 0.0, %v5352
    %5354 = vmatmul.bf16.gmra.mxu0 %v5300
    %v5355 = vpop.f32.mrf.mxu0
    %v5356 = vadd.f32 0.0, %v5355
    %v5357 = vpop.f32.mrf.mxu0
    %v5358 = vadd.f32 0.0, %v5357
    %5359 = vdwg.mxu0
    %5360 = vmatpush.bf16.msra.mxu0 0
    %5361 = vmatpush.bf16.msra.mxu0 0
    %5362 = vmatpush.bf16.msra.mxu0 0
    %5363 = vmatpush.bf16.msra.mxu0 0
    %5364 = vmatpush.bf16.msra.mxu0 %v5103
    %5365 = vmatpush.bf16.msra.mxu0 %v5097
    %5366 = vmatpush.bf16.msra.mxu0 %v5091
    %5367 = vmatpush.bf16.msra.mxu0 %v5085
    %5368 = vmatmul.bf16.gmra.mxu0 %v5291
    %v5369 = vpop.f32.mrf.mxu0
    %v5370 = vadd.f32 0.0, %v5369
    %v5371 = vpop.f32.mrf.mxu0
    %v5372 = vadd.f32 0.0, %v5371
    %5373 = vmatmul.bf16.gmra.mxu0 %v5294
    %v5374 = vpop.f32.mrf.mxu0
    %v5375 = vadd.f32 0.0, %v5374
    %v5376 = vpop.f32.mrf.mxu0
    %v5377 = vadd.f32 0.0, %v5376
    %5378 = vmatmul.bf16.gmra.mxu0 %v5297
    %v5379 = vpop.f32.mrf.mxu0
    %v5380 = vadd.f32 0.0, %v5379
    %v5381 = vpop.f32.mrf.mxu0
    %v5382 = vadd.f32 0.0, %v5381
    %5383 = vmatmul.bf16.gmra.mxu0 %v5300
    %v5384 = vpop.f32.mrf.mxu0
    %v5385 = vadd.f32 0.0, %v5384
    %v5386 = vpop.f32.mrf.mxu0
    %v5387 = vadd.f32 0.0, %v5386
    %5388 = vdwg.mxu0
    %5389 = vmatpush.bf16.msra.mxu0 0
    %5390 = vmatpush.bf16.msra.mxu0 0
    %5391 = vmatpush.bf16.msra.mxu0 0
    %5392 = vmatpush.bf16.msra.mxu0 0
    %5393 = vmatpush.bf16.msra.mxu0 %v5104
    %5394 = vmatpush.bf16.msra.mxu0 %v5098
    %5395 = vmatpush.bf16.msra.mxu0 %v5092
    %5396 = vmatpush.bf16.msra.mxu0 %v5086
    %5397 = vmatmul.bf16.gmra.mxu0 %v5291
    %v5398 = vpop.f32.mrf.mxu0
    %v5399 = vadd.f32 0.0, %v5398
    %v5400 = vpop.f32.mrf.mxu0
    %v5401 = vadd.f32 0.0, %v5400
    %5402 = vmatmul.bf16.gmra.mxu0 %v5294
    %v5403 = vpop.f32.mrf.mxu0
    %v5404 = vadd.f32 0.0, %v5403
    %v5405 = vpop.f32.mrf.mxu0
    %v5406 = vadd.f32 0.0, %v5405
    %5407 = vmatmul.bf16.gmra.mxu0 %v5297
    %v5408 = vpop.f32.mrf.mxu0
    %v5409 = vadd.f32 0.0, %v5408
    %v5410 = vpop.f32.mrf.mxu0
    %v5411 = vadd.f32 0.0, %v5410
    %5412 = vmatmul.bf16.gmra.mxu0 %v5300
    %v5413 = vpop.f32.mrf.mxu0
    %v5414 = vadd.f32 0.0, %v5413
    %v5415 = vpop.f32.mrf.mxu0
    %v5416 = vadd.f32 0.0, %v5415
    %5417 = vdwg.mxu0
    %5418 = vmatpush.bf16.msra.mxu0 0
    %5419 = vmatpush.bf16.msra.mxu0 0
    %5420 = vmatpush.bf16.msra.mxu0 0
    %5421 = vmatpush.bf16.msra.mxu0 0
    %5422 = vmatpush.bf16.msra.mxu0 %v5105
    %5423 = vmatpush.bf16.msra.mxu0 %v5099
    %5424 = vmatpush.bf16.msra.mxu0 %v5093
    %5425 = vmatpush.bf16.msra.mxu0 %v5087
    %5426 = vmatmul.bf16.gmra.mxu0 %v5291
    %v5427 = vpop.f32.mrf.mxu0
    %v5428 = vadd.f32 0.0, %v5427
    %v5429 = vpop.f32.mrf.mxu0
    %v5430 = vadd.f32 0.0, %v5429
    %5431 = vmatmul.bf16.gmra.mxu0 %v5294
    %v5432 = vpop.f32.mrf.mxu0
    %v5433 = vadd.f32 0.0, %v5432
    %v5434 = vpop.f32.mrf.mxu0
    %v5435 = vadd.f32 0.0, %v5434
    %5436 = vmatmul.bf16.gmra.mxu0 %v5297
    %v5437 = vpop.f32.mrf.mxu0
    %v5438 = vadd.f32 0.0, %v5437
    %v5439 = vpop.f32.mrf.mxu0
    %v5440 = vadd.f32 0.0, %v5439
    %5441 = vmatmul.bf16.gmra.mxu0 %v5300
    %v5442 = vpop.f32.mrf.mxu0
    %v5443 = vadd.f32 0.0, %v5442
    %v5444 = vpop.f32.mrf.mxu0
    %v5445 = vadd.f32 0.0, %v5444
    %5446 = vdwg.mxu0
    %5447 = vmatpush.bf16.msra.mxu0 0
    %5448 = vmatpush.bf16.msra.mxu0 0
    %5449 = vmatpush.bf16.msra.mxu0 0
    %5450 = vmatpush.bf16.msra.mxu0 0
    %5451 = vmatpush.bf16.msra.mxu0 %v5106
    %5452 = vmatpush.bf16.msra.mxu0 %v5100
    %5453 = vmatpush.bf16.msra.mxu0 %v5094
    %5454 = vmatpush.bf16.msra.mxu0 %v5088
    %5455 = vmatmul.bf16.gmra.mxu0 %v5291
    %v5456 = vpop.f32.mrf.mxu0
    %v5457 = vadd.f32 0.0, %v5456
    %v5458 = vpop.f32.mrf.mxu0
    %v5459 = vadd.f32 0.0, %v5458
    %5460 = vmatmul.bf16.gmra.mxu0 %v5294
    %v5461 = vpop.f32.mrf.mxu0
    %v5462 = vadd.f32 0.0, %v5461
    %v5463 = vpop.f32.mrf.mxu0
    %v5464 = vadd.f32 0.0, %v5463
    %5465 = vmatmul.bf16.gmra.mxu0 %v5297
    %v5466 = vpop.f32.mrf.mxu0
    %v5467 = vadd.f32 0.0, %v5466
    %v5468 = vpop.f32.mrf.mxu0
    %v5469 = vadd.f32 0.0, %v5468
    %5470 = vmatmul.bf16.gmra.mxu0 %v5300
    %v5471 = vpop.f32.mrf.mxu0
    %v5472 = vadd.f32 0.0, %v5471
    %v5473 = vpop.f32.mrf.mxu0
    %v5474 = vadd.f32 0.0, %v5473
    %5475 = vdwg.mxu0
    %5476 = vst [vmem:[#allocation20] sm:$0xff] %v5312
    %5477 = vst [vmem:[#allocation20 + $0x8] sm:$0xff] %v5341
    %5478 = vst [vmem:[#allocation20 + $0x10] sm:$0xff] %v5370
    %5479 = vst [vmem:[#allocation20 + $0x18] sm:$0xff] %v5399
    %5480 = vst [vmem:[#allocation20 + $0x20] sm:$0xff] %v5428
    %5481 = vst [vmem:[#allocation20 + $0x28] sm:$0xff] %v5457
    %5482 = vst [vmem:[#allocation20 + $0x30] sm:$0xff] %v5314
    %5483 = vst [vmem:[#allocation20 + $0x38] sm:$0xff] %v5343
    %5484 = vst [vmem:[#allocation20 + $0x40] sm:$0xff] %v5372
    %5485 = vst [vmem:[#allocation20 + $0x48] sm:$0xff] %v5401
    %5486 = vst [vmem:[#allocation20 + $0x50] sm:$0xff] %v5430
    %5487 = vst [vmem:[#allocation20 + $0x58] sm:$0xff] %v5459
    %5488 = vst [vmem:[#allocation20 + $0x60] sm:$0xff] %v5317
    %5489 = vst [vmem:[#allocation20 + $0x68] sm:$0xff] %v5346
    %5490 = vst [vmem:[#allocation20 + $0x70] sm:$0xff] %v5375
    %5491 = vst [vmem:[#allocation20 + $0x78] sm:$0xff] %v5404
    %5492 = vst [vmem:[#allocation20 + $0x80] sm:$0xff] %v5433
    %5493 = vst [vmem:[#allocation20 + $0x88] sm:$0xff] %v5462
    %5494 = vst [vmem:[#allocation20 + $0x90] sm:$0xff] %v5319
    %5495 = vst [vmem:[#allocation20 + $0x98] sm:$0xff] %v5348
    %5496 = vst [vmem:[#allocation20 + $0xa0] sm:$0xff] %v5377
    %5497 = vst [vmem:[#allocation20 + $0xa8] sm:$0xff] %v5406
    %5498 = vst [vmem:[#allocation20 + $0xb0] sm:$0xff] %v5435
    %5499 = vst [vmem:[#allocation20 + $0xb8] sm:$0xff] %v5464
    %5500 = vst [vmem:[#allocation20 + $0xc0] sm:$0xff] %v5322
    %5501 = vst [vmem:[#allocation20 + $0xc8] sm:$0xff] %v5351
    %5502 = vst [vmem:[#allocation20 + $0xd0] sm:$0xff] %v5380
    %5503 = vst [vmem:[#allocation20 + $0xd8] sm:$0xff] %v5409
    %5504 = vst [vmem:[#allocation20 + $0xe0] sm:$0xff] %v5438
    %5505 = vst [vmem:[#allocation20 + $0xe8] sm:$0xff] %v5467
    %5506 = vst [vmem:[#allocation20 + $0xf0] sm:$0xff] %v5324
    %5507 = vst [vmem:[#allocation20 + $0xf8] sm:$0xff] %v5353
    %5508 = vst [vmem:[#allocation20 + $0x100] sm:$0xff] %v5382
    %5509 = vst [vmem:[#allocation20 + $0x108] sm:$0xff] %v5411
    %5510 = vst [vmem:[#allocation20 + $0x110] sm:$0xff] %v5440
    %5511 = vst [vmem:[#allocation20 + $0x118] sm:$0xff] %v5469
    %5512 = vst [vmem:[#allocation20 + $0x120] sm:$0xff] %v5327
    %5513 = vst [vmem:[#allocation20 + $0x128] sm:$0xff] %v5356
    %5514 = vst [vmem:[#allocation20 + $0x130] sm:$0xff] %v5385
    %5515 = vst [vmem:[#allocation20 + $0x138] sm:$0xff] %v5414
    %5516 = vst [vmem:[#allocation20 + $0x140] sm:$0xff] %v5443
    %5517 = vst [vmem:[#allocation20 + $0x148] sm:$0xff] %v5472
    %5518 = vst [vmem:[#allocation20 + $0x150] sm:$0xff] %v5329
    %5519 = vst [vmem:[#allocation20 + $0x158] sm:$0xff] %v5358
    %5520 = vst [vmem:[#allocation20 + $0x160] sm:$0xff] %v5387
    %5521 = vst [vmem:[#allocation20 + $0x168] sm:$0xff] %v5416
    %5522 = vst [vmem:[#allocation20 + $0x170] sm:$0xff] %v5445
    %5523 = vst [vmem:[#allocation20 + $0x178] sm:$0xff] %v5474
    // Predicated region
    $region90: #{tpu_custom_call.1} parent=1 // pred_check
      _
    $region91: #{tpu_custom_call.1} parent=1 // pred_check_branch
      %5525 = sbr.rel (0) target = $region93
    $region92: #{tpu_custom_call.1} parent=1 // pred_region
      %5527 = vsyncadd [#allocation4], 0
      %s5528 = sshll.u32 [#allocation20], 4
      %s5529 = int_to_ptr.vmem [resolvable:$true] %s5528
      %s5530 = sshll.u32 %s11, 4
      %s5531 = int_to_ptr.hbm [resolvable:$true] %s5530
      %5536 = dma.vmem_to_hbm [thread:$0]  %s5529, 6144, %s5531, [#allocation4], 768, 768, 48
    $region93: #{tpu_custom_call.1} parent=1 // pred_fallthru
      _
    // Predicated region
    $region94: #{tpu_custom_call.1} parent=1 // pred_check
      _
    $region95: #{tpu_custom_call.1} parent=1 // pred_check_branch
      %5538 = sbr.rel (0) target = $region97
    $region96: #{tpu_custom_call.1} parent=1 // pred_region
      %5540 = dma.done [#allocation4], 6144
    $region97: #{tpu_custom_call.1} parent=1 // pred_fallthru
      _
    %5541 = vsyncpa [#allocation3], 1
    %5542 = vsyncpa [#allocation6], 1
    %5543 = vsyncpa [#allocation9], 1
    %5544 = vsyncpa [#allocation12], 1
    %5545 = vsyncpa [#allocation15], 1
    %5546 = vsyncpa [#allocation18], 1
    %5547 = vsyncpa [#allocation4], 1

</llo_original>
